<compile_context>
chip_gen: v7x
topology: tpu7x:2x2x1
jax: 0.10.0
libtpu: 0.0.40
codegen_flags: <defaults>
</compile_context>

<pallas_src>
import functools

import numpy as np
import jax
import jax.numpy as jnp
from jax import lax
from jax.experimental import pallas as pl
from jax.experimental.pallas import tpu as pltpu

LEAKY_SLOPE = 0.01
LN_EPS = 1e-5
BN_EPS = 1e-5
COEF_PAD = 128   # lane-dense padding for the (T, T) coefficient output

_CONST_ORDER = (
    "maskp", "maskn",
    "k1t", "b1f", "wtk", "btf", "g1t", "be1t",
    "wgf", "bgf",
    "kc1t", "kc2t", "scnp", "scnn", "sprev", "snext",
    "wd1c", "wd2c", "watt", "batt", "vatt",
    "bnsc", "bnsh", "bmask",
)


def _leaky(x):
    return jnp.where(x >= 0, x, LEAKY_SLOPE * x)


def _st_block1_kernel(
    # per-block activations (rows = bblk*T, lane-dense (channel,node) lanes)
    x_ref,        # (bblk*T, c_in*N)
    # row masks for the +-1 temporal rolls (zero at per-sample time boundaries)
    maskp_ref,    # (bblk*T, 1)  0 where t == 0
    maskn_ref,    # (bblk*T, 1)  0 where t == T-1
    # stage 1: conv1 (1x1) + time_conv (1x3) + LayerNorm
    k1t_ref,      # (c_in*N, c_out*N)     kron(w1, I_N)^T
    b1_ref,       # (1, c_out*N)
    wtk_ref,      # (3, c_in*N, c_out*N)  per-tap kron(wt[:,:,j], I_N)^T
    bt_ref,       # (1, c_out*N)
    g_ref,        # (T, c_out*N)          LayerNorm gamma (shared by stage 1 & 4)
    be_ref,       # (T, c_out*N)          LayerNorm beta
    # stage 2: dynamic_gcn, Chebyshev stack folded into dense per-tap weights
    wgf_ref,      # (3, c_out*N, 2*c_out*N)
    bg_ref,       # (1, 2*c_out*N)
    # stage 3: TATT_1
    kc1t_ref,     # (c_out*N, N)
    kc2t_ref,     # (c_out*N, c_out)
    scnp_ref,     # (N, N)   (A @ scnp)[:, i] = A[:, i-1]
    scnn_ref,     # (N, N)   (A @ scnn)[:, i] = A[:, i+1]
    sprev_ref,    # (T, T)   (sprev @ A)[t] = A[t-1]
    snext_ref,    # (T, T)   (snext @ A)[t] = A[t+1]
    wd1c_ref,     # (T, 2T)          [wd1[:,:,0] | wd1[:,:,1]]
    wd2c_ref,     # (2*c_out, c_out) [wd2[:,:,0]^T ; wd2[:,:,1]^T]
    watt_ref,     # (N, c_out)
    batt_ref,     # (T, T)
    vatt_ref,     # (T, T)
    bnsc_ref,     # (1, T)  folded BatchNorm1d scale (eval)
    bnsh_ref,     # (1, T)  folded BatchNorm1d shift (eval)
    bmask_ref,    # (T, T)  -1e13 * (1 - block mask)
    # outputs
    out_ref,      # (bblk*T, c_out*N)
    coef_ref,     # (bblk*T, COEF_PAD)  softmax coefficients, zero padded in lanes
):
    f32 = jnp.float32
    t_len = g_ref.shape[0]
    cn = g_ref.shape[1]
    rows = x_ref.shape[0]
    bblk = rows // t_len
    coef_pad = coef_ref.shape[1]

    def mm(a, w):
        # Cast the activation operand to the (possibly bf16) weight dtype; f32 accum.
        return jnp.dot(a.astype(w.dtype), w, preferred_element_type=f32)

    x = x_ref[...]
    maskp = maskp_ref[...]
    maskn = maskn_ref[...]

    def taps(v):
        # v[t-1] / v[t+1] per row via XLU sublane rolls (jnp.roll convention:
        # roll(+1)[r] = v[r-1]); per-sample time boundaries are zeroed by the masks.
        prev = pltpu.roll(v, 1, axis=0) * maskp
        nxt = pltpu.roll(v, rows - 1, axis=0) * maskn
        return prev, nxt

    # ---- stage 1: conv1 (1x1) + time_conv (1x3) + LayerNorm + leaky_relu ----------
    x_in = mm(x, k1t_ref[...]) + b1_ref[...]                         # (R, CN)
    xp, xn = taps(x)
    tc = (mm(xp, wtk_ref[0]) + mm(x, wtk_ref[1]) + mm(xn, wtk_ref[2])
          + bt_ref[...])                                             # (R, CN)
    # LayerNorm([c_out, N, T]): per-sample mean/var over the whole (T, CN) slab.
    x1a_parts = []
    for b in range(bblk):
        zb = tc[b * t_len:(b + 1) * t_len]
        mu = jnp.mean(zb)
        var = jnp.mean((zb - mu) ** 2)
        x1a_parts.append(_leaky((zb - mu) * lax.rsqrt(var + LN_EPS)
                                * g_ref[...] + be_ref[...]))
    x1a = x1a_parts[0] if bblk == 1 else jnp.concatenate(x1a_parts, axis=0)
    # TODO(synk): F.dropout(p=0.5, training) is stochastic; identity (inference) here.

    # ---- stage 2: dynamic_gcn (Chebyshev expansion pre-folded into dense taps) -----
    x1p, x1n = taps(x1a)
    z = (mm(x1p, wgf_ref[0]) + mm(x1a, wgf_ref[1]) + mm(x1n, wgf_ref[2])
         + bg_ref[...])                                              # (R, 2*CN)
    filt = z[:, :cn]
    gate = z[:, cn:]
    x1b = jax.nn.sigmoid(gate) * _leaky(filt)                        # (R, CN)
    # TODO(synk): F.dropout(p=0.1, training) skipped (inference identity).

    # ---- stages 3+4 (per sample): TATT_1 + apply attention + residual + LayerNorm --
    for b in range(bblk):
        lo = b * t_len
        xb = x1b[lo:lo + t_len]                                      # (T, CN)
        f1 = mm(xb, kc1t_ref[...])                                   # (T, N)
        f2t = mm(xb, kc2t_ref[...])                                  # (T, c_out)
        # conv_d1: both dilated taps fused into a single matmul.
        f1s = jnp.concatenate([mm(f1, scnp_ref[...]),
                               mm(f1, scnn_ref[...])], axis=0)       # (2T, N)
        f1d = mm(wd1c_ref[...], f1s)                                 # (T, N)
        # conv_d2: both dilated taps fused into a single matmul.
        f2s = jnp.concatenate([mm(sprev_ref[...], f2t),
                               mm(snext_ref[...], f2t)], axis=1)     # (T, 2*c_out)
        f2dt = mm(f2s, wd2c_ref[...])                                # (T, c_out)
        a = mm(f1d, watt_ref[...])                                   # (T, c_out)
        s = lax.dot_general(a, f2dt, (((1,), (1,)), ((), ())),
                            preferred_element_type=f32)              # (T, T)
        logits = mm(vatt_ref[...], jax.nn.sigmoid(s + batt_ref[...]))
        # BatchNorm1d over the column index (eval mode, folded scale/shift).
        # TODO(synk): training-mode batch statistics are not reproduced here.
        logits = logits * bnsc_ref[...] + bnsh_ref[...]
        zl = logits + bmask_ref[...]
        zl = zl - jnp.max(zl, axis=-1, keepdims=True)
        e = jnp.exp(zl)
        coefs = e / jnp.sum(e, axis=-1, keepdims=True)               # exact division
        # lane-dense (128-wide) coefficient store; wrapper slices [:, :T].
        coef_ref[lo:lo + t_len, :] = jnp.concatenate(
            [coefs, jnp.zeros((t_len, coef_pad - t_len), f32)], axis=1)

        # attention application + residual + LayerNorm (shared gamma/beta)
        y = mm(coefs, xb)                                            # (T, CN)
        z4 = _leaky(y) + x_in[lo:lo + t_len]
        mu4 = jnp.mean(z4)
        var4 = jnp.mean((z4 - mu4) ** 2)
        out_ref[lo:lo + t_len, :] = ((z4 - mu4) * lax.rsqrt(var4 + LN_EPS)
                                     * g_ref[...] + be_ref[...])


def prepare_st_block1(params, supports, *, bblk=2, weights_dtype=jnp.float32):
    """One-time host-side parameter folding (hoisted out of the jitted forward)."""
    f32 = jnp.float32
    wd = weights_dtype

    w1 = jnp.asarray(params["w1"], f32)                 # (c_out, c_in)
    c_out, _ = w1.shape
    ln_gamma = jnp.asarray(params["ln_gamma"], f32)     # (c_out, N, T)
    _, N, T = ln_gamma.shape
    wg = jnp.asarray(params["wg"], f32)                 # (2*c_out, K*c_out, Kt)
    K = wg.shape[1] // c_out
    Kt = wg.shape[2]
    assert Kt == 3, "padding=(0,1) with kernel (1,Kt) preserves T only for Kt=3"
    assert K >= 2, "T_cheby_conv always stacks at least [I, adj]"
    assert T == 24 and T <= COEF_PAD, "TATT_1 hard-codes a 24x24 attention mask"
    cn = c_out * N

    supports = jnp.asarray(supports, f32)
    eye_n = jnp.eye(N, dtype=f32)
    eye_c = jnp.eye(c_out, dtype=f32)
    ones_n = jnp.ones((1, N), f32)

    # Chebyshev Laplacian stack L_0..L_{K-1} (never shipped: folded into wgf below).
    laps = [eye_n, supports]
    for _ in range(2, K):
        laps.append(2.0 * supports @ laps[-1] - laps[-2])
    lap_stack = jnp.stack(laps[:K], axis=0)                          # (K, N, N)

    # stage 1 weights (small kron-with-identity factors, ~128 KiB total)
    k1t = jnp.kron(w1, eye_n).T                                      # (c_in*N, CN)
    b1f = jnp.kron(params["b1"].reshape(1, c_out).astype(f32), ones_n)
    wt = jnp.asarray(params["wt"], f32)                              # (c_out, c_in, Kt)
    wtk = jnp.stack([jnp.kron(wt[:, :, j], eye_n).T for j in range(Kt)], axis=0)
    btf = jnp.kron(params["bt"].reshape(1, c_out).astype(f32), ones_n)
    g1t = jnp.transpose(ln_gamma, (2, 0, 1)).reshape(T, cn)
    be1t = jnp.transpose(jnp.asarray(params["ln_beta"], f32), (2, 0, 1)).reshape(T, cn)

    # stage 2: fold the Chebyshev expansion into the grouped-conv weights:
    #   wgf[tap, c*N+n, o*N+q] = sum_k wg[o, c*K+k, tap] * L_k[q, n]
    # (replaces the 1.15 MiB kron(wg, I_N) + 192 KiB Laplacian kron, contraction
    #  depth 1152 -> 128, zero structural-zero MACs).
    wg_r = wg.reshape(2 * c_out, c_out, K, Kt)                       # [o, c, k, tap]
    wgf = jnp.einsum('ockt,kqn->tcnoq', wg_r, lap_stack).reshape(Kt, cn, 2 * cn)
    bgf = jnp.kron(params["bg"].reshape(1, 2 * c_out).astype(f32), ones_n)

    # stage 3 (TATT_1) constants
    kc1t = jnp.kron(params["wc1"].reshape(1, c_out).astype(f32), eye_n).T  # (CN, N)
    kc2t = jnp.kron(eye_c, params["wc2"].reshape(N, 1).astype(f32))        # (CN, c_out)
    wd1 = jnp.asarray(params["wd1"], f32)                            # (T, T, 2)
    wd2 = jnp.asarray(params["wd2"], f32)                            # (c_out, c_out, 2)
    wd1c = jnp.concatenate([wd1[:, :, 0], wd1[:, :, 1]], axis=1)     # (T, 2T)
    wd2c = jnp.concatenate([wd2[:, :, 0].T, wd2[:, :, 1].T], axis=0)  # (2c_out, c_out)

    bn_sc = params["bn_gamma"].astype(f32) / jnp.sqrt(params["bn_var"].astype(f32) + BN_EPS)
    bn_sh = params["bn_beta"].astype(f32) - params["bn_mean"].astype(f32) * bn_sc
    bn_sc = bn_sc.reshape(1, T)
    bn_sh = bn_sh.reshape(1, T)

    a_np = np.zeros((24, 24), np.float32)
    a_np[:12, :12] = 1.0
    a_np[12:, 12:] = 1.0
    bmask = jnp.asarray(-1e13 * (1.0 - a_np), f32)

    # tiny shift matrices for the attention-internal dilated taps (zero boundaries built in)
    sprev = jnp.asarray(np.eye(T, k=-1, dtype=np.float32))   # (sprev @ A)[t] = A[t-1]
    snext = jnp.asarray(np.eye(T, k=1, dtype=np.float32))    # (snext @ A)[t] = A[t+1]
    scnp = jnp.asarray(np.eye(N, k=1, dtype=np.float32))     # (A @ scnp)[:, i] = A[:, i-1]
    scnn = jnp.asarray(np.eye(N, k=-1, dtype=np.float32))    # (A @ scnn)[:, i] = A[:, i+1]

    # per-row boundary masks for the +-1 temporal rolls inside a bblk*T-row block
    rows = bblk * T
    t_of_row = np.arange(rows) % T
    maskp = jnp.asarray((t_of_row != 0).astype(np.float32).reshape(rows, 1))
    maskn = jnp.asarray((t_of_row != T - 1).astype(np.float32).reshape(rows, 1))

    return dict(
        maskp=maskp, maskn=maskn,
        k1t=k1t.astype(wd), b1f=b1f,
        wtk=wtk.astype(wd), btf=btf, g1t=g1t, be1t=be1t,
        wgf=wgf.astype(wd), bgf=bgf,
        kc1t=kc1t.astype(wd), kc2t=kc2t.astype(wd),
        scnp=scnp.astype(wd), scnn=scnn.astype(wd),
        sprev=sprev.astype(wd), snext=snext.astype(wd),
        wd1c=wd1c.astype(wd), wd2c=wd2c.astype(wd),
        watt=params["w_att"].astype(wd), batt=params["b_att"].astype(f32),
        vatt=params["v_att"].astype(wd),
        bnsc=bn_sc, bnsh=bn_sh, bmask=bmask,
    )


def st_block_1_forward(x, supports, const, *, bblk=2):
    """ST_BLOCK_1.forward (eval mode). Returns (out, supports, T_coef).

    `const` must come from prepare_st_block1 (folding is hoisted out of jit)."""
    f32 = jnp.float32
    B, c_in, N, T = x.shape
    cn = const["g1t"].shape[1]
    c_out = cn // N
    cin_n = c_in * N
    rows = bblk * T
    assert const["g1t"].shape[0] == T
    assert const["maskp"].shape[0] == rows, "bblk mismatch between prepare() and forward()"

    x = x.astype(f32)
    # time-major, lane-dense layout: row = (sample, t), lanes = channel*node
    x2d = jnp.transpose(x, (0, 3, 1, 2)).reshape(B * T, cin_n)

    # pad the batch to a multiple of bblk (grid stays short and even-length)
    pad = (-B) % bblk
    if pad:
        x2d = jnp.concatenate([x2d, jnp.zeros((pad * T, cin_n), f32)], axis=0)
    nb = (B + pad) // bblk

    const_ops = [const[k] for k in _CONST_ORDER]
    in_specs = (
        [pl.BlockSpec((rows, cin_n), lambda i: (i, 0))]
        + [pl.BlockSpec(a.shape, lambda i, _n=a.ndim: (0,) * _n) for a in const_ops])

    out2d, coef2d = pl.pallas_call(
        _st_block1_kernel,
        out_shape=(jax.ShapeDtypeStruct(((B + pad) * T, cn), f32),
                   jax.ShapeDtypeStruct(((B + pad) * T, COEF_PAD), f32)),
        grid=(nb,),
        in_specs=in_specs,
        out_specs=[pl.BlockSpec((rows, cn), lambda i: (i, 0)),
                   pl.BlockSpec((rows, COEF_PAD), lambda i: (i, 0))],
        compiler_params=pltpu.CompilerParams(dimension_semantics=("parallel",)),
    )(x2d, *const_ops)

    out = jnp.transpose(out2d[:B * T].reshape(B, T, c_out, N), (0, 2, 3, 1))  # (B,c,N,T)
    coefs = coef2d[:B * T, :T].reshape(B, T, T)
    t_coef = jnp.swapaxes(coefs, -1, -2)                                      # T_coef
    return out, supports, t_coef


def init_params(key, c_in, c_out, N, T, K, Kt):
    ks = jax.random.split(key, 12)

    def u(k, shape, s=0.3):
        return jax.random.uniform(k, shape, jnp.float32, -s, s)

    return dict(
        w1=u(ks[0], (c_out, c_in)),               # ST_BLOCK_1.conv1 weight
        b1=u(ks[1], (c_out,), 0.1),               # ST_BLOCK_1.conv1 bias
        wt=u(ks[2], (c_out, c_in, Kt)),           # time_conv weight
        bt=u(ks[3], (c_out,), 0.1),               # time_conv bias
        ln_gamma=jnp.ones((c_out, N, T), jnp.float32),   # LayerNorm affine
        ln_beta=jnp.zeros((c_out, N, T), jnp.float32),
        wg=u(ks[4], (2 * c_out, K * c_out, Kt), 0.15),   # T_cheby_conv.conv1 weight
        bg=u(ks[5], (2 * c_out,), 0.1),
        wc1=u(ks[6], (c_out,)),                   # TATT_1.conv1 weight (1,c_out,1,1)
        wc2=u(ks[7], (N,)),                       # TATT_1.conv2 weight (1,N,1,1)
        wd1=u(ks[8], (T, T, 2), 0.15),            # TATT_1.conv_d1 weight
        wd2=u(ks[9], (c_out, c_out, 2), 0.25),    # TATT_1.conv_d2 weight
        w_att=u(ks[10], (N, c_out)),              # TATT_1.w
        b_att=jnp.zeros((T, T), jnp.float32),     # TATT_1.b
        v_att=u(ks[11], (T, T), 0.25),            # TATT_1.v
        bn_gamma=jnp.ones((T,), jnp.float32),     # TATT_1.bn (eval mode)
        bn_beta=jnp.zeros((T,), jnp.float32),
        bn_mean=jnp.zeros((T,), jnp.float32),
        bn_var=jnp.ones((T,), jnp.float32),
    )


if __name__ == "__main__":
    B, c_in, c_out, N, T, K, Kt = 8, 4, 8, 16, 24, 3, 3
    BBLK = 2                                   # samples per grid step; grid = B/BBLK = 4
    key = jax.random.PRNGKey(0)
    kx, ka, kp = jax.random.split(key, 3)

    x = jax.random.normal(kx, (B, c_in, N, T), jnp.float32)
    adj = jax.random.uniform(ka, (N, N), jnp.float32, 0.0, 1.0)
    adj = adj / jnp.sum(adj, axis=1, keepdims=True)        # row-normalized support
    params = init_params(kp, c_in, c_out, N, T, K, Kt)

    # One-time host-side folding (use weights_dtype=jnp.bfloat16 for the bf16 option).
    const = prepare_st_block1(params, adj, bblk=BBLK, weights_dtype=jnp.float32)

    fwd = jax.jit(functools.partial(st_block_1_forward, bblk=BBLK))
    out, supports, t_coef = fwd(x, adj, const)
    jax.block_until_ready((out, supports, t_coef))

    assert out.shape == (B, c_out, N, T)
    assert supports.shape == (N, N)
    assert t_coef.shape == (B, T, T)
    assert bool(jnp.all(jnp.isfinite(out))) and bool(jnp.all(jnp.isfinite(t_coef)))
    # softmax rows (columns of the transposed T_coef) must sum to 1
    assert bool(jnp.allclose(jnp.sum(t_coef, axis=1), 1.0, atol=1e-4))
    print("KERNEL_OK")
</pallas_src>

<mosaic_0001>
module attributes {stable_mosaic.version = 11 : i64} {
  func.func @_st_block1_kernel(%arg0: i32, %arg1: memref<48x64xf32, #tpu.memory_space<vmem>>, %arg2: memref<48x1xf32, #tpu.memory_space<vmem>>, %arg3: memref<48x1xf32, #tpu.memory_space<vmem>>, %arg4: memref<64x128xf32, #tpu.memory_space<vmem>>, %arg5: memref<1x128xf32, #tpu.memory_space<vmem>>, %arg6: memref<3x64x128xf32, #tpu.memory_space<vmem>>, %arg7: memref<1x128xf32, #tpu.memory_space<vmem>>, %arg8: memref<24x128xf32, #tpu.memory_space<vmem>>, %arg9: memref<24x128xf32, #tpu.memory_space<vmem>>, %arg10: memref<3x128x256xf32, #tpu.memory_space<vmem>>, %arg11: memref<1x256xf32, #tpu.memory_space<vmem>>, %arg12: memref<128x16xf32, #tpu.memory_space<vmem>>, %arg13: memref<128x8xf32, #tpu.memory_space<vmem>>, %arg14: memref<16x16xf32, #tpu.memory_space<vmem>>, %arg15: memref<16x16xf32, #tpu.memory_space<vmem>>, %arg16: memref<24x24xf32, #tpu.memory_space<vmem>>, %arg17: memref<24x24xf32, #tpu.memory_space<vmem>>, %arg18: memref<24x48xf32, #tpu.memory_space<vmem>>, %arg19: memref<16x8xf32, #tpu.memory_space<vmem>>, %arg20: memref<16x8xf32, #tpu.memory_space<vmem>>, %arg21: memref<24x24xf32, #tpu.memory_space<vmem>>, %arg22: memref<24x24xf32, #tpu.memory_space<vmem>>, %arg23: memref<1x24xf32, #tpu.memory_space<vmem>>, %arg24: memref<1x24xf32, #tpu.memory_space<vmem>>, %arg25: memref<24x24xf32, #tpu.memory_space<vmem>>, %arg26: memref<48x128xf32, #tpu.memory_space<vmem>>, %arg27: memref<48x128xf32, #tpu.memory_space<vmem>>) attributes {dimension_semantics = [#tpu.dimension_semantics<parallel>], iteration_bounds = array<i64: 4>, scalar_prefetch = 0 : i64, scratch_operands = 0 : i64, tpu.core_type = #tpu.core_type<tc>, window_params = [{transform_indices = @transform_0, window_bounds = array<i64: 48, 64>}, {pipeline_mode = #tpu.pipeline_mode<synchronous>, transform_indices = @transform_1, window_bounds = array<i64: 48, 1>}, {pipeline_mode = #tpu.pipeline_mode<synchronous>, transform_indices = @transform_2, window_bounds = array<i64: 48, 1>}, {pipeline_mode = #tpu.pipeline_mode<synchronous>, transform_indices = @transform_3, window_bounds = array<i64: 64, 128>}, {pipeline_mode = #tpu.pipeline_mode<synchronous>, transform_indices = @transform_4, window_bounds = array<i64: 1, 128>}, {pipeline_mode = #tpu.pipeline_mode<synchronous>, transform_indices = @transform_5, window_bounds = array<i64: 3, 64, 128>}, {pipeline_mode = #tpu.pipeline_mode<synchronous>, transform_indices = @transform_6, window_bounds = array<i64: 1, 128>}, {pipeline_mode = #tpu.pipeline_mode<synchronous>, transform_indices = @transform_7, window_bounds = array<i64: 24, 128>}, {pipeline_mode = #tpu.pipeline_mode<synchronous>, transform_indices = @transform_8, window_bounds = array<i64: 24, 128>}, {pipeline_mode = #tpu.pipeline_mode<synchronous>, transform_indices = @transform_9, window_bounds = array<i64: 3, 128, 256>}, {pipeline_mode = #tpu.pipeline_mode<synchronous>, transform_indices = @transform_10, window_bounds = array<i64: 1, 256>}, {pipeline_mode = #tpu.pipeline_mode<synchronous>, transform_indices = @transform_11, window_bounds = array<i64: 128, 16>}, {pipeline_mode = #tpu.pipeline_mode<synchronous>, transform_indices = @transform_12, window_bounds = array<i64: 128, 8>}, {pipeline_mode = #tpu.pipeline_mode<synchronous>, transform_indices = @transform_13, window_bounds = array<i64: 16, 16>}, {pipeline_mode = #tpu.pipeline_mode<synchronous>, transform_indices = @transform_14, window_bounds = array<i64: 16, 16>}, {pipeline_mode = #tpu.pipeline_mode<synchronous>, transform_indices = @transform_15, window_bounds = array<i64: 24, 24>}, {pipeline_mode = #tpu.pipeline_mode<synchronous>, transform_indices = @transform_16, window_bounds = array<i64: 24, 24>}, {pipeline_mode = #tpu.pipeline_mode<synchronous>, transform_indices = @transform_17, window_bounds = array<i64: 24, 48>}, {pipeline_mode = #tpu.pipeline_mode<synchronous>, transform_indices = @transform_18, window_bounds = array<i64: 16, 8>}, {pipeline_mode = #tpu.pipeline_mode<synchronous>, transform_indices = @transform_19, window_bounds = array<i64: 16, 8>}, {pipeline_mode = #tpu.pipeline_mode<synchronous>, transform_indices = @transform_20, window_bounds = array<i64: 24, 24>}, {pipeline_mode = #tpu.pipeline_mode<synchronous>, transform_indices = @transform_21, window_bounds = array<i64: 24, 24>}, {pipeline_mode = #tpu.pipeline_mode<synchronous>, transform_indices = @transform_22, window_bounds = array<i64: 1, 24>}, {pipeline_mode = #tpu.pipeline_mode<synchronous>, transform_indices = @transform_23, window_bounds = array<i64: 1, 24>}, {pipeline_mode = #tpu.pipeline_mode<synchronous>, transform_indices = @transform_24, window_bounds = array<i64: 24, 24>}, {transform_indices = @transform_25, window_bounds = array<i64: 48, 128>}, {transform_indices = @transform_26, window_bounds = array<i64: 48, 128>}]} {
    %c0 = arith.constant 0 : index
    %c0_0 = arith.constant 0 : index
    %0 = vector.load %arg1[%c0, %c0_0] : memref<48x64xf32, #tpu.memory_space<vmem>>, vector<48x64xf32>
    %c0_1 = arith.constant 0 : index
    %c0_2 = arith.constant 0 : index
    %1 = vector.load %arg2[%c0_1, %c0_2] : memref<48x1xf32, #tpu.memory_space<vmem>>, vector<48x1xf32>
    %c0_3 = arith.constant 0 : index
    %c0_4 = arith.constant 0 : index
    %2 = vector.load %arg3[%c0_3, %c0_4] : memref<48x1xf32, #tpu.memory_space<vmem>>, vector<48x1xf32>
    %c0_5 = arith.constant 0 : index
    %c0_6 = arith.constant 0 : index
    %3 = vector.load %arg4[%c0_5, %c0_6] : memref<64x128xf32, #tpu.memory_space<vmem>>, vector<64x128xf32>
    %cst = arith.constant dense<0.000000e+00> : vector<48x128xf32>
    %4 = tpu.matmul %0, %3, %cst {dimension_numbers = #tpu.dot_dimension_numbers<[1], [0], [0], [1], [0, 0, 1, 1], [], []>} : vector<48x64xf32>, vector<64x128xf32>, vector<48x128xf32> -> vector<48x128xf32>
    %c0_7 = arith.constant 0 : index
    %c0_8 = arith.constant 0 : index
    %5 = vector.load %arg5[%c0_7, %c0_8] : memref<1x128xf32, #tpu.memory_space<vmem>>, vector<1x128xf32>
    %6 = vector.broadcast %5 : vector<1x128xf32> to vector<48x128xf32>
    %7 = arith.addf %4, %6 : vector<48x128xf32>
    %c1_i32 = arith.constant 1 : i32
    %8 = tpu.dynamic_rotate %0 by %c1_i32 dim 0 : vector<48x64xf32>, i32 -> vector<48x64xf32>
    %9 = vector.broadcast %1 : vector<48x1xf32> to vector<48x64xf32>
    %10 = arith.mulf %8, %9 : vector<48x64xf32>
    %c47_i32 = arith.constant 47 : i32
    %11 = tpu.dynamic_rotate %0 by %c47_i32 dim 0 : vector<48x64xf32>, i32 -> vector<48x64xf32>
    %12 = vector.broadcast %2 : vector<48x1xf32> to vector<48x64xf32>
    %13 = arith.mulf %11, %12 : vector<48x64xf32>
    %c0_9 = arith.constant 0 : index
    %c0_10 = arith.constant 0 : index
    %c0_11 = arith.constant 0 : index
    %14 = vector.load %arg6[%c0_9, %c0_10, %c0_11] : memref<3x64x128xf32, #tpu.memory_space<vmem>>, vector<1x64x128xf32>
    %15 = vector.shape_cast %14 : vector<1x64x128xf32> to vector<64x128xf32>
    %cst_12 = arith.constant dense<0.000000e+00> : vector<48x128xf32>
    %16 = tpu.matmul %10, %15, %cst_12 {dimension_numbers = #tpu.dot_dimension_numbers<[1], [0], [0], [1], [0, 0, 1, 1], [], []>} : vector<48x64xf32>, vector<64x128xf32>, vector<48x128xf32> -> vector<48x128xf32>
    %c1 = arith.constant 1 : index
    %c0_13 = arith.constant 0 : index
    %c0_14 = arith.constant 0 : index
    %17 = vector.load %arg6[%c1, %c0_13, %c0_14] : memref<3x64x128xf32, #tpu.memory_space<vmem>>, vector<1x64x128xf32>
    %18 = vector.shape_cast %17 : vector<1x64x128xf32> to vector<64x128xf32>
    %cst_15 = arith.constant dense<0.000000e+00> : vector<48x128xf32>
    %19 = tpu.matmul %0, %18, %cst_15 {dimension_numbers = #tpu.dot_dimension_numbers<[1], [0], [0], [1], [0, 0, 1, 1], [], []>} : vector<48x64xf32>, vector<64x128xf32>, vector<48x128xf32> -> vector<48x128xf32>
    %20 = arith.addf %16, %19 : vector<48x128xf32>
    %c2 = arith.constant 2 : index
    %c0_16 = arith.constant 0 : index
    %c0_17 = arith.constant 0 : index
    %21 = vector.load %arg6[%c2, %c0_16, %c0_17] : memref<3x64x128xf32, #tpu.memory_space<vmem>>, vector<1x64x128xf32>
    %22 = vector.shape_cast %21 : vector<1x64x128xf32> to vector<64x128xf32>
    %cst_18 = arith.constant dense<0.000000e+00> : vector<48x128xf32>
    %23 = tpu.matmul %13, %22, %cst_18 {dimension_numbers = #tpu.dot_dimension_numbers<[1], [0], [0], [1], [0, 0, 1, 1], [], []>} : vector<48x64xf32>, vector<64x128xf32>, vector<48x128xf32> -> vector<48x128xf32>
    %24 = arith.addf %20, %23 : vector<48x128xf32>
    %c0_19 = arith.constant 0 : index
    %c0_20 = arith.constant 0 : index
    %25 = vector.load %arg7[%c0_19, %c0_20] : memref<1x128xf32, #tpu.memory_space<vmem>>, vector<1x128xf32>
    %26 = vector.broadcast %25 : vector<1x128xf32> to vector<48x128xf32>
    %27 = arith.addf %24, %26 : vector<48x128xf32>
    %28 = vector.extract_strided_slice %27 {offsets = [0, 0], sizes = [24, 128], strides = [1, 1]} : vector<48x128xf32> to vector<24x128xf32>
    %29 = vector.shape_cast %28 : vector<24x128xf32> to vector<1x24x128xf32>
    %cst_21 = arith.constant dense<0.000000e+00> : vector<1xf32>
    %30 = vector.multi_reduction <add>, %29, %cst_21 [1, 2] : vector<1x24x128xf32> to vector<1xf32>
    %31 = vector.shape_cast %30 : vector<1xf32> to vector<1x1x1xf32>
    %32 = vector.extract %31[0, 0, 0] : f32 from vector<1x1x1xf32>
    %cst_22 = arith.constant 3.072000e+03 : f32
    %33 = arith.divf %32, %cst_22 : f32
    %34 = vector.broadcast %33 : f32 to vector<24x128xf32>
    %35 = arith.subf %28, %34 : vector<24x128xf32>
    %36 = arith.mulf %35, %35 : vector<24x128xf32>
    %37 = vector.shape_cast %36 : vector<24x128xf32> to vector<1x24x128xf32>
    %cst_23 = arith.constant dense<0.000000e+00> : vector<1xf32>
    %38 = vector.multi_reduction <add>, %37, %cst_23 [1, 2] : vector<1x24x128xf32> to vector<1xf32>
    %39 = vector.shape_cast %38 : vector<1xf32> to vector<1x1x1xf32>
    %40 = vector.extract %39[0, 0, 0] : f32 from vector<1x1x1xf32>
    %cst_24 = arith.constant 3.072000e+03 : f32
    %41 = arith.divf %40, %cst_24 : f32
    %42 = vector.broadcast %33 : f32 to vector<24x128xf32>
    %43 = arith.subf %28, %42 : vector<24x128xf32>
    %cst_25 = arith.constant 9.99999974E-6 : f32
    %44 = arith.addf %41, %cst_25 : f32
    %45 = math.rsqrt %44 : f32
    %46 = vector.broadcast %45 : f32 to vector<24x128xf32>
    %47 = arith.mulf %43, %46 : vector<24x128xf32>
    %c0_26 = arith.constant 0 : index
    %c0_27 = arith.constant 0 : index
    %48 = vector.load %arg8[%c0_26, %c0_27] : memref<24x128xf32, #tpu.memory_space<vmem>>, vector<24x128xf32>
    %49 = arith.mulf %47, %48 : vector<24x128xf32>
    %c0_28 = arith.constant 0 : index
    %c0_29 = arith.constant 0 : index
    %50 = vector.load %arg9[%c0_28, %c0_29] : memref<24x128xf32, #tpu.memory_space<vmem>>, vector<24x128xf32>
    %51 = arith.addf %49, %50 : vector<24x128xf32>
    %cst_30 = arith.constant 0.000000e+00 : f32
    %52 = vector.broadcast %cst_30 : f32 to vector<24x128xf32>
    %53 = arith.cmpf oge, %51, %52 : vector<24x128xf32>
    %cst_31 = arith.constant 0.00999999977 : f32
    %54 = vector.broadcast %cst_31 : f32 to vector<24x128xf32>
    %55 = arith.mulf %54, %51 : vector<24x128xf32>
    %56 = arith.select %53, %51, %55 : vector<24x128xi1>, vector<24x128xf32>
    %57 = vector.extract_strided_slice %27 {offsets = [24, 0], sizes = [24, 128], strides = [1, 1]} : vector<48x128xf32> to vector<24x128xf32>
    %58 = vector.shape_cast %57 : vector<24x128xf32> to vector<1x24x128xf32>
    %cst_32 = arith.constant dense<0.000000e+00> : vector<1xf32>
    %59 = vector.multi_reduction <add>, %58, %cst_32 [1, 2] : vector<1x24x128xf32> to vector<1xf32>
    %60 = vector.shape_cast %59 : vector<1xf32> to vector<1x1x1xf32>
    %61 = vector.extract %60[0, 0, 0] : f32 from vector<1x1x1xf32>
    %cst_33 = arith.constant 3.072000e+03 : f32
    %62 = arith.divf %61, %cst_33 : f32
    %63 = vector.broadcast %62 : f32 to vector<24x128xf32>
    %64 = arith.subf %57, %63 : vector<24x128xf32>
    %65 = arith.mulf %64, %64 : vector<24x128xf32>
    %66 = vector.shape_cast %65 : vector<24x128xf32> to vector<1x24x128xf32>
    %cst_34 = arith.constant dense<0.000000e+00> : vector<1xf32>
    %67 = vector.multi_reduction <add>, %66, %cst_34 [1, 2] : vector<1x24x128xf32> to vector<1xf32>
    %68 = vector.shape_cast %67 : vector<1xf32> to vector<1x1x1xf32>
    %69 = vector.extract %68[0, 0, 0] : f32 from vector<1x1x1xf32>
    %cst_35 = arith.constant 3.072000e+03 : f32
    %70 = arith.divf %69, %cst_35 : f32
    %71 = vector.broadcast %62 : f32 to vector<24x128xf32>
    %72 = arith.subf %57, %71 : vector<24x128xf32>
    %cst_36 = arith.constant 9.99999974E-6 : f32
    %73 = arith.addf %70, %cst_36 : f32
    %74 = math.rsqrt %73 : f32
    %75 = vector.broadcast %74 : f32 to vector<24x128xf32>
    %76 = arith.mulf %72, %75 : vector<24x128xf32>
    %c0_37 = arith.constant 0 : index
    %c0_38 = arith.constant 0 : index
    %77 = vector.load %arg8[%c0_37, %c0_38] : memref<24x128xf32, #tpu.memory_space<vmem>>, vector<24x128xf32>
    %78 = arith.mulf %76, %77 : vector<24x128xf32>
    %c0_39 = arith.constant 0 : index
    %c0_40 = arith.constant 0 : index
    %79 = vector.load %arg9[%c0_39, %c0_40] : memref<24x128xf32, #tpu.memory_space<vmem>>, vector<24x128xf32>
    %80 = arith.addf %78, %79 : vector<24x128xf32>
    %cst_41 = arith.constant 0.000000e+00 : f32
    %81 = vector.broadcast %cst_41 : f32 to vector<24x128xf32>
    %82 = arith.cmpf oge, %80, %81 : vector<24x128xf32>
    %cst_42 = arith.constant 0.00999999977 : f32
    %83 = vector.broadcast %cst_42 : f32 to vector<24x128xf32>
    %84 = arith.mulf %83, %80 : vector<24x128xf32>
    %85 = arith.select %82, %80, %84 : vector<24x128xi1>, vector<24x128xf32>
    %86 = tpu.concatenate %56, %85 in 0 : vector<24x128xf32>, vector<24x128xf32> -> vector<48x128xf32>
    %c1_i32_43 = arith.constant 1 : i32
    %87 = tpu.dynamic_rotate %86 by %c1_i32_43 dim 0 : vector<48x128xf32>, i32 -> vector<48x128xf32>
    %88 = vector.broadcast %1 : vector<48x1xf32> to vector<48x128xf32>
    %89 = arith.mulf %87, %88 : vector<48x128xf32>
    %c47_i32_44 = arith.constant 47 : i32
    %90 = tpu.dynamic_rotate %86 by %c47_i32_44 dim 0 : vector<48x128xf32>, i32 -> vector<48x128xf32>
    %91 = vector.broadcast %2 : vector<48x1xf32> to vector<48x128xf32>
    %92 = arith.mulf %90, %91 : vector<48x128xf32>
    %c0_45 = arith.constant 0 : index
    %c0_46 = arith.constant 0 : index
    %c0_47 = arith.constant 0 : index
    %93 = vector.load %arg10[%c0_45, %c0_46, %c0_47] : memref<3x128x256xf32, #tpu.memory_space<vmem>>, vector<1x128x256xf32>
    %94 = vector.shape_cast %93 : vector<1x128x256xf32> to vector<128x256xf32>
    %cst_48 = arith.constant dense<0.000000e+00> : vector<48x256xf32>
    %95 = tpu.matmul %89, %94, %cst_48 {dimension_numbers = #tpu.dot_dimension_numbers<[1], [0], [0], [1], [0, 0, 1, 1], [], []>} : vector<48x128xf32>, vector<128x256xf32>, vector<48x256xf32> -> vector<48x256xf32>
    %c1_49 = arith.constant 1 : index
    %c0_50 = arith.constant 0 : index
    %c0_51 = arith.constant 0 : index
    %96 = vector.load %arg10[%c1_49, %c0_50, %c0_51] : memref<3x128x256xf32, #tpu.memory_space<vmem>>, vector<1x128x256xf32>
    %97 = vector.shape_cast %96 : vector<1x128x256xf32> to vector<128x256xf32>
    %cst_52 = arith.constant dense<0.000000e+00> : vector<48x256xf32>
    %98 = tpu.matmul %86, %97, %cst_52 {dimension_numbers = #tpu.dot_dimension_numbers<[1], [0], [0], [1], [0, 0, 1, 1], [], []>} : vector<48x128xf32>, vector<128x256xf32>, vector<48x256xf32> -> vector<48x256xf32>
    %99 = arith.addf %95, %98 : vector<48x256xf32>
    %c2_53 = arith.constant 2 : index
    %c0_54 = arith.constant 0 : index
    %c0_55 = arith.constant 0 : index
    %100 = vector.load %arg10[%c2_53, %c0_54, %c0_55] : memref<3x128x256xf32, #tpu.memory_space<vmem>>, vector<1x128x256xf32>
    %101 = vector.shape_cast %100 : vector<1x128x256xf32> to vector<128x256xf32>
    %cst_56 = arith.constant dense<0.000000e+00> : vector<48x256xf32>
    %102 = tpu.matmul %92, %101, %cst_56 {dimension_numbers = #tpu.dot_dimension_numbers<[1], [0], [0], [1], [0, 0, 1, 1], [], []>} : vector<48x128xf32>, vector<128x256xf32>, vector<48x256xf32> -> vector<48x256xf32>
    %103 = arith.addf %99, %102 : vector<48x256xf32>
    %c0_57 = arith.constant 0 : index
    %c0_58 = arith.constant 0 : index
    %104 = vector.load %arg11[%c0_57, %c0_58] : memref<1x256xf32, #tpu.memory_space<vmem>>, vector<1x256xf32>
    %105 = vector.broadcast %104 : vector<1x256xf32> to vector<48x256xf32>
    %106 = arith.addf %103, %105 : vector<48x256xf32>
    %107 = vector.extract_strided_slice %106 {offsets = [0, 0], sizes = [48, 128], strides = [1, 1]} : vector<48x256xf32> to vector<48x128xf32>
    %108 = vector.extract_strided_slice %106 {offsets = [0, 128], sizes = [48, 128], strides = [1, 1]} : vector<48x256xf32> to vector<48x128xf32>
    %109 = arith.negf %108 : vector<48x128xf32>
    %110 = math.exp %109 : vector<48x128xf32>
    %cst_59 = arith.constant 1.000000e+00 : f32
    %111 = vector.broadcast %cst_59 : f32 to vector<48x128xf32>
    %112 = arith.addf %111, %110 : vector<48x128xf32>
    %113 = arith.divf %111, %112 : vector<48x128xf32>
    %cst_60 = arith.constant 0.000000e+00 : f32
    %114 = vector.broadcast %cst_60 : f32 to vector<48x128xf32>
    %115 = arith.cmpf oge, %107, %114 : vector<48x128xf32>
    %cst_61 = arith.constant 0.00999999977 : f32
    %116 = vector.broadcast %cst_61 : f32 to vector<48x128xf32>
    %117 = arith.mulf %116, %107 : vector<48x128xf32>
    %118 = arith.select %115, %107, %117 : vector<48x128xi1>, vector<48x128xf32>
    %119 = arith.mulf %113, %118 : vector<48x128xf32>
    %120 = vector.extract_strided_slice %119 {offsets = [0, 0], sizes = [24, 128], strides = [1, 1]} : vector<48x128xf32> to vector<24x128xf32>
    %c0_62 = arith.constant 0 : index
    %c0_63 = arith.constant 0 : index
    %121 = vector.load %arg12[%c0_62, %c0_63] : memref<128x16xf32, #tpu.memory_space<vmem>>, vector<128x16xf32>
    %cst_64 = arith.constant dense<0.000000e+00> : vector<24x16xf32>
    %122 = tpu.matmul %120, %121, %cst_64 {dimension_numbers = #tpu.dot_dimension_numbers<[1], [0], [0], [1], [0, 0, 1, 1], [], []>} : vector<24x128xf32>, vector<128x16xf32>, vector<24x16xf32> -> vector<24x16xf32>
    %c0_65 = arith.constant 0 : index
    %c0_66 = arith.constant 0 : index
    %123 = vector.load %arg13[%c0_65, %c0_66] : memref<128x8xf32, #tpu.memory_space<vmem>>, vector<128x8xf32>
    %cst_67 = arith.constant dense<0.000000e+00> : vector<24x8xf32>
    %124 = tpu.matmul %120, %123, %cst_67 {dimension_numbers = #tpu.dot_dimension_numbers<[1], [0], [0], [1], [0, 0, 1, 1], [], []>} : vector<24x128xf32>, vector<128x8xf32>, vector<24x8xf32> -> vector<24x8xf32>
    %c0_68 = arith.constant 0 : index
    %c0_69 = arith.constant 0 : index
    %125 = vector.load %arg14[%c0_68, %c0_69] : memref<16x16xf32, #tpu.memory_space<vmem>>, vector<16x16xf32>
    %cst_70 = arith.constant dense<0.000000e+00> : vector<24x16xf32>
    %126 = tpu.matmul %122, %125, %cst_70 {dimension_numbers = #tpu.dot_dimension_numbers<[1], [0], [0], [1], [0, 0, 1, 1], [], []>} : vector<24x16xf32>, vector<16x16xf32>, vector<24x16xf32> -> vector<24x16xf32>
    %c0_71 = arith.constant 0 : index
    %c0_72 = arith.constant 0 : index
    %127 = vector.load %arg15[%c0_71, %c0_72] : memref<16x16xf32, #tpu.memory_space<vmem>>, vector<16x16xf32>
    %cst_73 = arith.constant dense<0.000000e+00> : vector<24x16xf32>
    %128 = tpu.matmul %122, %127, %cst_73 {dimension_numbers = #tpu.dot_dimension_numbers<[1], [0], [0], [1], [0, 0, 1, 1], [], []>} : vector<24x16xf32>, vector<16x16xf32>, vector<24x16xf32> -> vector<24x16xf32>
    %129 = tpu.concatenate %126, %128 in 0 : vector<24x16xf32>, vector<24x16xf32> -> vector<48x16xf32>
    %c0_74 = arith.constant 0 : index
    %c0_75 = arith.constant 0 : index
    %130 = vector.load %arg18[%c0_74, %c0_75] : memref<24x48xf32, #tpu.memory_space<vmem>>, vector<24x48xf32>
    %cst_76 = arith.constant dense<0.000000e+00> : vector<24x16xf32>
    %131 = tpu.matmul %130, %129, %cst_76 {dimension_numbers = #tpu.dot_dimension_numbers<[1], [0], [0], [1], [0, 0, 1, 1], [], []>} : vector<24x48xf32>, vector<48x16xf32>, vector<24x16xf32> -> vector<24x16xf32>
    %c0_77 = arith.constant 0 : index
    %c0_78 = arith.constant 0 : index
    %132 = vector.load %arg16[%c0_77, %c0_78] : memref<24x24xf32, #tpu.memory_space<vmem>>, vector<24x24xf32>
    %cst_79 = arith.constant dense<0.000000e+00> : vector<24x8xf32>
    %133 = tpu.matmul %132, %124, %cst_79 {dimension_numbers = #tpu.dot_dimension_numbers<[1], [0], [0], [1], [0, 0, 1, 1], [], []>} : vector<24x24xf32>, vector<24x8xf32>, vector<24x8xf32> -> vector<24x8xf32>
    %c0_80 = arith.constant 0 : index
    %c0_81 = arith.constant 0 : index
    %134 = vector.load %arg17[%c0_80, %c0_81] : memref<24x24xf32, #tpu.memory_space<vmem>>, vector<24x24xf32>
    %cst_82 = arith.constant dense<0.000000e+00> : vector<24x8xf32>
    %135 = tpu.matmul %134, %124, %cst_82 {dimension_numbers = #tpu.dot_dimension_numbers<[1], [0], [0], [1], [0, 0, 1, 1], [], []>} : vector<24x24xf32>, vector<24x8xf32>, vector<24x8xf32> -> vector<24x8xf32>
    %136 = tpu.concatenate %133, %135 in 1 : vector<24x8xf32>, vector<24x8xf32> -> vector<24x16xf32>
    %c0_83 = arith.constant 0 : index
    %c0_84 = arith.constant 0 : index
    %137 = vector.load %arg19[%c0_83, %c0_84] : memref<16x8xf32, #tpu.memory_space<vmem>>, vector<16x8xf32>
    %cst_85 = arith.constant dense<0.000000e+00> : vector<24x8xf32>
    %138 = tpu.matmul %136, %137, %cst_85 {dimension_numbers = #tpu.dot_dimension_numbers<[1], [0], [0], [1], [0, 0, 1, 1], [], []>} : vector<24x16xf32>, vector<16x8xf32>, vector<24x8xf32> -> vector<24x8xf32>
    %c0_86 = arith.constant 0 : index
    %c0_87 = arith.constant 0 : index
    %139 = vector.load %arg20[%c0_86, %c0_87] : memref<16x8xf32, #tpu.memory_space<vmem>>, vector<16x8xf32>
    %cst_88 = arith.constant dense<0.000000e+00> : vector<24x8xf32>
    %140 = tpu.matmul %131, %139, %cst_88 {dimension_numbers = #tpu.dot_dimension_numbers<[1], [0], [0], [1], [0, 0, 1, 1], [], []>} : vector<24x16xf32>, vector<16x8xf32>, vector<24x8xf32> -> vector<24x8xf32>
    %cst_89 = arith.constant dense<0.000000e+00> : vector<24x24xf32>
    %141 = tpu.matmul %140, %138, %cst_89 {dimension_numbers = #tpu.dot_dimension_numbers<[1], [1], [0], [0], [0, 0, 1, 0], [], []>} : vector<24x8xf32>, vector<24x8xf32>, vector<24x24xf32> -> vector<24x24xf32>
    %c0_90 = arith.constant 0 : index
    %c0_91 = arith.constant 0 : index
    %142 = vector.load %arg22[%c0_90, %c0_91] : memref<24x24xf32, #tpu.memory_space<vmem>>, vector<24x24xf32>
    %c0_92 = arith.constant 0 : index
    %c0_93 = arith.constant 0 : index
    %143 = vector.load %arg21[%c0_92, %c0_93] : memref<24x24xf32, #tpu.memory_space<vmem>>, vector<24x24xf32>
    %144 = arith.addf %141, %143 : vector<24x24xf32>
    %145 = arith.negf %144 : vector<24x24xf32>
    %146 = math.exp %145 : vector<24x24xf32>
    %cst_94 = arith.constant 1.000000e+00 : f32
    %147 = vector.broadcast %cst_94 : f32 to vector<24x24xf32>
    %148 = arith.addf %147, %146 : vector<24x24xf32>
    %149 = arith.divf %147, %148 : vector<24x24xf32>
    %cst_95 = arith.constant dense<0.000000e+00> : vector<24x24xf32>
    %150 = tpu.matmul %142, %149, %cst_95 {dimension_numbers = #tpu.dot_dimension_numbers<[1], [0], [0], [1], [0, 0, 1, 1], [], []>} : vector<24x24xf32>, vector<24x24xf32>, vector<24x24xf32> -> vector<24x24xf32>
    %c0_96 = arith.constant 0 : index
    %c0_97 = arith.constant 0 : index
    %151 = vector.load %arg23[%c0_96, %c0_97] : memref<1x24xf32, #tpu.memory_space<vmem>>, vector<1x24xf32>
    %152 = vector.broadcast %151 : vector<1x24xf32> to vector<24x24xf32>
    %153 = arith.mulf %150, %152 : vector<24x24xf32>
    %c0_98 = arith.constant 0 : index
    %c0_99 = arith.constant 0 : index
    %154 = vector.load %arg24[%c0_98, %c0_99] : memref<1x24xf32, #tpu.memory_space<vmem>>, vector<1x24xf32>
    %155 = vector.broadcast %154 : vector<1x24xf32> to vector<24x24xf32>
    %156 = arith.addf %153, %155 : vector<24x24xf32>
    %c0_100 = arith.constant 0 : index
    %c0_101 = arith.constant 0 : index
    %157 = vector.load %arg25[%c0_100, %c0_101] : memref<24x24xf32, #tpu.memory_space<vmem>>, vector<24x24xf32>
    %158 = arith.addf %156, %157 : vector<24x24xf32>
    %cst_102 = arith.constant dense<0xFF800000> : vector<24xf32>
    %159 = vector.multi_reduction <maximumf>, %158, %cst_102 [1] : vector<24x24xf32> to vector<24xf32>
    %160 = vector.shape_cast %159 : vector<24xf32> to vector<24x1xf32>
    %161 = vector.broadcast %160 : vector<24x1xf32> to vector<24x24xf32>
    %162 = arith.subf %158, %161 : vector<24x24xf32>
    %163 = math.exp %162 : vector<24x24xf32>
    %cst_103 = arith.constant dense<0.000000e+00> : vector<24xf32>
    %164 = vector.multi_reduction <add>, %163, %cst_103 [1] : vector<24x24xf32> to vector<24xf32>
    %165 = vector.shape_cast %164 : vector<24xf32> to vector<24x1xf32>
    %166 = vector.broadcast %165 : vector<24x1xf32> to vector<24x24xf32>
    %167 = arith.divf %163, %166 : vector<24x24xf32>
    %cst_104 = arith.constant 0.000000e+00 : f32
    %168 = vector.broadcast %cst_104 : f32 to vector<24x104xf32>
    %169 = tpu.concatenate %167, %168 in 1 : vector<24x24xf32>, vector<24x104xf32> -> vector<24x128xf32>
    %c0_105 = arith.constant 0 : index
    %c0_106 = arith.constant 0 : index
    %170 = vector.load %arg27[%c0_105, %c0_106] : memref<48x128xf32, #tpu.memory_space<vmem>>, vector<24x128xf32>
    tpu.vector_store %arg27[%c0_105, %c0_106], %169 {strides = array<i32>} : memref<48x128xf32, #tpu.memory_space<vmem>>, vector<24x128xf32>,
    %cst_107 = arith.constant dense<0.000000e+00> : vector<24x128xf32>
    %171 = tpu.matmul %167, %120, %cst_107 {dimension_numbers = #tpu.dot_dimension_numbers<[1], [0], [0], [1], [0, 0, 1, 1], [], []>} : vector<24x24xf32>, vector<24x128xf32>, vector<24x128xf32> -> vector<24x128xf32>
    %cst_108 = arith.constant 0.000000e+00 : f32
    %172 = vector.broadcast %cst_108 : f32 to vector<24x128xf32>
    %173 = arith.cmpf oge, %171, %172 : vector<24x128xf32>
    %cst_109 = arith.constant 0.00999999977 : f32
    %174 = vector.broadcast %cst_109 : f32 to vector<24x128xf32>
    %175 = arith.mulf %174, %171 : vector<24x128xf32>
    %176 = arith.select %173, %171, %175 : vector<24x128xi1>, vector<24x128xf32>
    %177 = vector.extract_strided_slice %7 {offsets = [0, 0], sizes = [24, 128], strides = [1, 1]} : vector<48x128xf32> to vector<24x128xf32>
    %178 = arith.addf %176, %177 : vector<24x128xf32>
    %179 = vector.shape_cast %178 : vector<24x128xf32> to vector<1x24x128xf32>
    %cst_110 = arith.constant dense<0.000000e+00> : vector<1xf32>
    %180 = vector.multi_reduction <add>, %179, %cst_110 [1, 2] : vector<1x24x128xf32> to vector<1xf32>
    %181 = vector.shape_cast %180 : vector<1xf32> to vector<1x1x1xf32>
    %182 = vector.extract %181[0, 0, 0] : f32 from vector<1x1x1xf32>
    %cst_111 = arith.constant 3.072000e+03 : f32
    %183 = arith.divf %182, %cst_111 : f32
    %184 = vector.broadcast %183 : f32 to vector<24x128xf32>
    %185 = arith.subf %178, %184 : vector<24x128xf32>
    %186 = arith.mulf %185, %185 : vector<24x128xf32>
    %187 = vector.shape_cast %186 : vector<24x128xf32> to vector<1x24x128xf32>
    %cst_112 = arith.constant dense<0.000000e+00> : vector<1xf32>
    %188 = vector.multi_reduction <add>, %187, %cst_112 [1, 2] : vector<1x24x128xf32> to vector<1xf32>
    %189 = vector.shape_cast %188 : vector<1xf32> to vector<1x1x1xf32>
    %190 = vector.extract %189[0, 0, 0] : f32 from vector<1x1x1xf32>
    %cst_113 = arith.constant 3.072000e+03 : f32
    %191 = arith.divf %190, %cst_113 : f32
    %192 = vector.broadcast %183 : f32 to vector<24x128xf32>
    %193 = arith.subf %178, %192 : vector<24x128xf32>
    %cst_114 = arith.constant 9.99999974E-6 : f32
    %194 = arith.addf %191, %cst_114 : f32
    %195 = math.rsqrt %194 : f32
    %196 = vector.broadcast %195 : f32 to vector<24x128xf32>
    %197 = arith.mulf %193, %196 : vector<24x128xf32>
    %c0_115 = arith.constant 0 : index
    %c0_116 = arith.constant 0 : index
    %198 = vector.load %arg8[%c0_115, %c0_116] : memref<24x128xf32, #tpu.memory_space<vmem>>, vector<24x128xf32>
    %199 = arith.mulf %197, %198 : vector<24x128xf32>
    %c0_117 = arith.constant 0 : index
    %c0_118 = arith.constant 0 : index
    %200 = vector.load %arg9[%c0_117, %c0_118] : memref<24x128xf32, #tpu.memory_space<vmem>>, vector<24x128xf32>
    %201 = arith.addf %199, %200 : vector<24x128xf32>
    %c0_119 = arith.constant 0 : index
    %c0_120 = arith.constant 0 : index
    %202 = vector.load %arg26[%c0_119, %c0_120] : memref<48x128xf32, #tpu.memory_space<vmem>>, vector<24x128xf32>
    tpu.vector_store %arg26[%c0_119, %c0_120], %201 {strides = array<i32>} : memref<48x128xf32, #tpu.memory_space<vmem>>, vector<24x128xf32>,
    %203 = vector.extract_strided_slice %119 {offsets = [24, 0], sizes = [24, 128], strides = [1, 1]} : vector<48x128xf32> to vector<24x128xf32>
    %c0_121 = arith.constant 0 : index
    %c0_122 = arith.constant 0 : index
    %204 = vector.load %arg12[%c0_121, %c0_122] : memref<128x16xf32, #tpu.memory_space<vmem>>, vector<128x16xf32>
    %cst_123 = arith.constant dense<0.000000e+00> : vector<24x16xf32>
    %205 = tpu.matmul %203, %204, %cst_123 {dimension_numbers = #tpu.dot_dimension_numbers<[1], [0], [0], [1], [0, 0, 1, 1], [], []>} : vector<24x128xf32>, vector<128x16xf32>, vector<24x16xf32> -> vector<24x16xf32>
    %c0_124 = arith.constant 0 : index
    %c0_125 = arith.constant 0 : index
    %206 = vector.load %arg13[%c0_124, %c0_125] : memref<128x8xf32, #tpu.memory_space<vmem>>, vector<128x8xf32>
    %cst_126 = arith.constant dense<0.000000e+00> : vector<24x8xf32>
    %207 = tpu.matmul %203, %206, %cst_126 {dimension_numbers = #tpu.dot_dimension_numbers<[1], [0], [0], [1], [0, 0, 1, 1], [], []>} : vector<24x128xf32>, vector<128x8xf32>, vector<24x8xf32> -> vector<24x8xf32>
    %c0_127 = arith.constant 0 : index
    %c0_128 = arith.constant 0 : index
    %208 = vector.load %arg14[%c0_127, %c0_128] : memref<16x16xf32, #tpu.memory_space<vmem>>, vector<16x16xf32>
    %cst_129 = arith.constant dense<0.000000e+00> : vector<24x16xf32>
    %209 = tpu.matmul %205, %208, %cst_129 {dimension_numbers = #tpu.dot_dimension_numbers<[1], [0], [0], [1], [0, 0, 1, 1], [], []>} : vector<24x16xf32>, vector<16x16xf32>, vector<24x16xf32> -> vector<24x16xf32>
    %c0_130 = arith.constant 0 : index
    %c0_131 = arith.constant 0 : index
    %210 = vector.load %arg15[%c0_130, %c0_131] : memref<16x16xf32, #tpu.memory_space<vmem>>, vector<16x16xf32>
    %cst_132 = arith.constant dense<0.000000e+00> : vector<24x16xf32>
    %211 = tpu.matmul %205, %210, %cst_132 {dimension_numbers = #tpu.dot_dimension_numbers<[1], [0], [0], [1], [0, 0, 1, 1], [], []>} : vector<24x16xf32>, vector<16x16xf32>, vector<24x16xf32> -> vector<24x16xf32>
    %212 = tpu.concatenate %209, %211 in 0 : vector<24x16xf32>, vector<24x16xf32> -> vector<48x16xf32>
    %c0_133 = arith.constant 0 : index
    %c0_134 = arith.constant 0 : index
    %213 = vector.load %arg18[%c0_133, %c0_134] : memref<24x48xf32, #tpu.memory_space<vmem>>, vector<24x48xf32>
    %cst_135 = arith.constant dense<0.000000e+00> : vector<24x16xf32>
    %214 = tpu.matmul %213, %212, %cst_135 {dimension_numbers = #tpu.dot_dimension_numbers<[1], [0], [0], [1], [0, 0, 1, 1], [], []>} : vector<24x48xf32>, vector<48x16xf32>, vector<24x16xf32> -> vector<24x16xf32>
    %c0_136 = arith.constant 0 : index
    %c0_137 = arith.constant 0 : index
    %215 = vector.load %arg16[%c0_136, %c0_137] : memref<24x24xf32, #tpu.memory_space<vmem>>, vector<24x24xf32>
    %cst_138 = arith.constant dense<0.000000e+00> : vector<24x8xf32>
    %216 = tpu.matmul %215, %207, %cst_138 {dimension_numbers = #tpu.dot_dimension_numbers<[1], [0], [0], [1], [0, 0, 1, 1], [], []>} : vector<24x24xf32>, vector<24x8xf32>, vector<24x8xf32> -> vector<24x8xf32>
    %c0_139 = arith.constant 0 : index
    %c0_140 = arith.constant 0 : index
    %217 = vector.load %arg17[%c0_139, %c0_140] : memref<24x24xf32, #tpu.memory_space<vmem>>, vector<24x24xf32>
    %cst_141 = arith.constant dense<0.000000e+00> : vector<24x8xf32>
    %218 = tpu.matmul %217, %207, %cst_141 {dimension_numbers = #tpu.dot_dimension_numbers<[1], [0], [0], [1], [0, 0, 1, 1], [], []>} : vector<24x24xf32>, vector<24x8xf32>, vector<24x8xf32> -> vector<24x8xf32>
    %219 = tpu.concatenate %216, %218 in 1 : vector<24x8xf32>, vector<24x8xf32> -> vector<24x16xf32>
    %c0_142 = arith.constant 0 : index
    %c0_143 = arith.constant 0 : index
    %220 = vector.load %arg19[%c0_142, %c0_143] : memref<16x8xf32, #tpu.memory_space<vmem>>, vector<16x8xf32>
    %cst_144 = arith.constant dense<0.000000e+00> : vector<24x8xf32>
    %221 = tpu.matmul %219, %220, %cst_144 {dimension_numbers = #tpu.dot_dimension_numbers<[1], [0], [0], [1], [0, 0, 1, 1], [], []>} : vector<24x16xf32>, vector<16x8xf32>, vector<24x8xf32> -> vector<24x8xf32>
    %c0_145 = arith.constant 0 : index
    %c0_146 = arith.constant 0 : index
    %222 = vector.load %arg20[%c0_145, %c0_146] : memref<16x8xf32, #tpu.memory_space<vmem>>, vector<16x8xf32>
    %cst_147 = arith.constant dense<0.000000e+00> : vector<24x8xf32>
    %223 = tpu.matmul %214, %222, %cst_147 {dimension_numbers = #tpu.dot_dimension_numbers<[1], [0], [0], [1], [0, 0, 1, 1], [], []>} : vector<24x16xf32>, vector<16x8xf32>, vector<24x8xf32> -> vector<24x8xf32>
    %cst_148 = arith.constant dense<0.000000e+00> : vector<24x24xf32>
    %224 = tpu.matmul %223, %221, %cst_148 {dimension_numbers = #tpu.dot_dimension_numbers<[1], [1], [0], [0], [0, 0, 1, 0], [], []>} : vector<24x8xf32>, vector<24x8xf32>, vector<24x24xf32> -> vector<24x24xf32>
    %c0_149 = arith.constant 0 : index
    %c0_150 = arith.constant 0 : index
    %225 = vector.load %arg22[%c0_149, %c0_150] : memref<24x24xf32, #tpu.memory_space<vmem>>, vector<24x24xf32>
    %c0_151 = arith.constant 0 : index
    %c0_152 = arith.constant 0 : index
    %226 = vector.load %arg21[%c0_151, %c0_152] : memref<24x24xf32, #tpu.memory_space<vmem>>, vector<24x24xf32>
    %227 = arith.addf %224, %226 : vector<24x24xf32>
    %228 = arith.negf %227 : vector<24x24xf32>
    %229 = math.exp %228 : vector<24x24xf32>
    %cst_153 = arith.constant 1.000000e+00 : f32
    %230 = vector.broadcast %cst_153 : f32 to vector<24x24xf32>
    %231 = arith.addf %230, %229 : vector<24x24xf32>
    %232 = arith.divf %230, %231 : vector<24x24xf32>
    %cst_154 = arith.constant dense<0.000000e+00> : vector<24x24xf32>
    %233 = tpu.matmul %225, %232, %cst_154 {dimension_numbers = #tpu.dot_dimension_numbers<[1], [0], [0], [1], [0, 0, 1, 1], [], []>} : vector<24x24xf32>, vector<24x24xf32>, vector<24x24xf32> -> vector<24x24xf32>
    %c0_155 = arith.constant 0 : index
    %c0_156 = arith.constant 0 : index
    %234 = vector.load %arg23[%c0_155, %c0_156] : memref<1x24xf32, #tpu.memory_space<vmem>>, vector<1x24xf32>
    %235 = vector.broadcast %234 : vector<1x24xf32> to vector<24x24xf32>
    %236 = arith.mulf %233, %235 : vector<24x24xf32>
    %c0_157 = arith.constant 0 : index
    %c0_158 = arith.constant 0 : index
    %237 = vector.load %arg24[%c0_157, %c0_158] : memref<1x24xf32, #tpu.memory_space<vmem>>, vector<1x24xf32>
    %238 = vector.broadcast %237 : vector<1x24xf32> to vector<24x24xf32>
    %239 = arith.addf %236, %238 : vector<24x24xf32>
    %c0_159 = arith.constant 0 : index
    %c0_160 = arith.constant 0 : index
    %240 = vector.load %arg25[%c0_159, %c0_160] : memref<24x24xf32, #tpu.memory_space<vmem>>, vector<24x24xf32>
    %241 = arith.addf %239, %240 : vector<24x24xf32>
    %cst_161 = arith.constant dense<0xFF800000> : vector<24xf32>
    %242 = vector.multi_reduction <maximumf>, %241, %cst_161 [1] : vector<24x24xf32> to vector<24xf32>
    %243 = vector.shape_cast %242 : vector<24xf32> to vector<24x1xf32>
    %244 = vector.broadcast %243 : vector<24x1xf32> to vector<24x24xf32>
    %245 = arith.subf %241, %244 : vector<24x24xf32>
    %246 = math.exp %245 : vector<24x24xf32>
    %cst_162 = arith.constant dense<0.000000e+00> : vector<24xf32>
    %247 = vector.multi_reduction <add>, %246, %cst_162 [1] : vector<24x24xf32> to vector<24xf32>
    %248 = vector.shape_cast %247 : vector<24xf32> to vector<24x1xf32>
    %249 = vector.broadcast %248 : vector<24x1xf32> to vector<24x24xf32>
    %250 = arith.divf %246, %249 : vector<24x24xf32>
    %cst_163 = arith.constant 0.000000e+00 : f32
    %251 = vector.broadcast %cst_163 : f32 to vector<24x104xf32>
    %252 = tpu.concatenate %250, %251 in 1 : vector<24x24xf32>, vector<24x104xf32> -> vector<24x128xf32>
    %c24 = arith.constant 24 : index
    %c0_164 = arith.constant 0 : index
    %253 = vector.load %arg27[%c24, %c0_164] : memref<48x128xf32, #tpu.memory_space<vmem>>, vector<24x128xf32>
    tpu.vector_store %arg27[%c24, %c0_164], %252 {strides = array<i32>} : memref<48x128xf32, #tpu.memory_space<vmem>>, vector<24x128xf32>,
    %cst_165 = arith.constant dense<0.000000e+00> : vector<24x128xf32>
    %254 = tpu.matmul %250, %203, %cst_165 {dimension_numbers = #tpu.dot_dimension_numbers<[1], [0], [0], [1], [0, 0, 1, 1], [], []>} : vector<24x24xf32>, vector<24x128xf32>, vector<24x128xf32> -> vector<24x128xf32>
    %cst_166 = arith.constant 0.000000e+00 : f32
    %255 = vector.broadcast %cst_166 : f32 to vector<24x128xf32>
    %256 = arith.cmpf oge, %254, %255 : vector<24x128xf32>
    %cst_167 = arith.constant 0.00999999977 : f32
    %257 = vector.broadcast %cst_167 : f32 to vector<24x128xf32>
    %258 = arith.mulf %257, %254 : vector<24x128xf32>
    %259 = arith.select %256, %254, %258 : vector<24x128xi1>, vector<24x128xf32>
    %260 = vector.extract_strided_slice %7 {offsets = [24, 0], sizes = [24, 128], strides = [1, 1]} : vector<48x128xf32> to vector<24x128xf32>
    %261 = arith.addf %259, %260 : vector<24x128xf32>
    %262 = vector.shape_cast %261 : vector<24x128xf32> to vector<1x24x128xf32>
    %cst_168 = arith.constant dense<0.000000e+00> : vector<1xf32>
    %263 = vector.multi_reduction <add>, %262, %cst_168 [1, 2] : vector<1x24x128xf32> to vector<1xf32>
    %264 = vector.shape_cast %263 : vector<1xf32> to vector<1x1x1xf32>
    %265 = vector.extract %264[0, 0, 0] : f32 from vector<1x1x1xf32>
    %cst_169 = arith.constant 3.072000e+03 : f32
    %266 = arith.divf %265, %cst_169 : f32
    %267 = vector.broadcast %266 : f32 to vector<24x128xf32>
    %268 = arith.subf %261, %267 : vector<24x128xf32>
    %269 = arith.mulf %268, %268 : vector<24x128xf32>
    %270 = vector.shape_cast %269 : vector<24x128xf32> to vector<1x24x128xf32>
    %cst_170 = arith.constant dense<0.000000e+00> : vector<1xf32>
    %271 = vector.multi_reduction <add>, %270, %cst_170 [1, 2] : vector<1x24x128xf32> to vector<1xf32>
    %272 = vector.shape_cast %271 : vector<1xf32> to vector<1x1x1xf32>
    %273 = vector.extract %272[0, 0, 0] : f32 from vector<1x1x1xf32>
    %cst_171 = arith.constant 3.072000e+03 : f32
    %274 = arith.divf %273, %cst_171 : f32
    %275 = vector.broadcast %266 : f32 to vector<24x128xf32>
    %276 = arith.subf %261, %275 : vector<24x128xf32>
    %cst_172 = arith.constant 9.99999974E-6 : f32
    %277 = arith.addf %274, %cst_172 : f32
    %278 = math.rsqrt %277 : f32
    %279 = vector.broadcast %278 : f32 to vector<24x128xf32>
    %280 = arith.mulf %276, %279 : vector<24x128xf32>
    %c0_173 = arith.constant 0 : index
    %c0_174 = arith.constant 0 : index
    %281 = vector.load %arg8[%c0_173, %c0_174] : memref<24x128xf32, #tpu.memory_space<vmem>>, vector<24x128xf32>
    %282 = arith.mulf %280, %281 : vector<24x128xf32>
    %c0_175 = arith.constant 0 : index
    %c0_176 = arith.constant 0 : index
    %283 = vector.load %arg9[%c0_175, %c0_176] : memref<24x128xf32, #tpu.memory_space<vmem>>, vector<24x128xf32>
    %284 = arith.addf %282, %283 : vector<24x128xf32>
    %c24_177 = arith.constant 24 : index
    %c0_178 = arith.constant 0 : index
    %285 = vector.load %arg26[%c24_177, %c0_178] : memref<48x128xf32, #tpu.memory_space<vmem>>, vector<24x128xf32>
    tpu.vector_store %arg26[%c24_177, %c0_178], %284 {strides = array<i32>} : memref<48x128xf32, #tpu.memory_space<vmem>>, vector<24x128xf32>,
    return
  }
  func.func @transform_0(%arg0: i32) -> (i32, i32) {
    %c0_i32 = arith.constant 0 : i32
    %c0_i32_0 = arith.constant 0 : i32
    return %arg0, %c0_i32 : i32, i32
  }
  func.func @transform_1(%arg0: i32) -> (i32, i32) {
    %c0_i32 = arith.constant 0 : i32
    %c0_i32_0 = arith.constant 0 : i32
    %c0_i32_1 = arith.constant 0 : i32
    return %c0_i32, %c0_i32_0 : i32, i32
  }
  func.func @transform_2(%arg0: i32) -> (i32, i32) {
    %c0_i32 = arith.constant 0 : i32
    %c0_i32_0 = arith.constant 0 : i32
    %c0_i32_1 = arith.constant 0 : i32
    return %c0_i32, %c0_i32_0 : i32, i32
  }
  func.func @transform_3(%arg0: i32) -> (i32, i32) {
    %c0_i32 = arith.constant 0 : i32
    %c0_i32_0 = arith.constant 0 : i32
    %c0_i32_1 = arith.constant 0 : i32
    return %c0_i32, %c0_i32_0 : i32, i32
  }
  func.func @transform_4(%arg0: i32) -> (i32, i32) {
    %c0_i32 = arith.constant 0 : i32
    %c0_i32_0 = arith.constant 0 : i32
    %c0_i32_1 = arith.constant 0 : i32
    return %c0_i32, %c0_i32_0 : i32, i32
  }
  func.func @transform_5(%arg0: i32) -> (i32, i32, i32) {
    %c0_i32 = arith.constant 0 : i32
    %c0_i32_0 = arith.constant 0 : i32
    %c0_i32_1 = arith.constant 0 : i32
    %c0_i32_2 = arith.constant 0 : i32
    return %c0_i32, %c0_i32_0, %c0_i32_1 : i32, i32, i32
  }
  func.func @transform_6(%arg0: i32) -> (i32, i32) {
    %c0_i32 = arith.constant 0 : i32
    %c0_i32_0 = arith.constant 0 : i32
    %c0_i32_1 = arith.constant 0 : i32
    return %c0_i32, %c0_i32_0 : i32, i32
  }
  func.func @transform_7(%arg0: i32) -> (i32, i32) {
    %c0_i32 = arith.constant 0 : i32
    %c0_i32_0 = arith.constant 0 : i32
    %c0_i32_1 = arith.constant 0 : i32
    return %c0_i32, %c0_i32_0 : i32, i32
  }
  func.func @transform_8(%arg0: i32) -> (i32, i32) {
    %c0_i32 = arith.constant 0 : i32
    %c0_i32_0 = arith.constant 0 : i32
    %c0_i32_1 = arith.constant 0 : i32
    return %c0_i32, %c0_i32_0 : i32, i32
  }
  func.func @transform_9(%arg0: i32) -> (i32, i32, i32) {
    %c0_i32 = arith.constant 0 : i32
    %c0_i32_0 = arith.constant 0 : i32
    %c0_i32_1 = arith.constant 0 : i32
    %c0_i32_2 = arith.constant 0 : i32
    return %c0_i32, %c0_i32_0, %c0_i32_1 : i32, i32, i32
  }
  func.func @transform_10(%arg0: i32) -> (i32, i32) {
    %c0_i32 = arith.constant 0 : i32
    %c0_i32_0 = arith.constant 0 : i32
    %c0_i32_1 = arith.constant 0 : i32
    return %c0_i32, %c0_i32_0 : i32, i32
  }
  func.func @transform_11(%arg0: i32) -> (i32, i32) {
    %c0_i32 = arith.constant 0 : i32
    %c0_i32_0 = arith.constant 0 : i32
    %c0_i32_1 = arith.constant 0 : i32
    return %c0_i32, %c0_i32_0 : i32, i32
  }
  func.func @transform_12(%arg0: i32) -> (i32, i32) {
    %c0_i32 = arith.constant 0 : i32
    %c0_i32_0 = arith.constant 0 : i32
    %c0_i32_1 = arith.constant 0 : i32
    return %c0_i32, %c0_i32_0 : i32, i32
  }
  func.func @transform_13(%arg0: i32) -> (i32, i32) {
    %c0_i32 = arith.constant 0 : i32
    %c0_i32_0 = arith.constant 0 : i32
    %c0_i32_1 = arith.constant 0 : i32
    return %c0_i32, %c0_i32_0 : i32, i32
  }
  func.func @transform_14(%arg0: i32) -> (i32, i32) {
    %c0_i32 = arith.constant 0 : i32
    %c0_i32_0 = arith.constant 0 : i32
    %c0_i32_1 = arith.constant 0 : i32
    return %c0_i32, %c0_i32_0 : i32, i32
  }
  func.func @transform_15(%arg0: i32) -> (i32, i32) {
    %c0_i32 = arith.constant 0 : i32
    %c0_i32_0 = arith.constant 0 : i32
    %c0_i32_1 = arith.constant 0 : i32
    return %c0_i32, %c0_i32_0 : i32, i32
  }
  func.func @transform_16(%arg0: i32) -> (i32, i32) {
    %c0_i32 = arith.constant 0 : i32
    %c0_i32_0 = arith.constant 0 : i32
    %c0_i32_1 = arith.constant 0 : i32
    return %c0_i32, %c0_i32_0 : i32, i32
  }
  func.func @transform_17(%arg0: i32) -> (i32, i32) {
    %c0_i32 = arith.constant 0 : i32
    %c0_i32_0 = arith.constant 0 : i32
    %c0_i32_1 = arith.constant 0 : i32
    return %c0_i32, %c0_i32_0 : i32, i32
  }
  func.func @transform_18(%arg0: i32) -> (i32, i32) {
    %c0_i32 = arith.constant 0 : i32
    %c0_i32_0 = arith.constant 0 : i32
    %c0_i32_1 = arith.constant 0 : i32
    return %c0_i32, %c0_i32_0 : i32, i32
  }
  func.func @transform_19(%arg0: i32) -> (i32, i32) {
    %c0_i32 = arith.constant 0 : i32
    %c0_i32_0 = arith.constant 0 : i32
    %c0_i32_1 = arith.constant 0 : i32
    return %c0_i32, %c0_i32_0 : i32, i32
  }
  func.func @transform_20(%arg0: i32) -> (i32, i32) {
    %c0_i32 = arith.constant 0 : i32
    %c0_i32_0 = arith.constant 0 : i32
    %c0_i32_1 = arith.constant 0 : i32
    return %c0_i32, %c0_i32_0 : i32, i32
  }
  func.func @transform_21(%arg0: i32) -> (i32, i32) {
    %c0_i32 = arith.constant 0 : i32
    %c0_i32_0 = arith.constant 0 : i32
    %c0_i32_1 = arith.constant 0 : i32
    return %c0_i32, %c0_i32_0 : i32, i32
  }
  func.func @transform_22(%arg0: i32) -> (i32, i32) {
    %c0_i32 = arith.constant 0 : i32
    %c0_i32_0 = arith.constant 0 : i32
    %c0_i32_1 = arith.constant 0 : i32
    return %c0_i32, %c0_i32_0 : i32, i32
  }
  func.func @transform_23(%arg0: i32) -> (i32, i32) {
    %c0_i32 = arith.constant 0 : i32
    %c0_i32_0 = arith.constant 0 : i32
    %c0_i32_1 = arith.constant 0 : i32
    return %c0_i32, %c0_i32_0 : i32, i32
  }
  func.func @transform_24(%arg0: i32) -> (i32, i32) {
    %c0_i32 = arith.constant 0 : i32
    %c0_i32_0 = arith.constant 0 : i32
    %c0_i32_1 = arith.constant 0 : i32
    return %c0_i32, %c0_i32_0 : i32, i32
  }
  func.func @transform_25(%arg0: i32) -> (i32, i32) {
    %c0_i32 = arith.constant 0 : i32
    %c0_i32_0 = arith.constant 0 : i32
    return %arg0, %c0_i32 : i32, i32
  }
  func.func @transform_26(%arg0: i32) -> (i32, i32) {
    %c0_i32 = arith.constant 0 : i32
    %c0_i32_0 = arith.constant 0 : i32
    return %arg0, %c0_i32 : i32, i32
  }
}

</mosaic_0001>

<llo_original>
// kernel: st_block_1_forward.1
$region0: #{st_block_1_forward.1}
  #allocation0 [shape = 'u32[]', space=smem, size = 0x4, offset = 0x4, fixed_abs, tag = 'smem constant byte address 0x4 - core index']
  #allocation1 [shape = 'u32[144,128]{1,0:T(1,128)}', space=vmem, size = 0x12000, scoped, tag = 'internal scratch']
  %s0 = inlined_call_operand.vmem [shape: f32[192,64], index: 0, kind: input, shape index: {}]
  %s1 = inlined_call_operand.vmem [shape: f32[48,1], index: 1, kind: input, shape index: {}]
  %s2 = inlined_call_operand.vmem [shape: f32[48,1], index: 2, kind: input, shape index: {}]
  %s3 = inlined_call_operand.vmem [shape: f32[64,128], index: 3, kind: input, shape index: {}]
  %s4 = inlined_call_operand.vmem [shape: f32[1,128], index: 4, kind: input, shape index: {}]
  %s5 = inlined_call_operand.vmem [shape: f32[3,64,128], index: 5, kind: input, shape index: {}]
  %s6 = inlined_call_operand.vmem [shape: f32[1,128], index: 6, kind: input, shape index: {}]
  %s7 = inlined_call_operand.vmem [shape: f32[24,128], index: 7, kind: input, shape index: {}]
  %s8 = inlined_call_operand.vmem [shape: f32[24,128], index: 8, kind: input, shape index: {}]
  %s9 = inlined_call_operand.vmem [shape: f32[3,128,256], index: 9, kind: input, shape index: {}]
  %s10 = inlined_call_operand.vmem [shape: f32[1,256], index: 10, kind: input, shape index: {}]
  %s11 = inlined_call_operand.vmem [shape: f32[128,16], index: 11, kind: input, shape index: {}]
  %s12 = inlined_call_operand.vmem [shape: f32[128,8], index: 12, kind: input, shape index: {}]
  %s13 = inlined_call_operand.vmem [shape: f32[16,16], index: 13, kind: input, shape index: {}]
  %s14 = inlined_call_operand.vmem [shape: f32[16,16], index: 14, kind: input, shape index: {}]
  %s15 = inlined_call_operand.vmem [shape: f32[24,24], index: 15, kind: input, shape index: {}]
  %s16 = inlined_call_operand.vmem [shape: f32[24,24], index: 16, kind: input, shape index: {}]
  %s17 = inlined_call_operand.vmem [shape: f32[24,48], index: 17, kind: input, shape index: {}]
  %s18 = inlined_call_operand.vmem [shape: f32[16,8], index: 18, kind: input, shape index: {}]
  %s19 = inlined_call_operand.vmem [shape: f32[16,8], index: 19, kind: input, shape index: {}]
  %s20 = inlined_call_operand.vmem [shape: f32[24,24], index: 20, kind: input, shape index: {}]
  %s21 = inlined_call_operand.vmem [shape: f32[24,24], index: 21, kind: input, shape index: {}]
  %s22 = inlined_call_operand.vmem [shape: f32[1,24], index: 22, kind: input, shape index: {}]
  %s23 = inlined_call_operand.vmem [shape: f32[1,24], index: 23, kind: input, shape index: {}]
  %s24 = inlined_call_operand.vmem [shape: f32[24,24], index: 24, kind: input, shape index: {}]
  %s25 = inlined_call_operand.vmem [shape: f32[192,128], index: 25, kind: output, shape index: {0}]
  %s26 = inlined_call_operand.vmem [shape: f32[192,128], index: 26, kind: output, shape index: {1}]
  %27 = xla_tuple %s25, %s26
  %s28 = sld [smem:[#allocation0]]
  $region141: #{st_block_1_forward.1} parent=0
    _
  %s30 = ssub.s32 1, %s28
  %s31 = scalar_select 0, %s30, %s28
  loop: start=0, step=1, limit=6
  $region2: #{st_block_1_forward.1} parent=0 // loop_pre_header
    _
  $region3: #{st_block_1_forward.1} parent=0 // loop_header
    %s33 = sphi 0, %s37
    %p34 = scmp.ge.s32.totalorder %s33, 6
    %s43 = sphi 0, %s45
    %s46 = sphi 0, %s43
    %s47 = sphi 0, %s46
    %s63 = sphi 0, %s47
    %s67 = sphi 0, %s67
    %s69 = sphi 0, %s67
    %s70 = sphi 0, %s69
    %s84 = sphi 0, %s70
    %s88 = sphi 0, %s88
    %s90 = sphi 0, %s88
    %s91 = sphi 0, %s90
    %s105 = sphi 0, %s91
    %s109 = sphi 0, %s109
    %s111 = sphi 0, %s109
    %s112 = sphi 0, %s111
    %s126 = sphi 0, %s112
    %s130 = sphi 0, %s130
    %s132 = sphi 0, %s130
    %s133 = sphi 0, %s132
    %s147 = sphi 0, %s133
    %s151 = sphi 0, %s151
    %s153 = sphi 0, %s151
    %s154 = sphi 0, %s153
    %s168 = sphi 0, %s154
    %s172 = sphi 0, %s172
    %s174 = sphi 0, %s172
    %s175 = sphi 0, %s174
    %s189 = sphi 0, %s175
    %s193 = sphi 0, %s193
    %s195 = sphi 0, %s193
    %s196 = sphi 0, %s195
    %s210 = sphi 0, %s196
    %s214 = sphi 0, %s214
    %s216 = sphi 0, %s214
    %s217 = sphi 0, %s216
    %s231 = sphi 0, %s217
    %s235 = sphi 0, %s235
    %s237 = sphi 0, %s235
    %s238 = sphi 0, %s237
    %s252 = sphi 0, %s238
    %s256 = sphi 0, %s256
    %s258 = sphi 0, %s256
    %s259 = sphi 0, %s258
    %s273 = sphi 0, %s259
    %s277 = sphi 0, %s277
    %s279 = sphi 0, %s277
    %s280 = sphi 0, %s279
    %s294 = sphi 0, %s280
    %s298 = sphi 0, %s298
    %s300 = sphi 0, %s298
    %s301 = sphi 0, %s300
    %s315 = sphi 0, %s301
    %s319 = sphi 0, %s319
    %s321 = sphi 0, %s319
    %s322 = sphi 0, %s321
    %s336 = sphi 0, %s322
    %s340 = sphi 0, %s340
    %s342 = sphi 0, %s340
    %s343 = sphi 0, %s342
    %s357 = sphi 0, %s343
    %s361 = sphi 0, %s361
    %s363 = sphi 0, %s361
    %s364 = sphi 0, %s363
    %s378 = sphi 0, %s364
    %s382 = sphi 0, %s382
    %s384 = sphi 0, %s382
    %s385 = sphi 0, %s384
    %s399 = sphi 0, %s385
    %s403 = sphi 0, %s403
    %s405 = sphi 0, %s403
    %s406 = sphi 0, %s405
    %s420 = sphi 0, %s406
    %s424 = sphi 0, %s424
    %s426 = sphi 0, %s424
    %s427 = sphi 0, %s426
    %s441 = sphi 0, %s427
    %s445 = sphi 0, %s445
    %s447 = sphi 0, %s445
    %s448 = sphi 0, %s447
    %s462 = sphi 0, %s448
    %s466 = sphi 0, %s466
    %s468 = sphi 0, %s466
    %s469 = sphi 0, %s468
    %s483 = sphi 0, %s469
    %s487 = sphi 0, %s487
    %s489 = sphi 0, %s487
    %s490 = sphi 0, %s489
    %s504 = sphi 0, %s490
    %s508 = sphi 0, %s508
    %s510 = sphi 0, %s508
    %s511 = sphi 0, %s510
    %s525 = sphi 0, %s511
    %s529 = sphi 0, %s529
    %s531 = sphi 0, %s529
    %s532 = sphi 0, %s531
    %s546 = sphi 0, %s532
    %s550 = sphi 0, %s550
    %s552 = sphi 0, %s550
    %s553 = sphi 0, %s552
    %s567 = sphi 0, %s553
    %s573 = sphi 0, %s575
    %s576 = sphi 0, %s573
    %s577 = sphi 0, %s576
    %s593 = sphi 0, %s577
    %s599 = sphi 0, %s601
    %s602 = sphi 0, %s599
    %s603 = sphi 0, %s602
    %s619 = sphi 0, %s603
  $region4: #{st_block_1_forward.1} parent=0 // loop_header_branch
    %36 = sbr.rel (%p34) target = $region8
  $region5: #{st_block_1_forward.1} parent=0 // loop_body
    %s38 = ssub.s32 %s33, 1
    %s39 = ssub.s32 %s33, 2
    %s40 = sadd.s32 %s33, 1
    %s41 = ssub.s32 %s33, %s40
    %p42 = scmp.eq.s32.totalorder %s41, 0
    %s44 = sadd.s32 %s43, 1
    %s45 = scalar_select %p42, %s43, %s44
    %p48 = pneg %p42
    %p49 = scmp.eq.s32.totalorder %s33, 3
    %p50 = por %p48, %p49
    %p51 = scmp.ne.s32.totalorder %s43, %s46
    %p52 = scmp.eq.s32.totalorder %s33, 0
    %p53 = por %p51, %p52
    %p54 = scmp.ne.s32.totalorder %s43, %s46
    %p55 = scmp.eq.s32.totalorder %s38, 3
    %p56 = por %p54, %p55
    %p57 = scmp.ne.s32.totalorder %s46, %s47
    %p58 = scmp.eq.s32.totalorder %s38, 0
    %p59 = por %p57, %p58
    %p60 = scmp.ne.s32.totalorder %s46, %s47
    %p61 = scmp.eq.s32.totalorder %s39, 3
    %p62 = por %p60, %p61
    %p64 = scmp.ne.s32.totalorder %s47, %s63
    %p65 = scmp.eq.s32.totalorder %s39, 0
    %p66 = por %p64, %p65
    %s68 = sadd.s32 %s67, 1
    %p71 = scmp.eq.s32.totalorder %s33, 3
    %p72 = scmp.ne.s32.totalorder %s67, %s69
    %p73 = scmp.eq.s32.totalorder %s33, 0
    %p74 = por %p72, %p73
    %p75 = scmp.ne.s32.totalorder %s67, %s69
    %p76 = scmp.eq.s32.totalorder %s38, 3
    %p77 = por %p75, %p76
    %p78 = scmp.ne.s32.totalorder %s69, %s70
    %p79 = scmp.eq.s32.totalorder %s38, 0
    %p80 = por %p78, %p79
    %p81 = scmp.ne.s32.totalorder %s69, %s70
    %p82 = scmp.eq.s32.totalorder %s39, 3
    %p83 = por %p81, %p82
    %p85 = scmp.ne.s32.totalorder %s70, %s84
    %p86 = scmp.eq.s32.totalorder %s39, 0
    %p87 = por %p85, %p86
    %s89 = sadd.s32 %s88, 1
    %p92 = scmp.eq.s32.totalorder %s33, 3
    %p93 = scmp.ne.s32.totalorder %s88, %s90
    %p94 = scmp.eq.s32.totalorder %s33, 0
    %p95 = por %p93, %p94
    %p96 = scmp.ne.s32.totalorder %s88, %s90
    %p97 = scmp.eq.s32.totalorder %s38, 3
    %p98 = por %p96, %p97
    %p99 = scmp.ne.s32.totalorder %s90, %s91
    %p100 = scmp.eq.s32.totalorder %s38, 0
    %p101 = por %p99, %p100
    %p102 = scmp.ne.s32.totalorder %s90, %s91
    %p103 = scmp.eq.s32.totalorder %s39, 3
    %p104 = por %p102, %p103
    %p106 = scmp.ne.s32.totalorder %s91, %s105
    %p107 = scmp.eq.s32.totalorder %s39, 0
    %p108 = por %p106, %p107
    %s110 = sadd.s32 %s109, 1
    %p113 = scmp.eq.s32.totalorder %s33, 3
    %p114 = scmp.ne.s32.totalorder %s109, %s111
    %p115 = scmp.eq.s32.totalorder %s33, 0
    %p116 = por %p114, %p115
    %p117 = scmp.ne.s32.totalorder %s109, %s111
    %p118 = scmp.eq.s32.totalorder %s38, 3
    %p119 = por %p117, %p118
    %p120 = scmp.ne.s32.totalorder %s111, %s112
    %p121 = scmp.eq.s32.totalorder %s38, 0
    %p122 = por %p120, %p121
    %p123 = scmp.ne.s32.totalorder %s111, %s112
    %p124 = scmp.eq.s32.totalorder %s39, 3
    %p125 = por %p123, %p124
    %p127 = scmp.ne.s32.totalorder %s112, %s126
    %p128 = scmp.eq.s32.totalorder %s39, 0
    %p129 = por %p127, %p128
    %s131 = sadd.s32 %s130, 1
    %p134 = scmp.eq.s32.totalorder %s33, 3
    %p135 = scmp.ne.s32.totalorder %s130, %s132
    %p136 = scmp.eq.s32.totalorder %s33, 0
    %p137 = por %p135, %p136
    %p138 = scmp.ne.s32.totalorder %s130, %s132
    %p139 = scmp.eq.s32.totalorder %s38, 3
    %p140 = por %p138, %p139
    %p141 = scmp.ne.s32.totalorder %s132, %s133
    %p142 = scmp.eq.s32.totalorder %s38, 0
    %p143 = por %p141, %p142
    %p144 = scmp.ne.s32.totalorder %s132, %s133
    %p145 = scmp.eq.s32.totalorder %s39, 3
    %p146 = por %p144, %p145
    %p148 = scmp.ne.s32.totalorder %s133, %s147
    %p149 = scmp.eq.s32.totalorder %s39, 0
    %p150 = por %p148, %p149
    %s152 = sadd.s32 %s151, 1
    %p155 = scmp.eq.s32.totalorder %s33, 3
    %p156 = scmp.ne.s32.totalorder %s151, %s153
    %p157 = scmp.eq.s32.totalorder %s33, 0
    %p158 = por %p156, %p157
    %p159 = scmp.ne.s32.totalorder %s151, %s153
    %p160 = scmp.eq.s32.totalorder %s38, 3
    %p161 = por %p159, %p160
    %p162 = scmp.ne.s32.totalorder %s153, %s154
    %p163 = scmp.eq.s32.totalorder %s38, 0
    %p164 = por %p162, %p163
    %p165 = scmp.ne.s32.totalorder %s153, %s154
    %p166 = scmp.eq.s32.totalorder %s39, 3
    %p167 = por %p165, %p166
    %p169 = scmp.ne.s32.totalorder %s154, %s168
    %p170 = scmp.eq.s32.totalorder %s39, 0
    %p171 = por %p169, %p170
    %s173 = sadd.s32 %s172, 1
    %p176 = scmp.eq.s32.totalorder %s33, 3
    %p177 = scmp.ne.s32.totalorder %s172, %s174
    %p178 = scmp.eq.s32.totalorder %s33, 0
    %p179 = por %p177, %p178
    %p180 = scmp.ne.s32.totalorder %s172, %s174
    %p181 = scmp.eq.s32.totalorder %s38, 3
    %p182 = por %p180, %p181
    %p183 = scmp.ne.s32.totalorder %s174, %s175
    %p184 = scmp.eq.s32.totalorder %s38, 0
    %p185 = por %p183, %p184
    %p186 = scmp.ne.s32.totalorder %s174, %s175
    %p187 = scmp.eq.s32.totalorder %s39, 3
    %p188 = por %p186, %p187
    %p190 = scmp.ne.s32.totalorder %s175, %s189
    %p191 = scmp.eq.s32.totalorder %s39, 0
    %p192 = por %p190, %p191
    %s194 = sadd.s32 %s193, 1
    %p197 = scmp.eq.s32.totalorder %s33, 3
    %p198 = scmp.ne.s32.totalorder %s193, %s195
    %p199 = scmp.eq.s32.totalorder %s33, 0
    %p200 = por %p198, %p199
    %p201 = scmp.ne.s32.totalorder %s193, %s195
    %p202 = scmp.eq.s32.totalorder %s38, 3
    %p203 = por %p201, %p202
    %p204 = scmp.ne.s32.totalorder %s195, %s196
    %p205 = scmp.eq.s32.totalorder %s38, 0
    %p206 = por %p204, %p205
    %p207 = scmp.ne.s32.totalorder %s195, %s196
    %p208 = scmp.eq.s32.totalorder %s39, 3
    %p209 = por %p207, %p208
    %p211 = scmp.ne.s32.totalorder %s196, %s210
    %p212 = scmp.eq.s32.totalorder %s39, 0
    %p213 = por %p211, %p212
    %s215 = sadd.s32 %s214, 1
    %p218 = scmp.eq.s32.totalorder %s33, 3
    %p219 = scmp.ne.s32.totalorder %s214, %s216
    %p220 = scmp.eq.s32.totalorder %s33, 0
    %p221 = por %p219, %p220
    %p222 = scmp.ne.s32.totalorder %s214, %s216
    %p223 = scmp.eq.s32.totalorder %s38, 3
    %p224 = por %p222, %p223
    %p225 = scmp.ne.s32.totalorder %s216, %s217
    %p226 = scmp.eq.s32.totalorder %s38, 0
    %p227 = por %p225, %p226
    %p228 = scmp.ne.s32.totalorder %s216, %s217
    %p229 = scmp.eq.s32.totalorder %s39, 3
    %p230 = por %p228, %p229
    %p232 = scmp.ne.s32.totalorder %s217, %s231
    %p233 = scmp.eq.s32.totalorder %s39, 0
    %p234 = por %p232, %p233
    %s236 = sadd.s32 %s235, 1
    %p239 = scmp.eq.s32.totalorder %s33, 3
    %p240 = scmp.ne.s32.totalorder %s235, %s237
    %p241 = scmp.eq.s32.totalorder %s33, 0
    %p242 = por %p240, %p241
    %p243 = scmp.ne.s32.totalorder %s235, %s237
    %p244 = scmp.eq.s32.totalorder %s38, 3
    %p245 = por %p243, %p244
    %p246 = scmp.ne.s32.totalorder %s237, %s238
    %p247 = scmp.eq.s32.totalorder %s38, 0
    %p248 = por %p246, %p247
    %p249 = scmp.ne.s32.totalorder %s237, %s238
    %p250 = scmp.eq.s32.totalorder %s39, 3
    %p251 = por %p249, %p250
    %p253 = scmp.ne.s32.totalorder %s238, %s252
    %p254 = scmp.eq.s32.totalorder %s39, 0
    %p255 = por %p253, %p254
    %s257 = sadd.s32 %s256, 1
    %p260 = scmp.eq.s32.totalorder %s33, 3
    %p261 = scmp.ne.s32.totalorder %s256, %s258
    %p262 = scmp.eq.s32.totalorder %s33, 0
    %p263 = por %p261, %p262
    %p264 = scmp.ne.s32.totalorder %s256, %s258
    %p265 = scmp.eq.s32.totalorder %s38, 3
    %p266 = por %p264, %p265
    %p267 = scmp.ne.s32.totalorder %s258, %s259
    %p268 = scmp.eq.s32.totalorder %s38, 0
    %p269 = por %p267, %p268
    %p270 = scmp.ne.s32.totalorder %s258, %s259
    %p271 = scmp.eq.s32.totalorder %s39, 3
    %p272 = por %p270, %p271
    %p274 = scmp.ne.s32.totalorder %s259, %s273
    %p275 = scmp.eq.s32.totalorder %s39, 0
    %p276 = por %p274, %p275
    %s278 = sadd.s32 %s277, 1
    %p281 = scmp.eq.s32.totalorder %s33, 3
    %p282 = scmp.ne.s32.totalorder %s277, %s279
    %p283 = scmp.eq.s32.totalorder %s33, 0
    %p284 = por %p282, %p283
    %p285 = scmp.ne.s32.totalorder %s277, %s279
    %p286 = scmp.eq.s32.totalorder %s38, 3
    %p287 = por %p285, %p286
    %p288 = scmp.ne.s32.totalorder %s279, %s280
    %p289 = scmp.eq.s32.totalorder %s38, 0
    %p290 = por %p288, %p289
    %p291 = scmp.ne.s32.totalorder %s279, %s280
    %p292 = scmp.eq.s32.totalorder %s39, 3
    %p293 = por %p291, %p292
    %p295 = scmp.ne.s32.totalorder %s280, %s294
    %p296 = scmp.eq.s32.totalorder %s39, 0
    %p297 = por %p295, %p296
    %s299 = sadd.s32 %s298, 1
    %p302 = scmp.eq.s32.totalorder %s33, 3
    %p303 = scmp.ne.s32.totalorder %s298, %s300
    %p304 = scmp.eq.s32.totalorder %s33, 0
    %p305 = por %p303, %p304
    %p306 = scmp.ne.s32.totalorder %s298, %s300
    %p307 = scmp.eq.s32.totalorder %s38, 3
    %p308 = por %p306, %p307
    %p309 = scmp.ne.s32.totalorder %s300, %s301
    %p310 = scmp.eq.s32.totalorder %s38, 0
    %p311 = por %p309, %p310
    %p312 = scmp.ne.s32.totalorder %s300, %s301
    %p313 = scmp.eq.s32.totalorder %s39, 3
    %p314 = por %p312, %p313
    %p316 = scmp.ne.s32.totalorder %s301, %s315
    %p317 = scmp.eq.s32.totalorder %s39, 0
    %p318 = por %p316, %p317
    %s320 = sadd.s32 %s319, 1
    %p323 = scmp.eq.s32.totalorder %s33, 3
    %p324 = scmp.ne.s32.totalorder %s319, %s321
    %p325 = scmp.eq.s32.totalorder %s33, 0
    %p326 = por %p324, %p325
    %p327 = scmp.ne.s32.totalorder %s319, %s321
    %p328 = scmp.eq.s32.totalorder %s38, 3
    %p329 = por %p327, %p328
    %p330 = scmp.ne.s32.totalorder %s321, %s322
    %p331 = scmp.eq.s32.totalorder %s38, 0
    %p332 = por %p330, %p331
    %p333 = scmp.ne.s32.totalorder %s321, %s322
    %p334 = scmp.eq.s32.totalorder %s39, 3
    %p335 = por %p333, %p334
    %p337 = scmp.ne.s32.totalorder %s322, %s336
    %p338 = scmp.eq.s32.totalorder %s39, 0
    %p339 = por %p337, %p338
    %s341 = sadd.s32 %s340, 1
    %p344 = scmp.eq.s32.totalorder %s33, 3
    %p345 = scmp.ne.s32.totalorder %s340, %s342
    %p346 = scmp.eq.s32.totalorder %s33, 0
    %p347 = por %p345, %p346
    %p348 = scmp.ne.s32.totalorder %s340, %s342
    %p349 = scmp.eq.s32.totalorder %s38, 3
    %p350 = por %p348, %p349
    %p351 = scmp.ne.s32.totalorder %s342, %s343
    %p352 = scmp.eq.s32.totalorder %s38, 0
    %p353 = por %p351, %p352
    %p354 = scmp.ne.s32.totalorder %s342, %s343
    %p355 = scmp.eq.s32.totalorder %s39, 3
    %p356 = por %p354, %p355
    %p358 = scmp.ne.s32.totalorder %s343, %s357
    %p359 = scmp.eq.s32.totalorder %s39, 0
    %p360 = por %p358, %p359
    %s362 = sadd.s32 %s361, 1
    %p365 = scmp.eq.s32.totalorder %s33, 3
    %p366 = scmp.ne.s32.totalorder %s361, %s363
    %p367 = scmp.eq.s32.totalorder %s33, 0
    %p368 = por %p366, %p367
    %p369 = scmp.ne.s32.totalorder %s361, %s363
    %p370 = scmp.eq.s32.totalorder %s38, 3
    %p371 = por %p369, %p370
    %p372 = scmp.ne.s32.totalorder %s363, %s364
    %p373 = scmp.eq.s32.totalorder %s38, 0
    %p374 = por %p372, %p373
    %p375 = scmp.ne.s32.totalorder %s363, %s364
    %p376 = scmp.eq.s32.totalorder %s39, 3
    %p377 = por %p375, %p376
    %p379 = scmp.ne.s32.totalorder %s364, %s378
    %p380 = scmp.eq.s32.totalorder %s39, 0
    %p381 = por %p379, %p380
    %s383 = sadd.s32 %s382, 1
    %p386 = scmp.eq.s32.totalorder %s33, 3
    %p387 = scmp.ne.s32.totalorder %s382, %s384
    %p388 = scmp.eq.s32.totalorder %s33, 0
    %p389 = por %p387, %p388
    %p390 = scmp.ne.s32.totalorder %s382, %s384
    %p391 = scmp.eq.s32.totalorder %s38, 3
    %p392 = por %p390, %p391
    %p393 = scmp.ne.s32.totalorder %s384, %s385
    %p394 = scmp.eq.s32.totalorder %s38, 0
    %p395 = por %p393, %p394
    %p396 = scmp.ne.s32.totalorder %s384, %s385
    %p397 = scmp.eq.s32.totalorder %s39, 3
    %p398 = por %p396, %p397
    %p400 = scmp.ne.s32.totalorder %s385, %s399
    %p401 = scmp.eq.s32.totalorder %s39, 0
    %p402 = por %p400, %p401
    %s404 = sadd.s32 %s403, 1
    %p407 = scmp.eq.s32.totalorder %s33, 3
    %p408 = scmp.ne.s32.totalorder %s403, %s405
    %p409 = scmp.eq.s32.totalorder %s33, 0
    %p410 = por %p408, %p409
    %p411 = scmp.ne.s32.totalorder %s403, %s405
    %p412 = scmp.eq.s32.totalorder %s38, 3
    %p413 = por %p411, %p412
    %p414 = scmp.ne.s32.totalorder %s405, %s406
    %p415 = scmp.eq.s32.totalorder %s38, 0
    %p416 = por %p414, %p415
    %p417 = scmp.ne.s32.totalorder %s405, %s406
    %p418 = scmp.eq.s32.totalorder %s39, 3
    %p419 = por %p417, %p418
    %p421 = scmp.ne.s32.totalorder %s406, %s420
    %p422 = scmp.eq.s32.totalorder %s39, 0
    %p423 = por %p421, %p422
    %s425 = sadd.s32 %s424, 1
    %p428 = scmp.eq.s32.totalorder %s33, 3
    %p429 = scmp.ne.s32.totalorder %s424, %s426
    %p430 = scmp.eq.s32.totalorder %s33, 0
    %p431 = por %p429, %p430
    %p432 = scmp.ne.s32.totalorder %s424, %s426
    %p433 = scmp.eq.s32.totalorder %s38, 3
    %p434 = por %p432, %p433
    %p435 = scmp.ne.s32.totalorder %s426, %s427
    %p436 = scmp.eq.s32.totalorder %s38, 0
    %p437 = por %p435, %p436
    %p438 = scmp.ne.s32.totalorder %s426, %s427
    %p439 = scmp.eq.s32.totalorder %s39, 3
    %p440 = por %p438, %p439
    %p442 = scmp.ne.s32.totalorder %s427, %s441
    %p443 = scmp.eq.s32.totalorder %s39, 0
    %p444 = por %p442, %p443
    %s446 = sadd.s32 %s445, 1
    %p449 = scmp.eq.s32.totalorder %s33, 3
    %p450 = scmp.ne.s32.totalorder %s445, %s447
    %p451 = scmp.eq.s32.totalorder %s33, 0
    %p452 = por %p450, %p451
    %p453 = scmp.ne.s32.totalorder %s445, %s447
    %p454 = scmp.eq.s32.totalorder %s38, 3
    %p455 = por %p453, %p454
    %p456 = scmp.ne.s32.totalorder %s447, %s448
    %p457 = scmp.eq.s32.totalorder %s38, 0
    %p458 = por %p456, %p457
    %p459 = scmp.ne.s32.totalorder %s447, %s448
    %p460 = scmp.eq.s32.totalorder %s39, 3
    %p461 = por %p459, %p460
    %p463 = scmp.ne.s32.totalorder %s448, %s462
    %p464 = scmp.eq.s32.totalorder %s39, 0
    %p465 = por %p463, %p464
    %s467 = sadd.s32 %s466, 1
    %p470 = scmp.eq.s32.totalorder %s33, 3
    %p471 = scmp.ne.s32.totalorder %s466, %s468
    %p472 = scmp.eq.s32.totalorder %s33, 0
    %p473 = por %p471, %p472
    %p474 = scmp.ne.s32.totalorder %s466, %s468
    %p475 = scmp.eq.s32.totalorder %s38, 3
    %p476 = por %p474, %p475
    %p477 = scmp.ne.s32.totalorder %s468, %s469
    %p478 = scmp.eq.s32.totalorder %s38, 0
    %p479 = por %p477, %p478
    %p480 = scmp.ne.s32.totalorder %s468, %s469
    %p481 = scmp.eq.s32.totalorder %s39, 3
    %p482 = por %p480, %p481
    %p484 = scmp.ne.s32.totalorder %s469, %s483
    %p485 = scmp.eq.s32.totalorder %s39, 0
    %p486 = por %p484, %p485
    %s488 = sadd.s32 %s487, 1
    %p491 = scmp.eq.s32.totalorder %s33, 3
    %p492 = scmp.ne.s32.totalorder %s487, %s489
    %p493 = scmp.eq.s32.totalorder %s33, 0
    %p494 = por %p492, %p493
    %p495 = scmp.ne.s32.totalorder %s487, %s489
    %p496 = scmp.eq.s32.totalorder %s38, 3
    %p497 = por %p495, %p496
    %p498 = scmp.ne.s32.totalorder %s489, %s490
    %p499 = scmp.eq.s32.totalorder %s38, 0
    %p500 = por %p498, %p499
    %p501 = scmp.ne.s32.totalorder %s489, %s490
    %p502 = scmp.eq.s32.totalorder %s39, 3
    %p503 = por %p501, %p502
    %p505 = scmp.ne.s32.totalorder %s490, %s504
    %p506 = scmp.eq.s32.totalorder %s39, 0
    %p507 = por %p505, %p506
    %s509 = sadd.s32 %s508, 1
    %p512 = scmp.eq.s32.totalorder %s33, 3
    %p513 = scmp.ne.s32.totalorder %s508, %s510
    %p514 = scmp.eq.s32.totalorder %s33, 0
    %p515 = por %p513, %p514
    %p516 = scmp.ne.s32.totalorder %s508, %s510
    %p517 = scmp.eq.s32.totalorder %s38, 3
    %p518 = por %p516, %p517
    %p519 = scmp.ne.s32.totalorder %s510, %s511
    %p520 = scmp.eq.s32.totalorder %s38, 0
    %p521 = por %p519, %p520
    %p522 = scmp.ne.s32.totalorder %s510, %s511
    %p523 = scmp.eq.s32.totalorder %s39, 3
    %p524 = por %p522, %p523
    %p526 = scmp.ne.s32.totalorder %s511, %s525
    %p527 = scmp.eq.s32.totalorder %s39, 0
    %p528 = por %p526, %p527
    %s530 = sadd.s32 %s529, 1
    %p533 = scmp.eq.s32.totalorder %s33, 3
    %p534 = scmp.ne.s32.totalorder %s529, %s531
    %p535 = scmp.eq.s32.totalorder %s33, 0
    %p536 = por %p534, %p535
    %p537 = scmp.ne.s32.totalorder %s529, %s531
    %p538 = scmp.eq.s32.totalorder %s38, 3
    %p539 = por %p537, %p538
    %p540 = scmp.ne.s32.totalorder %s531, %s532
    %p541 = scmp.eq.s32.totalorder %s38, 0
    %p542 = por %p540, %p541
    %p543 = scmp.ne.s32.totalorder %s531, %s532
    %p544 = scmp.eq.s32.totalorder %s39, 3
    %p545 = por %p543, %p544
    %p547 = scmp.ne.s32.totalorder %s532, %s546
    %p548 = scmp.eq.s32.totalorder %s39, 0
    %p549 = por %p547, %p548
    %s551 = sadd.s32 %s550, 1
    %p554 = scmp.eq.s32.totalorder %s33, 3
    %p555 = scmp.ne.s32.totalorder %s550, %s552
    %p556 = scmp.eq.s32.totalorder %s33, 0
    %p557 = por %p555, %p556
    %p558 = scmp.ne.s32.totalorder %s550, %s552
    %p559 = scmp.eq.s32.totalorder %s38, 3
    %p560 = por %p558, %p559
    %p561 = scmp.ne.s32.totalorder %s552, %s553
    %p562 = scmp.eq.s32.totalorder %s38, 0
    %p563 = por %p561, %p562
    %p564 = scmp.ne.s32.totalorder %s552, %s553
    %p565 = scmp.eq.s32.totalorder %s39, 3
    %p566 = por %p564, %p565
    %p568 = scmp.ne.s32.totalorder %s553, %s567
    %p569 = scmp.eq.s32.totalorder %s39, 0
    %p570 = por %p568, %p569
    %s571 = ssub.s32 %s33, %s40
    %p572 = scmp.eq.s32.totalorder %s571, 0
    %s574 = sadd.s32 %s573, 1
    %s575 = scalar_select %p572, %s573, %s574
    %p578 = pneg %p572
    %p579 = scmp.eq.s32.totalorder %s33, 3
    %p580 = por %p578, %p579
    %p581 = scmp.ne.s32.totalorder %s573, %s576
    %p582 = scmp.eq.s32.totalorder %s33, 0
    %p583 = por %p581, %p582
    %p584 = scmp.ne.s32.totalorder %s573, %s576
    %p585 = scmp.eq.s32.totalorder %s38, 3
    %p586 = por %p584, %p585
    %p587 = scmp.ne.s32.totalorder %s576, %s577
    %p588 = scmp.eq.s32.totalorder %s38, 0
    %p589 = por %p587, %p588
    %p590 = scmp.ne.s32.totalorder %s576, %s577
    %p591 = scmp.eq.s32.totalorder %s39, 3
    %p592 = por %p590, %p591
    %p594 = scmp.ne.s32.totalorder %s577, %s593
    %p595 = scmp.eq.s32.totalorder %s39, 0
    %p596 = por %p594, %p595
    %s597 = ssub.s32 %s33, %s40
    %p598 = scmp.eq.s32.totalorder %s597, 0
    %s600 = sadd.s32 %s599, 1
    %s601 = scalar_select %p598, %s599, %s600
    %p604 = pneg %p598
    %p605 = scmp.eq.s32.totalorder %s33, 3
    %p606 = por %p604, %p605
    %p607 = scmp.ne.s32.totalorder %s599, %s602
    %p608 = scmp.eq.s32.totalorder %s33, 0
    %p609 = por %p607, %p608
    %p610 = scmp.ne.s32.totalorder %s599, %s602
    %p611 = scmp.eq.s32.totalorder %s38, 3
    %p612 = por %p610, %p611
    %p613 = scmp.ne.s32.totalorder %s602, %s603
    %p614 = scmp.eq.s32.totalorder %s38, 0
    %p615 = por %p613, %p614
    %p616 = scmp.ne.s32.totalorder %s602, %s603
    %p617 = scmp.eq.s32.totalorder %s39, 3
    %p618 = por %p616, %p617
    %p620 = scmp.ne.s32.totalorder %s603, %s619
    %p621 = scmp.eq.s32.totalorder %s39, 0
    %p622 = por %p620, %p621
    %p623 = scmp.le.s32.totalorder 1, %s33
    %p624 = scmp.lt.s32.totalorder %s33, 5
    %p625 = pnand %p623, %p624
    %p626 = pneg %p625
    // Predicated region
    $region9: #{st_block_1_forward.1} parent=5 // pred_check
      _
    $region10: #{st_block_1_forward.1} parent=5 // pred_check_branch
      %628 = sbr.rel (%p625) target = $region12
    $region11: #{st_block_1_forward.1} parent=5 // pred_region
      %s629 = ssub.s32 %s33, 1
      // Predicated region
      $region13: #{st_block_1_forward.1} parent=11 // pred_check
        %p630 = pneg %p80
      $region14: #{st_block_1_forward.1} parent=11 // pred_check_branch
        %632 = sbr.rel (%p630) target = $region16
      $region15: #{st_block_1_forward.1} parent=11 // pred_region
        _
      $region16: #{st_block_1_forward.1} parent=11 // pred_fallthru
        _
      // Predicated region
      $region17: #{st_block_1_forward.1} parent=11 // pred_check
        %p633 = pneg %p101
      $region18: #{st_block_1_forward.1} parent=11 // pred_check_branch
        %635 = sbr.rel (%p633) target = $region20
      $region19: #{st_block_1_forward.1} parent=11 // pred_region
        _
      $region20: #{st_block_1_forward.1} parent=11 // pred_fallthru
        _
      // Predicated region
      $region21: #{st_block_1_forward.1} parent=11 // pred_check
        %p636 = pneg %p122
      $region22: #{st_block_1_forward.1} parent=11 // pred_check_branch
        %638 = sbr.rel (%p636) target = $region24
      $region23: #{st_block_1_forward.1} parent=11 // pred_region
        _
      $region24: #{st_block_1_forward.1} parent=11 // pred_fallthru
        _
      // Predicated region
      $region25: #{st_block_1_forward.1} parent=11 // pred_check
        %p639 = pneg %p143
      $region26: #{st_block_1_forward.1} parent=11 // pred_check_branch
        %641 = sbr.rel (%p639) target = $region28
      $region27: #{st_block_1_forward.1} parent=11 // pred_region
        _
      $region28: #{st_block_1_forward.1} parent=11 // pred_fallthru
        _
      // Predicated region
      $region29: #{st_block_1_forward.1} parent=11 // pred_check
        %p642 = pneg %p164
      $region30: #{st_block_1_forward.1} parent=11 // pred_check_branch
        %644 = sbr.rel (%p642) target = $region32
      $region31: #{st_block_1_forward.1} parent=11 // pred_region
        _
      $region32: #{st_block_1_forward.1} parent=11 // pred_fallthru
        _
      // Predicated region
      $region33: #{st_block_1_forward.1} parent=11 // pred_check
        %p645 = pneg %p185
      $region34: #{st_block_1_forward.1} parent=11 // pred_check_branch
        %647 = sbr.rel (%p645) target = $region36
      $region35: #{st_block_1_forward.1} parent=11 // pred_region
        _
      $region36: #{st_block_1_forward.1} parent=11 // pred_fallthru
        _
      // Predicated region
      $region37: #{st_block_1_forward.1} parent=11 // pred_check
        %p648 = pneg %p206
      $region38: #{st_block_1_forward.1} parent=11 // pred_check_branch
        %650 = sbr.rel (%p648) target = $region40
      $region39: #{st_block_1_forward.1} parent=11 // pred_region
        _
      $region40: #{st_block_1_forward.1} parent=11 // pred_fallthru
        _
      // Predicated region
      $region41: #{st_block_1_forward.1} parent=11 // pred_check
        %p651 = pneg %p227
      $region42: #{st_block_1_forward.1} parent=11 // pred_check_branch
        %653 = sbr.rel (%p651) target = $region44
      $region43: #{st_block_1_forward.1} parent=11 // pred_region
        _
      $region44: #{st_block_1_forward.1} parent=11 // pred_fallthru
        _
      // Predicated region
      $region45: #{st_block_1_forward.1} parent=11 // pred_check
        %p654 = pneg %p248
      $region46: #{st_block_1_forward.1} parent=11 // pred_check_branch
        %656 = sbr.rel (%p654) target = $region48
      $region47: #{st_block_1_forward.1} parent=11 // pred_region
        _
      $region48: #{st_block_1_forward.1} parent=11 // pred_fallthru
        _
      // Predicated region
      $region49: #{st_block_1_forward.1} parent=11 // pred_check
        %p657 = pneg %p269
      $region50: #{st_block_1_forward.1} parent=11 // pred_check_branch
        %659 = sbr.rel (%p657) target = $region52
      $region51: #{st_block_1_forward.1} parent=11 // pred_region
        _
      $region52: #{st_block_1_forward.1} parent=11 // pred_fallthru
        _
      // Predicated region
      $region53: #{st_block_1_forward.1} parent=11 // pred_check
        %p660 = pneg %p290
      $region54: #{st_block_1_forward.1} parent=11 // pred_check_branch
        %662 = sbr.rel (%p660) target = $region56
      $region55: #{st_block_1_forward.1} parent=11 // pred_region
        _
      $region56: #{st_block_1_forward.1} parent=11 // pred_fallthru
        _
      // Predicated region
      $region57: #{st_block_1_forward.1} parent=11 // pred_check
        %p663 = pneg %p311
      $region58: #{st_block_1_forward.1} parent=11 // pred_check_branch
        %665 = sbr.rel (%p663) target = $region60
      $region59: #{st_block_1_forward.1} parent=11 // pred_region
        _
      $region60: #{st_block_1_forward.1} parent=11 // pred_fallthru
        _
      // Predicated region
      $region61: #{st_block_1_forward.1} parent=11 // pred_check
        %p666 = pneg %p332
      $region62: #{st_block_1_forward.1} parent=11 // pred_check_branch
        %668 = sbr.rel (%p666) target = $region64
      $region63: #{st_block_1_forward.1} parent=11 // pred_region
        _
      $region64: #{st_block_1_forward.1} parent=11 // pred_fallthru
        _
      // Predicated region
      $region65: #{st_block_1_forward.1} parent=11 // pred_check
        %p669 = pneg %p353
      $region66: #{st_block_1_forward.1} parent=11 // pred_check_branch
        %671 = sbr.rel (%p669) target = $region68
      $region67: #{st_block_1_forward.1} parent=11 // pred_region
        _
      $region68: #{st_block_1_forward.1} parent=11 // pred_fallthru
        _
      // Predicated region
      $region69: #{st_block_1_forward.1} parent=11 // pred_check
        %p672 = pneg %p374
      $region70: #{st_block_1_forward.1} parent=11 // pred_check_branch
        %674 = sbr.rel (%p672) target = $region72
      $region71: #{st_block_1_forward.1} parent=11 // pred_region
        _
      $region72: #{st_block_1_forward.1} parent=11 // pred_fallthru
        _
      // Predicated region
      $region73: #{st_block_1_forward.1} parent=11 // pred_check
        %p675 = pneg %p395
      $region74: #{st_block_1_forward.1} parent=11 // pred_check_branch
        %677 = sbr.rel (%p675) target = $region76
      $region75: #{st_block_1_forward.1} parent=11 // pred_region
        _
      $region76: #{st_block_1_forward.1} parent=11 // pred_fallthru
        _
      // Predicated region
      $region77: #{st_block_1_forward.1} parent=11 // pred_check
        %p678 = pneg %p416
      $region78: #{st_block_1_forward.1} parent=11 // pred_check_branch
        %680 = sbr.rel (%p678) target = $region80
      $region79: #{st_block_1_forward.1} parent=11 // pred_region
        _
      $region80: #{st_block_1_forward.1} parent=11 // pred_fallthru
        _
      // Predicated region
      $region81: #{st_block_1_forward.1} parent=11 // pred_check
        %p681 = pneg %p437
      $region82: #{st_block_1_forward.1} parent=11 // pred_check_branch
        %683 = sbr.rel (%p681) target = $region84
      $region83: #{st_block_1_forward.1} parent=11 // pred_region
        _
      $region84: #{st_block_1_forward.1} parent=11 // pred_fallthru
        _
      // Predicated region
      $region85: #{st_block_1_forward.1} parent=11 // pred_check
        %p684 = pneg %p458
      $region86: #{st_block_1_forward.1} parent=11 // pred_check_branch
        %686 = sbr.rel (%p684) target = $region88
      $region87: #{st_block_1_forward.1} parent=11 // pred_region
        _
      $region88: #{st_block_1_forward.1} parent=11 // pred_fallthru
        _
      // Predicated region
      $region89: #{st_block_1_forward.1} parent=11 // pred_check
        %p687 = pneg %p479
      $region90: #{st_block_1_forward.1} parent=11 // pred_check_branch
        %689 = sbr.rel (%p687) target = $region92
      $region91: #{st_block_1_forward.1} parent=11 // pred_region
        _
      $region92: #{st_block_1_forward.1} parent=11 // pred_fallthru
        _
      // Predicated region
      $region93: #{st_block_1_forward.1} parent=11 // pred_check
        %p690 = pneg %p500
      $region94: #{st_block_1_forward.1} parent=11 // pred_check_branch
        %692 = sbr.rel (%p690) target = $region96
      $region95: #{st_block_1_forward.1} parent=11 // pred_region
        _
      $region96: #{st_block_1_forward.1} parent=11 // pred_fallthru
        _
      // Predicated region
      $region97: #{st_block_1_forward.1} parent=11 // pred_check
        %p693 = pneg %p521
      $region98: #{st_block_1_forward.1} parent=11 // pred_check_branch
        %695 = sbr.rel (%p693) target = $region100
      $region99: #{st_block_1_forward.1} parent=11 // pred_region
        _
      $region100: #{st_block_1_forward.1} parent=11 // pred_fallthru
        _
      // Predicated region
      $region101: #{st_block_1_forward.1} parent=11 // pred_check
        %p696 = pneg %p542
      $region102: #{st_block_1_forward.1} parent=11 // pred_check_branch
        %698 = sbr.rel (%p696) target = $region104
      $region103: #{st_block_1_forward.1} parent=11 // pred_region
        _
      $region104: #{st_block_1_forward.1} parent=11 // pred_fallthru
        _
      // Predicated region
      $region105: #{st_block_1_forward.1} parent=11 // pred_check
        %p699 = pneg %p563
      $region106: #{st_block_1_forward.1} parent=11 // pred_check_branch
        %701 = sbr.rel (%p699) target = $region108
      $region107: #{st_block_1_forward.1} parent=11 // pred_region
        _
      $region108: #{st_block_1_forward.1} parent=11 // pred_fallthru
        _
    $region12: #{st_block_1_forward.1} parent=5 // pred_fallthru
      _
    %p702 = scmp.lt.s32.totalorder %s33, 4
    // Predicated region
    $region109: #{st_block_1_forward.1} parent=5 // pred_check
      %p703 = pneg %p702
    $region110: #{st_block_1_forward.1} parent=5 // pred_check_branch
      %705 = sbr.rel (%p703) target = $region112
    $region111: #{st_block_1_forward.1} parent=5 // pred_region
      // Predicated region
      $region113: #{st_block_1_forward.1} parent=111 // pred_check
        %p706 = pneg %p53
      $region114: #{st_block_1_forward.1} parent=111 // pred_check_branch
        %708 = sbr.rel (%p706) target = $region116
      $region115: #{st_block_1_forward.1} parent=111 // pred_region
        %s709 = smul.u32 6, %s33
        %p710 = scmp.lt.s32.totalorder %s709, 23
        %s711 = scalar_select %p710, %s709, 23
        %s712 = smul.addr %s711, 8
        %s713 = scalar_lea.vmem %s0, %s712
        %s714 = smul.u32 6, %s33
      $region116: #{st_block_1_forward.1} parent=111 // pred_fallthru
        _
    $region112: #{st_block_1_forward.1} parent=5 // pred_fallthru
      _
    %p715 = scmp.le.s32.totalorder 1, %s33
    %p716 = scmp.lt.s32.totalorder %s33, 5
    %p717 = pnand %p715, %p716
    %p718 = pneg %p717
    // Predicated region
    $region117: #{st_block_1_forward.1} parent=5 // pred_check
      _
    $region118: #{st_block_1_forward.1} parent=5 // pred_check_branch
      %720 = sbr.rel (%p717) target = $region120
    $region119: #{st_block_1_forward.1} parent=5 // pred_region
      %s721 = ssub.s32 %s33, 1
      %s722 = smul.u32 6, %s38
      %p723 = scmp.lt.s32.totalorder %s722, 23
      %s724 = scalar_select %p723, %s722, 23
      %s725 = smul.addr %s724, 8
      %s726 = scalar_lea.vmem %s0, %s725
      %p727 = pneg %p59
      %p728 = pneg %p56
      %p729 = pneg %p80
      %p730 = pneg %p77
      %p731 = pneg %p101
      %p732 = pneg %p98
      %p733 = pneg %p122
      %p734 = pneg %p119
      %p735 = pneg %p143
      %p736 = pneg %p140
      %p737 = pneg %p164
      %p738 = pneg %p161
      %p739 = pneg %p185
      %p740 = pneg %p182
      %p741 = pneg %p206
      %p742 = pneg %p203
      %p743 = pneg %p227
      %p744 = pneg %p224
      %p745 = pneg %p248
      %p746 = pneg %p245
      %p747 = pneg %p269
      %p748 = pneg %p266
      %p749 = pneg %p290
      %p750 = pneg %p287
      %p751 = pneg %p311
      %p752 = pneg %p308
      %p753 = pneg %p332
      %p754 = pneg %p329
      %p755 = pneg %p353
      %p756 = pneg %p350
      %p757 = pneg %p374
      %p758 = pneg %p371
      %p759 = pneg %p395
      %p760 = pneg %p392
      %p761 = pneg %p416
      %p762 = pneg %p413
      %p763 = pneg %p437
      %p764 = pneg %p434
      %p765 = pneg %p458
      %p766 = pneg %p455
      %p767 = pneg %p479
      %p768 = pneg %p476
      %p769 = pneg %p500
      %p770 = pneg %p497
      %p771 = pneg %p521
      %p772 = pneg %p518
      %p773 = pneg %p542
      %p774 = pneg %p539
      %p775 = pneg %p563
      %p776 = pneg %p560
      %p777 = pneg %p589
      %p778 = pneg %p586
      %s779 = smul.u32 6, %s38
      %p780 = scmp.lt.s32.totalorder %s779, 23
      %s781 = scalar_select %p780, %s779, 23
      %s782 = smul.addr %s781, 8
      %s783 = scalar_lea.vmem %s25, %s782
      %p784 = pneg %p615
      %p785 = pneg %p612
      %s786 = smul.u32 6, %s38
      %p787 = scmp.lt.s32.totalorder %s786, 23
      %s788 = scalar_select %p787, %s786, 23
      %s789 = smul.addr %s788, 8
      %s790 = scalar_lea.vmem %s26, %s789
      %s791 = smul.u32 6, %s38
      %p792 = scmp.lt.s32.totalorder %s791, 23
      %s793 = scalar_select %p792, %s791, 23
      %s794 = smul.addr %s793, 8
      %s795 = scalar_lea.vmem %s0, %s794
      %s796 = smul.u32 6, %s38
      %s797 = smul.u32 6, %s38
      %p798 = scmp.lt.s32.totalorder %s797, 23
      %s799 = scalar_select %p798, %s797, 23
      %s800 = smul.addr %s799, 8
      %s801 = scalar_lea.vmem %s25, %s800
      %s802 = smul.u32 6, %s38
      %s803 = smul.u32 6, %s38
      %p804 = scmp.lt.s32.totalorder %s803, 23
      %s805 = scalar_select %p804, %s803, 23
      %s806 = smul.addr %s805, 8
      %s807 = scalar_lea.vmem %s26, %s806
      %s808 = smul.u32 6, %s38
      %v809 = vld [vmem:[%s795] sm:$0xff]
      %v810 = vld [vmem:[%s795 + $0x8] sm:$0xff]
      %v811 = vld [vmem:[%s795 + $0x10] sm:$0xff]
      %v812 = vld [vmem:[%s795 + $0x18] sm:$0xff]
      %v813 = vld [vmem:[%s795 + $0x20] sm:$0xff]
      %v814 = vld [vmem:[%s795 + $0x28] sm:$0xff]
      %v815 = vld [vmem:[%s1] sm:$0xff]
      %v816 = vld [vmem:[%s1 + $0x8] sm:$0xff]
      %v817 = vld [vmem:[%s1 + $0x10] sm:$0xff]
      %v818 = vld [vmem:[%s1 + $0x18] sm:$0xff]
      %v819 = vld [vmem:[%s1 + $0x20] sm:$0xff]
      %v820 = vld [vmem:[%s1 + $0x28] sm:$0xff]
      %v821 = vld [vmem:[%s2] sm:$0xff]
      %v822 = vld [vmem:[%s2 + $0x8] sm:$0xff]
      %v823 = vld [vmem:[%s2 + $0x10] sm:$0xff]
      %v824 = vld [vmem:[%s2 + $0x18] sm:$0xff]
      %v825 = vld [vmem:[%s2 + $0x20] sm:$0xff]
      %v826 = vld [vmem:[%s2 + $0x28] sm:$0xff]
      %v827 = vld [vmem:[%s3] sm:$0xff]
      %v828 = vld [vmem:[%s3 + $0x8] sm:$0xff]
      %v829 = vld [vmem:[%s3 + $0x10] sm:$0xff]
      %v830 = vld [vmem:[%s3 + $0x18] sm:$0xff]
      %v831 = vld [vmem:[%s3 + $0x20] sm:$0xff]
      %v832 = vld [vmem:[%s3 + $0x28] sm:$0xff]
      %v833 = vld [vmem:[%s3 + $0x30] sm:$0xff]
      %v834 = vld [vmem:[%s3 + $0x38] sm:$0xff]
      %v835 = vld [vmem:[%s4] sm:$0x1]
      %v837 = vlaneseq
      %v838 = vshrl.u32 %v837, 7
      %v839 = vsub.s32 0, %v838
      %v840 = vrot.slane %v835, %v839
      %vm842 = vcmask 523264
      %v844 = vsel %vm842, %v809, 0
      %v847 = vsel %vm842, %v810, 0
      %v850 = vsel %vm842, %v811, 0
      %v853 = vsel %vm842, %v812, 0
      %v856 = vsel %vm842, %v813, 0
      %v859 = vsel %vm842, %v814, 0
      %861 = vmatprep.subr.mxu0 0.0
      %862 = vmatpush1.msra.mxu0 %v827
      %863 = vmatprep.subr.mxu0 0.0
      %864 = vmatpush1.msra.mxu0 %v828
      %865 = vmatprep.subr.mxu0 0.0
      %866 = vmatpush1.msra.mxu0 %v829
      %867 = vmatprep.subr.mxu0 0.0
      %868 = vmatpush1.msra.mxu0 %v830
      %869 = vmatprep.subr.mxu0 0.0
      %870 = vmatpush1.msra.mxu0 %v831
      %871 = vmatprep.subr.mxu0 0.0
      %872 = vmatpush1.msra.mxu0 %v832
      %873 = vmatprep.subr.mxu0 0.0
      %874 = vmatpush1.msra.mxu0 %v833
      %875 = vmatprep.subr.mxu0 0.0
      %876 = vmatpush1.msra.mxu0 %v834
      %877 = vmatprep.subr.mxu0 0.0
      %878 = vmatpush1.msra.mxu0 0.0
      %879 = vmatprep.subr.mxu0 0.0
      %880 = vmatpush1.msra.mxu0 0.0
      %881 = vmatprep.subr.mxu0 0.0
      %882 = vmatpush1.msra.mxu0 0.0
      %883 = vmatprep.subr.mxu0 0.0
      %884 = vmatpush1.msra.mxu0 0.0
      %885 = vmatprep.subr.mxu0 0.0
      %886 = vmatpush1.msra.mxu0 0.0
      %887 = vmatprep.subr.mxu0 0.0
      %888 = vmatpush1.msra.mxu0 0.0
      %889 = vmatprep.subr.mxu0 0.0
      %890 = vmatpush1.msra.mxu0 0.0
      %891 = vmatprep.subr.mxu0 0.0
      %892 = vmatpush1.msra.mxu0 0.0
      %893 = vmatprep.subr.mxu0 0.0
      %894 = vmatpush1.msra.mxu0 0.0
      %895 = vmatprep.subr.mxu0 0.0
      %896 = vmatpush1.msra.mxu0 0.0
      %897 = vmatprep.subr.mxu0 0.0
      %898 = vmatpush1.msra.mxu0 0.0
      %899 = vmatprep.subr.mxu0 0.0
      %900 = vmatpush1.msra.mxu0 0.0
      %901 = vmatprep.subr.mxu0 0.0
      %902 = vmatpush1.msra.mxu0 0.0
      %903 = vmatprep.subr.mxu0 0.0
      %904 = vmatpush1.msra.mxu0 0.0
      %905 = vmatprep.subr.mxu0 0.0
      %906 = vmatpush1.msra.mxu0 0.0
      %907 = vmatprep.subr.mxu0 0.0
      %908 = vmatpush1.msra.mxu0 0.0
      %909 = vmatprep.subr.mxu0 0.0
      %910 = vmatpush1.msra.mxu0 0.0
      %911 = vmatprep.subr.mxu0 0.0
      %912 = vmatpush1.msra.mxu0 0.0
      %913 = vmatprep.subr.mxu0 0.0
      %914 = vmatpush1.msra.mxu0 0.0
      %915 = vmatprep.subr.mxu0 0.0
      %916 = vmatpush1.msra.mxu0 0.0
      %917 = vmatprep.subr.mxu0 0.0
      %918 = vmatpush1.msra.mxu0 0.0
      %919 = vmatprep.subr.mxu0 0.0
      %920 = vmatpush1.msra.mxu0 0.0
      %921 = vmatprep.subr.mxu0 0.0
      %922 = vmatpush1.msra.mxu0 0.0
      %923 = vmatprep.subr.mxu0 0.0
      %924 = vmatpush1.msra.mxu0 0.0
      %925 = vmatprep.mubr.f32.mxu0 0.0
      %926 = vmatmul.mubr.f32.gmra.mrb[0].mxu0 %v844
      %v927 = vpop.f32.mrb[0].mxu0
      %v928 = vadd.f32 %v840, %v927
      %v929 = vpop.f32.mrb[0].mxu0
      %930 = vmatprep.mubr.f32.mxu0 0.0
      %931 = vmatmul.mubr.f32.gmra.mrb[0].mxu0 %v847
      %v932 = vpop.f32.mrb[0].mxu0
      %v933 = vadd.f32 %v840, %v932
      %v934 = vpop.f32.mrb[0].mxu0
      %935 = vmatprep.mubr.f32.mxu0 0.0
      %936 = vmatmul.mubr.f32.gmra.mrb[0].mxu0 %v850
      %v937 = vpop.f32.mrb[0].mxu0
      %v938 = vadd.f32 %v840, %v937
      %v939 = vpop.f32.mrb[0].mxu0
      %940 = vmatprep.mubr.f32.mxu0 0.0
      %941 = vmatmul.mubr.f32.gmra.mrb[0].mxu0 %v853
      %v942 = vpop.f32.mrb[0].mxu0
      %v943 = vadd.f32 %v840, %v942
      %v944 = vpop.f32.mrb[0].mxu0
      %945 = vmatprep.mubr.f32.mxu0 0.0
      %946 = vmatmul.mubr.f32.gmra.mrb[0].mxu0 %v856
      %v947 = vpop.f32.mrb[0].mxu0
      %v948 = vadd.f32 %v840, %v947
      %v949 = vpop.f32.mrb[0].mxu0
      %950 = vmatprep.mubr.f32.mxu0 0.0
      %951 = vmatmul.mubr.f32.gmra.mrb[0].mxu0 %v859
      %v952 = vpop.f32.mrb[0].mxu0
      %v953 = vadd.f32 %v840, %v952
      %v954 = vpop.f32.mrb[0].mxu0
      %955 = vdwg.mxu0
      %v956 = vrot.slane %v809, 7
      %v957 = vrot.slane %v810, 7
      %v958 = vrot.slane %v811, 7
      %v959 = vrot.slane %v812, 7
      %v960 = vrot.slane %v813, 7
      %v961 = vrot.slane %v814, 7
      %v962 = vlaneseq
      %v963 = vshrl.u32 %v962, 7
      %vm964 = vcmp.lt.s32.totalorder %v963, 1
      %v965 = vsel %vm964, %v960, %v961
      %v966 = vsel %vm964, %v959, %v960
      %v967 = vsel %vm964, %v958, %v959
      %v968 = vsel %vm964, %v957, %v958
      %v969 = vsel %vm964, %v956, %v957
      %v970 = vsel %vm964, %v961, %v956
      %972 = vset.pattern.permute.xlu0 0
      %973 = vperm.xlu0 %972, %v815
      %v974 = vpop.permute.xlu0 %973
      %977 = vset.pattern.permute.xlu0 0
      %978 = vperm.xlu0 %977, %v816
      %v979 = vpop.permute.xlu0 %978
      %982 = vset.pattern.permute.xlu0 0
      %983 = vperm.xlu0 %982, %v817
      %v984 = vpop.permute.xlu0 %983
      %987 = vset.pattern.permute.xlu0 0
      %988 = vperm.xlu0 %987, %v818
      %v989 = vpop.permute.xlu0 %988
      %992 = vset.pattern.permute.xlu0 0
      %993 = vperm.xlu0 %992, %v819
      %v994 = vpop.permute.xlu0 %993
      %997 = vset.pattern.permute.xlu0 0
      %998 = vperm.xlu0 %997, %v820
      %v999 = vpop.permute.xlu0 %998
      %v1001 = vmul.f32 %v970, %v974
      %v1002 = vmul.f32 %v969, %v979
      %v1003 = vmul.f32 %v968, %v984
      %v1004 = vmul.f32 %v967, %v989
      %v1005 = vmul.f32 %v966, %v994
      %v1006 = vmul.f32 %v965, %v999
      %v1007 = vrot.slane %v809, 1
      %v1008 = vrot.slane %v810, 1
      %v1009 = vrot.slane %v811, 1
      %v1010 = vrot.slane %v812, 1
      %v1011 = vrot.slane %v813, 1
      %v1012 = vrot.slane %v814, 1
      %vm1013 = vcmp.lt.s32.totalorder %v963, 7
      %v1014 = vsel %vm1013, %v1011, %v1012
      %v1015 = vsel %vm1013, %v1010, %v1011
      %v1016 = vsel %vm1013, %v1009, %v1010
      %v1017 = vsel %vm1013, %v1008, %v1009
      %v1018 = vsel %vm1013, %v1007, %v1008
      %v1019 = vsel %vm1013, %v1012, %v1007
      %1021 = vset.pattern.permute.xlu0 0
      %1022 = vperm.xlu0 %1021, %v821
      %v1023 = vpop.permute.xlu0 %1022
      %1026 = vset.pattern.permute.xlu0 0
      %1027 = vperm.xlu0 %1026, %v822
      %v1028 = vpop.permute.xlu0 %1027
      %1031 = vset.pattern.permute.xlu0 0
      %1032 = vperm.xlu0 %1031, %v823
      %v1033 = vpop.permute.xlu0 %1032
      %1036 = vset.pattern.permute.xlu0 0
      %1037 = vperm.xlu0 %1036, %v824
      %v1038 = vpop.permute.xlu0 %1037
      %1041 = vset.pattern.permute.xlu0 0
      %1042 = vperm.xlu0 %1041, %v825
      %v1043 = vpop.permute.xlu0 %1042
      %1046 = vset.pattern.permute.xlu0 0
      %1047 = vperm.xlu0 %1046, %v826
      %v1048 = vpop.permute.xlu0 %1047
      %v1050 = vmul.f32 %v1018, %v1023
      %v1051 = vmul.f32 %v1017, %v1028
      %v1052 = vmul.f32 %v1016, %v1033
      %v1053 = vmul.f32 %v1015, %v1038
      %v1054 = vmul.f32 %v1014, %v1043
      %v1055 = vmul.f32 %v1019, %v1048
      %v1056 = vld [vmem:[%s5] sm:$0xff]
      %v1057 = vld [vmem:[%s5 + $0x8] sm:$0xff]
      %v1058 = vld [vmem:[%s5 + $0x10] sm:$0xff]
      %v1059 = vld [vmem:[%s5 + $0x18] sm:$0xff]
      %v1060 = vld [vmem:[%s5 + $0x20] sm:$0xff]
      %v1061 = vld [vmem:[%s5 + $0x28] sm:$0xff]
      %v1062 = vld [vmem:[%s5 + $0x30] sm:$0xff]
      %v1063 = vld [vmem:[%s5 + $0x38] sm:$0xff]
      %s1064 = scalar_lea.vmem %s5, 64
      %v1065 = vld [vmem:[%s1064] sm:$0xff]
      %v1066 = vld [vmem:[%s1064 + $0x8] sm:$0xff]
      %v1067 = vld [vmem:[%s1064 + $0x10] sm:$0xff]
      %v1068 = vld [vmem:[%s1064 + $0x18] sm:$0xff]
      %v1069 = vld [vmem:[%s1064 + $0x20] sm:$0xff]
      %v1070 = vld [vmem:[%s1064 + $0x28] sm:$0xff]
      %v1071 = vld [vmem:[%s1064 + $0x30] sm:$0xff]
      %v1072 = vld [vmem:[%s1064 + $0x38] sm:$0xff]
      %1073 = vmatprep.subr.mxu0 0.0
      %1074 = vmatpush1.msra.mxu0 %v1065
      %1075 = vmatprep.subr.mxu0 0.0
      %1076 = vmatpush1.msra.mxu0 %v1066
      %1077 = vmatprep.subr.mxu0 0.0
      %1078 = vmatpush1.msra.mxu0 %v1067
      %1079 = vmatprep.subr.mxu0 0.0
      %1080 = vmatpush1.msra.mxu0 %v1068
      %1081 = vmatprep.subr.mxu0 0.0
      %1082 = vmatpush1.msra.mxu0 %v1069
      %1083 = vmatprep.subr.mxu0 0.0
      %1084 = vmatpush1.msra.mxu0 %v1070
      %1085 = vmatprep.subr.mxu0 0.0
      %1086 = vmatpush1.msra.mxu0 %v1071
      %1087 = vmatprep.subr.mxu0 0.0
      %1088 = vmatpush1.msra.mxu0 %v1072
      %1089 = vmatprep.subr.mxu0 0.0
      %1090 = vmatpush1.msra.mxu0 0.0
      %1091 = vmatprep.subr.mxu0 0.0
      %1092 = vmatpush1.msra.mxu0 0.0
      %1093 = vmatprep.subr.mxu0 0.0
      %1094 = vmatpush1.msra.mxu0 0.0
      %1095 = vmatprep.subr.mxu0 0.0
      %1096 = vmatpush1.msra.mxu0 0.0
      %1097 = vmatprep.subr.mxu0 0.0
      %1098 = vmatpush1.msra.mxu0 0.0
      %1099 = vmatprep.subr.mxu0 0.0
      %1100 = vmatpush1.msra.mxu0 0.0
      %1101 = vmatprep.subr.mxu0 0.0
      %1102 = vmatpush1.msra.mxu0 0.0
      %1103 = vmatprep.subr.mxu0 0.0
      %1104 = vmatpush1.msra.mxu0 0.0
      %1105 = vmatprep.subr.mxu0 0.0
      %1106 = vmatpush1.msra.mxu0 0.0
      %1107 = vmatprep.subr.mxu0 0.0
      %1108 = vmatpush1.msra.mxu0 0.0
      %1109 = vmatprep.subr.mxu0 0.0
      %1110 = vmatpush1.msra.mxu0 0.0
      %1111 = vmatprep.subr.mxu0 0.0
      %1112 = vmatpush1.msra.mxu0 0.0
      %1113 = vmatprep.subr.mxu0 0.0
      %1114 = vmatpush1.msra.mxu0 0.0
      %1115 = vmatprep.subr.mxu0 0.0
      %1116 = vmatpush1.msra.mxu0 0.0
      %1117 = vmatprep.subr.mxu0 0.0
      %1118 = vmatpush1.msra.mxu0 0.0
      %1119 = vmatprep.subr.mxu0 0.0
      %1120 = vmatpush1.msra.mxu0 0.0
      %1121 = vmatprep.subr.mxu0 0.0
      %1122 = vmatpush1.msra.mxu0 0.0
      %1123 = vmatprep.subr.mxu0 0.0
      %1124 = vmatpush1.msra.mxu0 0.0
      %1125 = vmatprep.subr.mxu0 0.0
      %1126 = vmatpush1.msra.mxu0 0.0
      %1127 = vmatprep.subr.mxu0 0.0
      %1128 = vmatpush1.msra.mxu0 0.0
      %1129 = vmatprep.subr.mxu0 0.0
      %1130 = vmatpush1.msra.mxu0 0.0
      %1131 = vmatprep.subr.mxu0 0.0
      %1132 = vmatpush1.msra.mxu0 0.0
      %1133 = vmatprep.subr.mxu0 0.0
      %1134 = vmatpush1.msra.mxu0 0.0
      %1135 = vmatprep.subr.mxu0 0.0
      %1136 = vmatpush1.msra.mxu0 0.0
      %1137 = vmatprep.mubr.f32.mxu0 0.0
      %1138 = vmatmul.mubr.f32.gmra.mrb[0].mxu0 %v844
      %v1139 = vpop.f32.mrb[0].mxu0
      %v1140 = vadd.f32 0.0, %v1139
      %v1141 = vpop.f32.mrb[0].mxu0
      %1142 = vmatprep.mubr.f32.mxu0 0.0
      %1143 = vmatmul.mubr.f32.gmra.mrb[0].mxu0 %v847
      %v1144 = vpop.f32.mrb[0].mxu0
      %v1145 = vadd.f32 0.0, %v1144
      %v1146 = vpop.f32.mrb[0].mxu0
      %1147 = vmatprep.mubr.f32.mxu0 0.0
      %1148 = vmatmul.mubr.f32.gmra.mrb[0].mxu0 %v850
      %v1149 = vpop.f32.mrb[0].mxu0
      %v1150 = vadd.f32 0.0, %v1149
      %v1151 = vpop.f32.mrb[0].mxu0
      %1152 = vmatprep.mubr.f32.mxu0 0.0
      %1153 = vmatmul.mubr.f32.gmra.mrb[0].mxu0 %v853
      %v1154 = vpop.f32.mrb[0].mxu0
      %v1155 = vadd.f32 0.0, %v1154
      %v1156 = vpop.f32.mrb[0].mxu0
      %1157 = vmatprep.mubr.f32.mxu0 0.0
      %1158 = vmatmul.mubr.f32.gmra.mrb[0].mxu0 %v856
      %v1159 = vpop.f32.mrb[0].mxu0
      %v1160 = vadd.f32 0.0, %v1159
      %v1161 = vpop.f32.mrb[0].mxu0
      %1162 = vmatprep.mubr.f32.mxu0 0.0
      %1163 = vmatmul.mubr.f32.gmra.mrb[0].mxu0 %v859
      %v1164 = vpop.f32.mrb[0].mxu0
      %v1165 = vadd.f32 0.0, %v1164
      %v1166 = vpop.f32.mrb[0].mxu0
      %1167 = vdwg.mxu0
      %v1169 = vsel %vm842, %v1001, 0
      %v1172 = vsel %vm842, %v1002, 0
      %v1175 = vsel %vm842, %v1003, 0
      %v1178 = vsel %vm842, %v1004, 0
      %v1181 = vsel %vm842, %v1005, 0
      %v1184 = vsel %vm842, %v1006, 0
      %1186 = vmatprep.subr.mxu0 0.0
      %1187 = vmatpush1.msra.mxu0 %v1056
      %1188 = vmatprep.subr.mxu0 0.0
      %1189 = vmatpush1.msra.mxu0 %v1057
      %1190 = vmatprep.subr.mxu0 0.0
      %1191 = vmatpush1.msra.mxu0 %v1058
      %1192 = vmatprep.subr.mxu0 0.0
      %1193 = vmatpush1.msra.mxu0 %v1059
      %1194 = vmatprep.subr.mxu0 0.0
      %1195 = vmatpush1.msra.mxu0 %v1060
      %1196 = vmatprep.subr.mxu0 0.0
      %1197 = vmatpush1.msra.mxu0 %v1061
      %1198 = vmatprep.subr.mxu0 0.0
      %1199 = vmatpush1.msra.mxu0 %v1062
      %1200 = vmatprep.subr.mxu0 0.0
      %1201 = vmatpush1.msra.mxu0 %v1063
      %1202 = vmatprep.subr.mxu0 0.0
      %1203 = vmatpush1.msra.mxu0 0.0
      %1204 = vmatprep.subr.mxu0 0.0
      %1205 = vmatpush1.msra.mxu0 0.0
      %1206 = vmatprep.subr.mxu0 0.0
      %1207 = vmatpush1.msra.mxu0 0.0
      %1208 = vmatprep.subr.mxu0 0.0
      %1209 = vmatpush1.msra.mxu0 0.0
      %1210 = vmatprep.subr.mxu0 0.0
      %1211 = vmatpush1.msra.mxu0 0.0
      %1212 = vmatprep.subr.mxu0 0.0
      %1213 = vmatpush1.msra.mxu0 0.0
      %1214 = vmatprep.subr.mxu0 0.0
      %1215 = vmatpush1.msra.mxu0 0.0
      %1216 = vmatprep.subr.mxu0 0.0
      %1217 = vmatpush1.msra.mxu0 0.0
      %1218 = vmatprep.subr.mxu0 0.0
      %1219 = vmatpush1.msra.mxu0 0.0
      %1220 = vmatprep.subr.mxu0 0.0
      %1221 = vmatpush1.msra.mxu0 0.0
      %1222 = vmatprep.subr.mxu0 0.0
      %1223 = vmatpush1.msra.mxu0 0.0
      %1224 = vmatprep.subr.mxu0 0.0
      %1225 = vmatpush1.msra.mxu0 0.0
      %1226 = vmatprep.subr.mxu0 0.0
      %1227 = vmatpush1.msra.mxu0 0.0
      %1228 = vmatprep.subr.mxu0 0.0
      %1229 = vmatpush1.msra.mxu0 0.0
      %1230 = vmatprep.subr.mxu0 0.0
      %1231 = vmatpush1.msra.mxu0 0.0
      %1232 = vmatprep.subr.mxu0 0.0
      %1233 = vmatpush1.msra.mxu0 0.0
      %1234 = vmatprep.subr.mxu0 0.0
      %1235 = vmatpush1.msra.mxu0 0.0
      %1236 = vmatprep.subr.mxu0 0.0
      %1237 = vmatpush1.msra.mxu0 0.0
      %1238 = vmatprep.subr.mxu0 0.0
      %1239 = vmatpush1.msra.mxu0 0.0
      %1240 = vmatprep.subr.mxu0 0.0
      %1241 = vmatpush1.msra.mxu0 0.0
      %1242 = vmatprep.subr.mxu0 0.0
      %1243 = vmatpush1.msra.mxu0 0.0
      %1244 = vmatprep.subr.mxu0 0.0
      %1245 = vmatpush1.msra.mxu0 0.0
      %1246 = vmatprep.subr.mxu0 0.0
      %1247 = vmatpush1.msra.mxu0 0.0
      %1248 = vmatprep.subr.mxu0 0.0
      %1249 = vmatpush1.msra.mxu0 0.0
      %1250 = vmatprep.mubr.f32.mxu0 0.0
      %1251 = vmatmul.mubr.f32.gmra.mrb[0].mxu0 %v1169
      %v1252 = vpop.f32.mrb[0].mxu0
      %v1253 = vadd.f32 %v1140, %v1252
      %v1254 = vpop.f32.mrb[0].mxu0
      %1255 = vmatprep.mubr.f32.mxu0 0.0
      %1256 = vmatmul.mubr.f32.gmra.mrb[0].mxu0 %v1172
      %v1257 = vpop.f32.mrb[0].mxu0
      %v1258 = vadd.f32 %v1145, %v1257
      %v1259 = vpop.f32.mrb[0].mxu0
      %1260 = vmatprep.mubr.f32.mxu0 0.0
      %1261 = vmatmul.mubr.f32.gmra.mrb[0].mxu0 %v1175
      %v1262 = vpop.f32.mrb[0].mxu0
      %v1263 = vadd.f32 %v1150, %v1262
      %v1264 = vpop.f32.mrb[0].mxu0
      %1265 = vmatprep.mubr.f32.mxu0 0.0
      %1266 = vmatmul.mubr.f32.gmra.mrb[0].mxu0 %v1178
      %v1267 = vpop.f32.mrb[0].mxu0
      %v1268 = vadd.f32 %v1155, %v1267
      %v1269 = vpop.f32.mrb[0].mxu0
      %1270 = vmatprep.mubr.f32.mxu0 0.0
      %1271 = vmatmul.mubr.f32.gmra.mrb[0].mxu0 %v1181
      %v1272 = vpop.f32.mrb[0].mxu0
      %v1273 = vadd.f32 %v1160, %v1272
      %v1274 = vpop.f32.mrb[0].mxu0
      %1275 = vmatprep.mubr.f32.mxu0 0.0
      %1276 = vmatmul.mubr.f32.gmra.mrb[0].mxu0 %v1184
      %v1277 = vpop.f32.mrb[0].mxu0
      %v1278 = vadd.f32 %v1165, %v1277
      %v1279 = vpop.f32.mrb[0].mxu0
      %1280 = vdwg.mxu0
      %s1281 = scalar_lea.vmem %s5, 128
      %v1282 = vld [vmem:[%s1281] sm:$0xff]
      %v1283 = vld [vmem:[%s1281 + $0x8] sm:$0xff]
      %v1284 = vld [vmem:[%s1281 + $0x10] sm:$0xff]
      %v1285 = vld [vmem:[%s1281 + $0x18] sm:$0xff]
      %v1286 = vld [vmem:[%s1281 + $0x20] sm:$0xff]
      %v1287 = vld [vmem:[%s1281 + $0x28] sm:$0xff]
      %v1288 = vld [vmem:[%s1281 + $0x30] sm:$0xff]
      %v1289 = vld [vmem:[%s1281 + $0x38] sm:$0xff]
      %v1291 = vsel %vm842, %v1050, 0
      %v1294 = vsel %vm842, %v1051, 0
      %v1297 = vsel %vm842, %v1052, 0
      %v1300 = vsel %vm842, %v1053, 0
      %v1303 = vsel %vm842, %v1054, 0
      %v1306 = vsel %vm842, %v1055, 0
      %1308 = vmatprep.subr.mxu0 0.0
      %1309 = vmatpush1.msra.mxu0 %v1282
      %1310 = vmatprep.subr.mxu0 0.0
      %1311 = vmatpush1.msra.mxu0 %v1283
      %1312 = vmatprep.subr.mxu0 0.0
      %1313 = vmatpush1.msra.mxu0 %v1284
      %1314 = vmatprep.subr.mxu0 0.0
      %1315 = vmatpush1.msra.mxu0 %v1285
      %1316 = vmatprep.subr.mxu0 0.0
      %1317 = vmatpush1.msra.mxu0 %v1286
      %1318 = vmatprep.subr.mxu0 0.0
      %1319 = vmatpush1.msra.mxu0 %v1287
      %1320 = vmatprep.subr.mxu0 0.0
      %1321 = vmatpush1.msra.mxu0 %v1288
      %1322 = vmatprep.subr.mxu0 0.0
      %1323 = vmatpush1.msra.mxu0 %v1289
      %1324 = vmatprep.subr.mxu0 0.0
      %1325 = vmatpush1.msra.mxu0 0.0
      %1326 = vmatprep.subr.mxu0 0.0
      %1327 = vmatpush1.msra.mxu0 0.0
      %1328 = vmatprep.subr.mxu0 0.0
      %1329 = vmatpush1.msra.mxu0 0.0
      %1330 = vmatprep.subr.mxu0 0.0
      %1331 = vmatpush1.msra.mxu0 0.0
      %1332 = vmatprep.subr.mxu0 0.0
      %1333 = vmatpush1.msra.mxu0 0.0
      %1334 = vmatprep.subr.mxu0 0.0
      %1335 = vmatpush1.msra.mxu0 0.0
      %1336 = vmatprep.subr.mxu0 0.0
      %1337 = vmatpush1.msra.mxu0 0.0
      %1338 = vmatprep.subr.mxu0 0.0
      %1339 = vmatpush1.msra.mxu0 0.0
      %1340 = vmatprep.subr.mxu0 0.0
      %1341 = vmatpush1.msra.mxu0 0.0
      %1342 = vmatprep.subr.mxu0 0.0
      %1343 = vmatpush1.msra.mxu0 0.0
      %1344 = vmatprep.subr.mxu0 0.0
      %1345 = vmatpush1.msra.mxu0 0.0
      %1346 = vmatprep.subr.mxu0 0.0
      %1347 = vmatpush1.msra.mxu0 0.0
      %1348 = vmatprep.subr.mxu0 0.0
      %1349 = vmatpush1.msra.mxu0 0.0
      %1350 = vmatprep.subr.mxu0 0.0
      %1351 = vmatpush1.msra.mxu0 0.0
      %1352 = vmatprep.subr.mxu0 0.0
      %1353 = vmatpush1.msra.mxu0 0.0
      %1354 = vmatprep.subr.mxu0 0.0
      %1355 = vmatpush1.msra.mxu0 0.0
      %1356 = vmatprep.subr.mxu0 0.0
      %1357 = vmatpush1.msra.mxu0 0.0
      %1358 = vmatprep.subr.mxu0 0.0
      %1359 = vmatpush1.msra.mxu0 0.0
      %1360 = vmatprep.subr.mxu0 0.0
      %1361 = vmatpush1.msra.mxu0 0.0
      %1362 = vmatprep.subr.mxu0 0.0
      %1363 = vmatpush1.msra.mxu0 0.0
      %1364 = vmatprep.subr.mxu0 0.0
      %1365 = vmatpush1.msra.mxu0 0.0
      %1366 = vmatprep.subr.mxu0 0.0
      %1367 = vmatpush1.msra.mxu0 0.0
      %1368 = vmatprep.subr.mxu0 0.0
      %1369 = vmatpush1.msra.mxu0 0.0
      %1370 = vmatprep.subr.mxu0 0.0
      %1371 = vmatpush1.msra.mxu0 0.0
      %1372 = vmatprep.mubr.f32.mxu0 0.0
      %1373 = vmatmul.mubr.f32.gmra.mrb[0].mxu0 %v1291
      %v1374 = vpop.f32.mrb[0].mxu0
      %v1375 = vadd.f32 0.0, %v1374
      %v1376 = vpop.f32.mrb[0].mxu0
      %1377 = vmatprep.mubr.f32.mxu0 0.0
      %1378 = vmatmul.mubr.f32.gmra.mrb[0].mxu0 %v1294
      %v1379 = vpop.f32.mrb[0].mxu0
      %v1380 = vadd.f32 0.0, %v1379
      %v1381 = vpop.f32.mrb[0].mxu0
      %1382 = vmatprep.mubr.f32.mxu0 0.0
      %1383 = vmatmul.mubr.f32.gmra.mrb[0].mxu0 %v1297
      %v1384 = vpop.f32.mrb[0].mxu0
      %v1385 = vadd.f32 0.0, %v1384
      %v1386 = vpop.f32.mrb[0].mxu0
      %1387 = vmatprep.mubr.f32.mxu0 0.0
      %1388 = vmatmul.mubr.f32.gmra.mrb[0].mxu0 %v1300
      %v1389 = vpop.f32.mrb[0].mxu0
      %v1390 = vadd.f32 0.0, %v1389
      %v1391 = vpop.f32.mrb[0].mxu0
      %1392 = vmatprep.mubr.f32.mxu0 0.0
      %1393 = vmatmul.mubr.f32.gmra.mrb[0].mxu0 %v1303
      %v1394 = vpop.f32.mrb[0].mxu0
      %v1395 = vadd.f32 0.0, %v1394
      %v1396 = vpop.f32.mrb[0].mxu0
      %1397 = vmatprep.mubr.f32.mxu0 0.0
      %1398 = vmatmul.mubr.f32.gmra.mrb[0].mxu0 %v1306
      %v1399 = vpop.f32.mrb[0].mxu0
      %v1400 = vadd.f32 0.0, %v1399
      %v1401 = vpop.f32.mrb[0].mxu0
      %1402 = vdwg.mxu0
      %v1403 = vadd.f32 %v1253, %v1375
      %v1404 = vadd.f32 %v1258, %v1380
      %v1405 = vadd.f32 %v1263, %v1385
      %v1406 = vadd.f32 %v1268, %v1390
      %v1407 = vadd.f32 %v1273, %v1395
      %v1408 = vadd.f32 %v1278, %v1400
      %v1409 = vld [vmem:[%s6] sm:$0x1]
      %v1411 = vlaneseq
      %v1412 = vshrl.u32 %v1411, 7
      %v1413 = vsub.s32 0, %v1412
      %v1414 = vrot.slane %v1409, %v1413
      %v1416 = vadd.f32 %v1403, %v1414
      %v1417 = vadd.f32 %v1404, %v1414
      %v1418 = vadd.f32 %v1405, %v1414
      %v1419 = vadd.f32 %v1406, %v1414
      %v1420 = vadd.f32 %v1407, %v1414
      %v1421 = vadd.f32 %v1408, %v1414
      %v1422 = vadd.f32 %v1416, %v1417
      %v1423 = vadd.f32 %v1422, %v1418
      %1424 = vadd.xlane.f32.xlu0 %v1423
      %v1425 = vpop.xlane.xlu0 %1424
      %v1426 = vrot.slane %v1425, 4
      %v1427 = vadd.f32 %v1425, %v1426
      %v1428 = vrot.slane %v1427, 2
      %v1429 = vadd.f32 %v1427, %v1428
      %v1430 = vrot.slane %v1429, 1
      %v1431 = vadd.f32 %v1429, %v1430
      %s1432 = vtos %v1431
      %v1433 = vrcp.pop 3072.0
      %s1434 = vtos %v1433
      %s1435 = smul.f32 %s1432, %s1434
      %v1436 = vstv %s1435
      %v1437 = vsub.f32 %v1416, %v1436
      %v1438 = vsub.f32 %v1417, %v1436
      %v1439 = vsub.f32 %v1418, %v1436
      %v1440 = vmul.f32 %v1437, %v1437
      %v1441 = vmul.f32 %v1438, %v1438
      %v1442 = vmul.f32 %v1439, %v1439
      %v1443 = vadd.f32 %v1440, %v1441
      %v1444 = vadd.f32 %v1443, %v1442
      %1445 = vadd.xlane.f32.xlu0 %v1444
      %v1446 = vpop.xlane.xlu0 %1445
      %v1447 = vrot.slane %v1446, 4
      %v1448 = vadd.f32 %v1446, %v1447
      %v1449 = vrot.slane %v1448, 2
      %v1450 = vadd.f32 %v1448, %v1449
      %v1451 = vrot.slane %v1450, 1
      %v1452 = vadd.f32 %v1450, %v1451
      %s1453 = vtos %v1452
      %v1454 = vrcp.pop 3072.0
      %s1455 = vtos %v1454
      %s1456 = smul.f32 %s1453, %s1455
      %s1457 = sadd.f32 %s1456, 1e-05
      %v1458 = vstv %s1457
      %v1459 = vrsqrt.pop %v1458
      %s1460 = vtos %v1459
      %v1461 = vstv %s1460
      %v1462 = vmul.f32 %v1437, %v1461
      %v1463 = vmul.f32 %v1438, %v1461
      %v1464 = vmul.f32 %v1439, %v1461
      %v1465 = vld [vmem:[%s7] sm:$0xff]
      %v1466 = vld [vmem:[%s7 + $0x8] sm:$0xff]
      %v1467 = vld [vmem:[%s7 + $0x10] sm:$0xff]
      %v1468 = vmul.f32 %v1462, %v1465
      %v1469 = vmul.f32 %v1463, %v1466
      %v1470 = vmul.f32 %v1464, %v1467
      %v1471 = vld [vmem:[%s8] sm:$0xff]
      %v1472 = vld [vmem:[%s8 + $0x8] sm:$0xff]
      %v1473 = vld [vmem:[%s8 + $0x10] sm:$0xff]
      %v1474 = vadd.f32 %v1468, %v1471
      %v1475 = vadd.f32 %v1469, %v1472
      %v1476 = vadd.f32 %v1470, %v1473
      %vm1477 = vcmp.ge.f32.partialorder %v1474, 0.0
      %vm1478 = vcmp.ge.f32.partialorder %v1475, 0.0
      %vm1479 = vcmp.ge.f32.partialorder %v1476, 0.0
      %v1480 = vmul.f32 %v1474, 0.01
      %v1481 = vmul.f32 %v1475, 0.01
      %v1482 = vmul.f32 %v1476, 0.01
      %v1483 = vsel %vm1477, %v1474, %v1480
      %v1484 = vsel %vm1478, %v1475, %v1481
      %v1485 = vsel %vm1479, %v1476, %v1482
      %v1486 = vadd.f32 %v1419, %v1420
      %v1487 = vadd.f32 %v1486, %v1421
      %1488 = vadd.xlane.f32.xlu0 %v1487
      %v1489 = vpop.xlane.xlu0 %1488
      %v1490 = vrot.slane %v1489, 4
      %v1491 = vadd.f32 %v1489, %v1490
      %v1492 = vrot.slane %v1491, 2
      %v1493 = vadd.f32 %v1491, %v1492
      %v1494 = vrot.slane %v1493, 1
      %v1495 = vadd.f32 %v1493, %v1494
      %s1496 = vtos %v1495
      %v1497 = vrcp.pop 3072.0
      %s1498 = vtos %v1497
      %s1499 = smul.f32 %s1496, %s1498
      %v1500 = vstv %s1499
      %v1501 = vsub.f32 %v1419, %v1500
      %v1502 = vsub.f32 %v1420, %v1500
      %v1503 = vsub.f32 %v1421, %v1500
      %v1504 = vmul.f32 %v1501, %v1501
      %v1505 = vmul.f32 %v1502, %v1502
      %v1506 = vmul.f32 %v1503, %v1503
      %v1507 = vadd.f32 %v1504, %v1505
      %v1508 = vadd.f32 %v1507, %v1506
      %1509 = vadd.xlane.f32.xlu0 %v1508
      %v1510 = vpop.xlane.xlu0 %1509
      %v1511 = vrot.slane %v1510, 4
      %v1512 = vadd.f32 %v1510, %v1511
      %v1513 = vrot.slane %v1512, 2
      %v1514 = vadd.f32 %v1512, %v1513
      %v1515 = vrot.slane %v1514, 1
      %v1516 = vadd.f32 %v1514, %v1515
      %s1517 = vtos %v1516
      %v1518 = vrcp.pop 3072.0
      %s1519 = vtos %v1518
      %s1520 = smul.f32 %s1517, %s1519
      %s1521 = sadd.f32 %s1520, 1e-05
      %v1522 = vstv %s1521
      %v1523 = vrsqrt.pop %v1522
      %s1524 = vtos %v1523
      %v1525 = vstv %s1524
      %v1526 = vmul.f32 %v1501, %v1525
      %v1527 = vmul.f32 %v1502, %v1525
      %v1528 = vmul.f32 %v1503, %v1525
      %v1529 = vmul.f32 %v1526, %v1465
      %v1530 = vmul.f32 %v1527, %v1466
      %v1531 = vmul.f32 %v1528, %v1467
      %v1532 = vadd.f32 %v1529, %v1471
      %v1533 = vadd.f32 %v1530, %v1472
      %v1534 = vadd.f32 %v1531, %v1473
      %vm1535 = vcmp.ge.f32.partialorder %v1532, 0.0
      %vm1536 = vcmp.ge.f32.partialorder %v1533, 0.0
      %vm1537 = vcmp.ge.f32.partialorder %v1534, 0.0
      %v1538 = vmul.f32 %v1532, 0.01
      %v1539 = vmul.f32 %v1533, 0.01
      %v1540 = vmul.f32 %v1534, 0.01
      %v1541 = vsel %vm1535, %v1532, %v1538
      %v1542 = vsel %vm1536, %v1533, %v1539
      %v1543 = vsel %vm1537, %v1534, %v1540
      %v1544 = vrot.slane %v1483, 7
      %v1545 = vrot.slane %v1484, 7
      %v1546 = vrot.slane %v1485, 7
      %v1547 = vrot.slane %v1541, 7
      %v1548 = vrot.slane %v1542, 7
      %v1549 = vrot.slane %v1543, 7
      %v1550 = vsel %vm964, %v1548, %v1549
      %v1551 = vsel %vm964, %v1547, %v1548
      %v1552 = vsel %vm964, %v1546, %v1547
      %v1553 = vsel %vm964, %v1545, %v1546
      %v1554 = vsel %vm964, %v1544, %v1545
      %v1555 = vsel %vm964, %v1549, %v1544
      %v1556 = vmul.f32 %v1555, %v974
      %v1557 = vmul.f32 %v1554, %v979
      %v1558 = vmul.f32 %v1553, %v984
      %v1559 = vmul.f32 %v1552, %v989
      %v1560 = vmul.f32 %v1551, %v994
      %v1561 = vmul.f32 %v1550, %v999
      %v1562 = vrot.slane %v1483, 1
      %v1563 = vrot.slane %v1484, 1
      %v1564 = vrot.slane %v1485, 1
      %v1565 = vrot.slane %v1541, 1
      %v1566 = vrot.slane %v1542, 1
      %v1567 = vrot.slane %v1543, 1
      %v1568 = vsel %vm1013, %v1566, %v1567
      %v1569 = vsel %vm1013, %v1565, %v1566
      %v1570 = vsel %vm1013, %v1564, %v1565
      %v1571 = vsel %vm1013, %v1563, %v1564
      %v1572 = vsel %vm1013, %v1562, %v1563
      %v1573 = vsel %vm1013, %v1567, %v1562
      %v1574 = vmul.f32 %v1572, %v1023
      %v1575 = vmul.f32 %v1571, %v1028
      %v1576 = vmul.f32 %v1570, %v1033
      %v1577 = vmul.f32 %v1569, %v1038
      %v1578 = vmul.f32 %v1568, %v1043
      %v1579 = vmul.f32 %v1573, %v1048
      %v1580 = vld [vmem:[%s9] sm:$0xff]
      %v1581 = vld [vmem:[%s9 + $0x8] sm:$0xff]
      %v1582 = vld [vmem:[%s9 + $0x10] sm:$0xff]
      %v1583 = vld [vmem:[%s9 + $0x18] sm:$0xff]
      %v1584 = vld [vmem:[%s9 + $0x20] sm:$0xff]
      %v1585 = vld [vmem:[%s9 + $0x28] sm:$0xff]
      %v1586 = vld [vmem:[%s9 + $0x30] sm:$0xff]
      %v1587 = vld [vmem:[%s9 + $0x38] sm:$0xff]
      %v1588 = vld [vmem:[%s9 + $0x40] sm:$0xff]
      %v1589 = vld [vmem:[%s9 + $0x48] sm:$0xff]
      %v1590 = vld [vmem:[%s9 + $0x50] sm:$0xff]
      %v1591 = vld [vmem:[%s9 + $0x58] sm:$0xff]
      %v1592 = vld [vmem:[%s9 + $0x60] sm:$0xff]
      %v1593 = vld [vmem:[%s9 + $0x68] sm:$0xff]
      %v1594 = vld [vmem:[%s9 + $0x70] sm:$0xff]
      %v1595 = vld [vmem:[%s9 + $0x78] sm:$0xff]
      %v1596 = vld [vmem:[%s9 + $0x80] sm:$0xff]
      %v1597 = vld [vmem:[%s9 + $0x88] sm:$0xff]
      %v1598 = vld [vmem:[%s9 + $0x90] sm:$0xff]
      %v1599 = vld [vmem:[%s9 + $0x98] sm:$0xff]
      %v1600 = vld [vmem:[%s9 + $0xa0] sm:$0xff]
      %v1601 = vld [vmem:[%s9 + $0xa8] sm:$0xff]
      %v1602 = vld [vmem:[%s9 + $0xb0] sm:$0xff]
      %v1603 = vld [vmem:[%s9 + $0xb8] sm:$0xff]
      %v1604 = vld [vmem:[%s9 + $0xc0] sm:$0xff]
      %v1605 = vld [vmem:[%s9 + $0xc8] sm:$0xff]
      %v1606 = vld [vmem:[%s9 + $0xd0] sm:$0xff]
      %v1607 = vld [vmem:[%s9 + $0xd8] sm:$0xff]
      %v1608 = vld [vmem:[%s9 + $0xe0] sm:$0xff]
      %v1609 = vld [vmem:[%s9 + $0xe8] sm:$0xff]
      %v1610 = vld [vmem:[%s9 + $0xf0] sm:$0xff]
      %v1611 = vld [vmem:[%s9 + $0xf8] sm:$0xff]
      %s1612 = scalar_lea.vmem %s9, 256
      %v1613 = vld [vmem:[%s1612] sm:$0xff]
      %v1614 = vld [vmem:[%s1612 + $0x8] sm:$0xff]
      %v1615 = vld [vmem:[%s1612 + $0x10] sm:$0xff]
      %v1616 = vld [vmem:[%s1612 + $0x18] sm:$0xff]
      %v1617 = vld [vmem:[%s1612 + $0x20] sm:$0xff]
      %v1618 = vld [vmem:[%s1612 + $0x28] sm:$0xff]
      %v1619 = vld [vmem:[%s1612 + $0x30] sm:$0xff]
      %v1620 = vld [vmem:[%s1612 + $0x38] sm:$0xff]
      %v1621 = vld [vmem:[%s1612 + $0x40] sm:$0xff]
      %v1622 = vld [vmem:[%s1612 + $0x48] sm:$0xff]
      %v1623 = vld [vmem:[%s1612 + $0x50] sm:$0xff]
      %v1624 = vld [vmem:[%s1612 + $0x58] sm:$0xff]
      %v1625 = vld [vmem:[%s1612 + $0x60] sm:$0xff]
      %v1626 = vld [vmem:[%s1612 + $0x68] sm:$0xff]
      %v1627 = vld [vmem:[%s1612 + $0x70] sm:$0xff]
      %v1628 = vld [vmem:[%s1612 + $0x78] sm:$0xff]
      %v1629 = vld [vmem:[%s1612 + $0x80] sm:$0xff]
      %v1630 = vld [vmem:[%s1612 + $0x88] sm:$0xff]
      %v1631 = vld [vmem:[%s1612 + $0x90] sm:$0xff]
      %v1632 = vld [vmem:[%s1612 + $0x98] sm:$0xff]
      %v1633 = vld [vmem:[%s1612 + $0xa0] sm:$0xff]
      %v1634 = vld [vmem:[%s1612 + $0xa8] sm:$0xff]
      %v1635 = vld [vmem:[%s1612 + $0xb0] sm:$0xff]
      %v1636 = vld [vmem:[%s1612 + $0xb8] sm:$0xff]
      %v1637 = vld [vmem:[%s1612 + $0xc0] sm:$0xff]
      %v1638 = vld [vmem:[%s1612 + $0xc8] sm:$0xff]
      %v1639 = vld [vmem:[%s1612 + $0xd0] sm:$0xff]
      %v1640 = vld [vmem:[%s1612 + $0xd8] sm:$0xff]
      %v1641 = vld [vmem:[%s1612 + $0xe0] sm:$0xff]
      %v1642 = vld [vmem:[%s1612 + $0xe8] sm:$0xff]
      %v1643 = vld [vmem:[%s1612 + $0xf0] sm:$0xff]
      %v1644 = vld [vmem:[%s1612 + $0xf8] sm:$0xff]
      %1645 = vmatprep.subr.mxu0 %v1614
      %1646 = vmatpush1.msra.mxu0 %v1613
      %1647 = vmatprep.subr.mxu0 %v1616
      %1648 = vmatpush1.msra.mxu0 %v1615
      %1649 = vmatprep.subr.mxu0 %v1618
      %1650 = vmatpush1.msra.mxu0 %v1617
      %1651 = vmatprep.subr.mxu0 %v1620
      %1652 = vmatpush1.msra.mxu0 %v1619
      %1653 = vmatprep.subr.mxu0 %v1622
      %1654 = vmatpush1.msra.mxu0 %v1621
      %1655 = vmatprep.subr.mxu0 %v1624
      %1656 = vmatpush1.msra.mxu0 %v1623
      %1657 = vmatprep.subr.mxu0 %v1626
      %1658 = vmatpush1.msra.mxu0 %v1625
      %1659 = vmatprep.subr.mxu0 %v1628
      %1660 = vmatpush1.msra.mxu0 %v1627
      %1661 = vmatprep.subr.mxu0 %v1630
      %1662 = vmatpush1.msra.mxu0 %v1629
      %1663 = vmatprep.subr.mxu0 %v1632
      %1664 = vmatpush1.msra.mxu0 %v1631
      %1665 = vmatprep.subr.mxu0 %v1634
      %1666 = vmatpush1.msra.mxu0 %v1633
      %1667 = vmatprep.subr.mxu0 %v1636
      %1668 = vmatpush1.msra.mxu0 %v1635
      %1669 = vmatprep.subr.mxu0 %v1638
      %1670 = vmatpush1.msra.mxu0 %v1637
      %1671 = vmatprep.subr.mxu0 %v1640
      %1672 = vmatpush1.msra.mxu0 %v1639
      %1673 = vmatprep.subr.mxu0 %v1642
      %1674 = vmatpush1.msra.mxu0 %v1641
      %1675 = vmatprep.subr.mxu0 %v1644
      %1676 = vmatpush1.msra.mxu0 %v1643
      %1677 = vmatprep.subr.mxu0 0.0
      %1678 = vmatpush1.msra.mxu0 0.0
      %1679 = vmatprep.subr.mxu0 0.0
      %1680 = vmatpush1.msra.mxu0 0.0
      %1681 = vmatprep.subr.mxu0 0.0
      %1682 = vmatpush1.msra.mxu0 0.0
      %1683 = vmatprep.subr.mxu0 0.0
      %1684 = vmatpush1.msra.mxu0 0.0
      %1685 = vmatprep.subr.mxu0 0.0
      %1686 = vmatpush1.msra.mxu0 0.0
      %1687 = vmatprep.subr.mxu0 0.0
      %1688 = vmatpush1.msra.mxu0 0.0
      %1689 = vmatprep.subr.mxu0 0.0
      %1690 = vmatpush1.msra.mxu0 0.0
      %1691 = vmatprep.subr.mxu0 0.0
      %1692 = vmatpush1.msra.mxu0 0.0
      %1693 = vmatprep.subr.mxu0 0.0
      %1694 = vmatpush1.msra.mxu0 0.0
      %1695 = vmatprep.subr.mxu0 0.0
      %1696 = vmatpush1.msra.mxu0 0.0
      %1697 = vmatprep.subr.mxu0 0.0
      %1698 = vmatpush1.msra.mxu0 0.0
      %1699 = vmatprep.subr.mxu0 0.0
      %1700 = vmatpush1.msra.mxu0 0.0
      %1701 = vmatprep.subr.mxu0 0.0
      %1702 = vmatpush1.msra.mxu0 0.0
      %1703 = vmatprep.subr.mxu0 0.0
      %1704 = vmatpush1.msra.mxu0 0.0
      %1705 = vmatprep.subr.mxu0 0.0
      %1706 = vmatpush1.msra.mxu0 0.0
      %1707 = vmatprep.subr.mxu0 0.0
      %1708 = vmatpush1.msra.mxu0 0.0
      %1709 = vmatprep.mubr.f32.mxu0 0.0
      %1710 = vmatmul.mubr.f32.gmra.mrb[0].mxu0 %v1483
      %v1711 = vpop.f32.mrb[0].mxu0
      %v1712 = vadd.f32 0.0, %v1711
      %v1713 = vpop.f32.mrb[0].mxu0
      %v1714 = vadd.f32 0.0, %v1713
      %1715 = vmatprep.mubr.f32.mxu0 0.0
      %1716 = vmatmul.mubr.f32.gmra.mrb[0].mxu0 %v1484
      %v1717 = vpop.f32.mrb[0].mxu0
      %v1718 = vadd.f32 0.0, %v1717
      %v1719 = vpop.f32.mrb[0].mxu0
      %v1720 = vadd.f32 0.0, %v1719
      %1721 = vmatprep.mubr.f32.mxu0 0.0
      %1722 = vmatmul.mubr.f32.gmra.mrb[0].mxu0 %v1485
      %v1723 = vpop.f32.mrb[0].mxu0
      %v1724 = vadd.f32 0.0, %v1723
      %v1725 = vpop.f32.mrb[0].mxu0
      %v1726 = vadd.f32 0.0, %v1725
      %1727 = vmatprep.mubr.f32.mxu0 0.0
      %1728 = vmatmul.mubr.f32.gmra.mrb[0].mxu0 %v1541
      %v1729 = vpop.f32.mrb[0].mxu0
      %v1730 = vadd.f32 0.0, %v1729
      %v1731 = vpop.f32.mrb[0].mxu0
      %v1732 = vadd.f32 0.0, %v1731
      %1733 = vmatprep.mubr.f32.mxu0 0.0
      %1734 = vmatmul.mubr.f32.gmra.mrb[0].mxu0 %v1542
      %v1735 = vpop.f32.mrb[0].mxu0
      %v1736 = vadd.f32 0.0, %v1735
      %v1737 = vpop.f32.mrb[0].mxu0
      %v1738 = vadd.f32 0.0, %v1737
      %1739 = vmatprep.mubr.f32.mxu0 0.0
      %1740 = vmatmul.mubr.f32.gmra.mrb[0].mxu0 %v1543
      %v1741 = vpop.f32.mrb[0].mxu0
      %v1742 = vadd.f32 0.0, %v1741
      %v1743 = vpop.f32.mrb[0].mxu0
      %v1744 = vadd.f32 0.0, %v1743
      %1745 = vdwg.mxu0
      %1746 = vmatprep.subr.mxu0 %v1581
      %1747 = vmatpush1.msra.mxu0 %v1580
      %1748 = vmatprep.subr.mxu0 %v1583
      %1749 = vmatpush1.msra.mxu0 %v1582
      %1750 = vmatprep.subr.mxu0 %v1585
      %1751 = vmatpush1.msra.mxu0 %v1584
      %1752 = vmatprep.subr.mxu0 %v1587
      %1753 = vmatpush1.msra.mxu0 %v1586
      %1754 = vmatprep.subr.mxu0 %v1589
      %1755 = vmatpush1.msra.mxu0 %v1588
      %1756 = vmatprep.subr.mxu0 %v1591
      %1757 = vmatpush1.msra.mxu0 %v1590
      %1758 = vmatprep.subr.mxu0 %v1593
      %1759 = vmatpush1.msra.mxu0 %v1592
      %1760 = vmatprep.subr.mxu0 %v1595
      %1761 = vmatpush1.msra.mxu0 %v1594
      %1762 = vmatprep.subr.mxu0 %v1597
      %1763 = vmatpush1.msra.mxu0 %v1596
      %1764 = vmatprep.subr.mxu0 %v1599
      %1765 = vmatpush1.msra.mxu0 %v1598
      %1766 = vmatprep.subr.mxu0 %v1601
      %1767 = vmatpush1.msra.mxu0 %v1600
      %1768 = vmatprep.subr.mxu0 %v1603
      %1769 = vmatpush1.msra.mxu0 %v1602
      %1770 = vmatprep.subr.mxu0 %v1605
      %1771 = vmatpush1.msra.mxu0 %v1604
      %1772 = vmatprep.subr.mxu0 %v1607
      %1773 = vmatpush1.msra.mxu0 %v1606
      %1774 = vmatprep.subr.mxu0 %v1609
      %1775 = vmatpush1.msra.mxu0 %v1608
      %1776 = vmatprep.subr.mxu0 %v1611
      %1777 = vmatpush1.msra.mxu0 %v1610
      %1778 = vmatprep.subr.mxu0 0.0
      %1779 = vmatpush1.msra.mxu0 0.0
      %1780 = vmatprep.subr.mxu0 0.0
      %1781 = vmatpush1.msra.mxu0 0.0
      %1782 = vmatprep.subr.mxu0 0.0
      %1783 = vmatpush1.msra.mxu0 0.0
      %1784 = vmatprep.subr.mxu0 0.0
      %1785 = vmatpush1.msra.mxu0 0.0
      %1786 = vmatprep.subr.mxu0 0.0
      %1787 = vmatpush1.msra.mxu0 0.0
      %1788 = vmatprep.subr.mxu0 0.0
      %1789 = vmatpush1.msra.mxu0 0.0
      %1790 = vmatprep.subr.mxu0 0.0
      %1791 = vmatpush1.msra.mxu0 0.0
      %1792 = vmatprep.subr.mxu0 0.0
      %1793 = vmatpush1.msra.mxu0 0.0
      %1794 = vmatprep.subr.mxu0 0.0
      %1795 = vmatpush1.msra.mxu0 0.0
      %1796 = vmatprep.subr.mxu0 0.0
      %1797 = vmatpush1.msra.mxu0 0.0
      %1798 = vmatprep.subr.mxu0 0.0
      %1799 = vmatpush1.msra.mxu0 0.0
      %1800 = vmatprep.subr.mxu0 0.0
      %1801 = vmatpush1.msra.mxu0 0.0
      %1802 = vmatprep.subr.mxu0 0.0
      %1803 = vmatpush1.msra.mxu0 0.0
      %1804 = vmatprep.subr.mxu0 0.0
      %1805 = vmatpush1.msra.mxu0 0.0
      %1806 = vmatprep.subr.mxu0 0.0
      %1807 = vmatpush1.msra.mxu0 0.0
      %1808 = vmatprep.subr.mxu0 0.0
      %1809 = vmatpush1.msra.mxu0 0.0
      %1810 = vmatprep.mubr.f32.mxu0 0.0
      %1811 = vmatmul.mubr.f32.gmra.mrb[0].mxu0 %v1556
      %v1812 = vpop.f32.mrb[0].mxu0
      %v1813 = vadd.f32 %v1712, %v1812
      %v1814 = vpop.f32.mrb[0].mxu0
      %v1815 = vadd.f32 %v1714, %v1814
      %1816 = vmatprep.mubr.f32.mxu0 0.0
      %1817 = vmatmul.mubr.f32.gmra.mrb[0].mxu0 %v1557
      %v1818 = vpop.f32.mrb[0].mxu0
      %v1819 = vadd.f32 %v1718, %v1818
      %v1820 = vpop.f32.mrb[0].mxu0
      %v1821 = vadd.f32 %v1720, %v1820
      %1822 = vmatprep.mubr.f32.mxu0 0.0
      %1823 = vmatmul.mubr.f32.gmra.mrb[0].mxu0 %v1558
      %v1824 = vpop.f32.mrb[0].mxu0
      %v1825 = vadd.f32 %v1724, %v1824
      %v1826 = vpop.f32.mrb[0].mxu0
      %v1827 = vadd.f32 %v1726, %v1826
      %1828 = vmatprep.mubr.f32.mxu0 0.0
      %1829 = vmatmul.mubr.f32.gmra.mrb[0].mxu0 %v1559
      %v1830 = vpop.f32.mrb[0].mxu0
      %v1831 = vadd.f32 %v1730, %v1830
      %v1832 = vpop.f32.mrb[0].mxu0
      %v1833 = vadd.f32 %v1732, %v1832
      %1834 = vmatprep.mubr.f32.mxu0 0.0
      %1835 = vmatmul.mubr.f32.gmra.mrb[0].mxu0 %v1560
      %v1836 = vpop.f32.mrb[0].mxu0
      %v1837 = vadd.f32 %v1736, %v1836
      %v1838 = vpop.f32.mrb[0].mxu0
      %v1839 = vadd.f32 %v1738, %v1838
      %1840 = vmatprep.mubr.f32.mxu0 0.0
      %1841 = vmatmul.mubr.f32.gmra.mrb[0].mxu0 %v1561
      %v1842 = vpop.f32.mrb[0].mxu0
      %v1843 = vadd.f32 %v1742, %v1842
      %v1844 = vpop.f32.mrb[0].mxu0
      %v1845 = vadd.f32 %v1744, %v1844
      %1846 = vdwg.mxu0
      %s1847 = scalar_lea.vmem %s9, 512
      %v1848 = vld [vmem:[%s1847] sm:$0xff]
      %v1849 = vld [vmem:[%s1847 + $0x8] sm:$0xff]
      %v1850 = vld [vmem:[%s1847 + $0x10] sm:$0xff]
      %v1851 = vld [vmem:[%s1847 + $0x18] sm:$0xff]
      %v1852 = vld [vmem:[%s1847 + $0x20] sm:$0xff]
      %v1853 = vld [vmem:[%s1847 + $0x28] sm:$0xff]
      %v1854 = vld [vmem:[%s1847 + $0x30] sm:$0xff]
      %v1855 = vld [vmem:[%s1847 + $0x38] sm:$0xff]
      %v1856 = vld [vmem:[%s1847 + $0x40] sm:$0xff]
      %v1857 = vld [vmem:[%s1847 + $0x48] sm:$0xff]
      %v1858 = vld [vmem:[%s1847 + $0x50] sm:$0xff]
      %v1859 = vld [vmem:[%s1847 + $0x58] sm:$0xff]
      %v1860 = vld [vmem:[%s1847 + $0x60] sm:$0xff]
      %v1861 = vld [vmem:[%s1847 + $0x68] sm:$0xff]
      %v1862 = vld [vmem:[%s1847 + $0x70] sm:$0xff]
      %v1863 = vld [vmem:[%s1847 + $0x78] sm:$0xff]
      %v1864 = vld [vmem:[%s1847 + $0x80] sm:$0xff]
      %v1865 = vld [vmem:[%s1847 + $0x88] sm:$0xff]
      %v1866 = vld [vmem:[%s1847 + $0x90] sm:$0xff]
      %v1867 = vld [vmem:[%s1847 + $0x98] sm:$0xff]
      %v1868 = vld [vmem:[%s1847 + $0xa0] sm:$0xff]
      %v1869 = vld [vmem:[%s1847 + $0xa8] sm:$0xff]
      %v1870 = vld [vmem:[%s1847 + $0xb0] sm:$0xff]
      %v1871 = vld [vmem:[%s1847 + $0xb8] sm:$0xff]
      %v1872 = vld [vmem:[%s1847 + $0xc0] sm:$0xff]
      %v1873 = vld [vmem:[%s1847 + $0xc8] sm:$0xff]
      %v1874 = vld [vmem:[%s1847 + $0xd0] sm:$0xff]
      %v1875 = vld [vmem:[%s1847 + $0xd8] sm:$0xff]
      %v1876 = vld [vmem:[%s1847 + $0xe0] sm:$0xff]
      %v1877 = vld [vmem:[%s1847 + $0xe8] sm:$0xff]
      %v1878 = vld [vmem:[%s1847 + $0xf0] sm:$0xff]
      %v1879 = vld [vmem:[%s1847 + $0xf8] sm:$0xff]
      %1880 = vmatprep.subr.mxu0 %v1849
      %1881 = vmatpush1.msra.mxu0 %v1848
      %1882 = vmatprep.subr.mxu0 %v1851
      %1883 = vmatpush1.msra.mxu0 %v1850
      %1884 = vmatprep.subr.mxu0 %v1853
      %1885 = vmatpush1.msra.mxu0 %v1852
      %1886 = vmatprep.subr.mxu0 %v1855
      %1887 = vmatpush1.msra.mxu0 %v1854
      %1888 = vmatprep.subr.mxu0 %v1857
      %1889 = vmatpush1.msra.mxu0 %v1856
      %1890 = vmatprep.subr.mxu0 %v1859
      %1891 = vmatpush1.msra.mxu0 %v1858
      %1892 = vmatprep.subr.mxu0 %v1861
      %1893 = vmatpush1.msra.mxu0 %v1860
      %1894 = vmatprep.subr.mxu0 %v1863
      %1895 = vmatpush1.msra.mxu0 %v1862
      %1896 = vmatprep.subr.mxu0 %v1865
      %1897 = vmatpush1.msra.mxu0 %v1864
      %1898 = vmatprep.subr.mxu0 %v1867
      %1899 = vmatpush1.msra.mxu0 %v1866
      %1900 = vmatprep.subr.mxu0 %v1869
      %1901 = vmatpush1.msra.mxu0 %v1868
      %1902 = vmatprep.subr.mxu0 %v1871
      %1903 = vmatpush1.msra.mxu0 %v1870
      %1904 = vmatprep.subr.mxu0 %v1873
      %1905 = vmatpush1.msra.mxu0 %v1872
      %1906 = vmatprep.subr.mxu0 %v1875
      %1907 = vmatpush1.msra.mxu0 %v1874
      %1908 = vmatprep.subr.mxu0 %v1877
      %1909 = vmatpush1.msra.mxu0 %v1876
      %1910 = vmatprep.subr.mxu0 %v1879
      %1911 = vmatpush1.msra.mxu0 %v1878
      %1912 = vmatprep.subr.mxu0 0.0
      %1913 = vmatpush1.msra.mxu0 0.0
      %1914 = vmatprep.subr.mxu0 0.0
      %1915 = vmatpush1.msra.mxu0 0.0
      %1916 = vmatprep.subr.mxu0 0.0
      %1917 = vmatpush1.msra.mxu0 0.0
      %1918 = vmatprep.subr.mxu0 0.0
      %1919 = vmatpush1.msra.mxu0 0.0
      %1920 = vmatprep.subr.mxu0 0.0
      %1921 = vmatpush1.msra.mxu0 0.0
      %1922 = vmatprep.subr.mxu0 0.0
      %1923 = vmatpush1.msra.mxu0 0.0
      %1924 = vmatprep.subr.mxu0 0.0
      %1925 = vmatpush1.msra.mxu0 0.0
      %1926 = vmatprep.subr.mxu0 0.0
      %1927 = vmatpush1.msra.mxu0 0.0
      %1928 = vmatprep.subr.mxu0 0.0
      %1929 = vmatpush1.msra.mxu0 0.0
      %1930 = vmatprep.subr.mxu0 0.0
      %1931 = vmatpush1.msra.mxu0 0.0
      %1932 = vmatprep.subr.mxu0 0.0
      %1933 = vmatpush1.msra.mxu0 0.0
      %1934 = vmatprep.subr.mxu0 0.0
      %1935 = vmatpush1.msra.mxu0 0.0
      %1936 = vmatprep.subr.mxu0 0.0
      %1937 = vmatpush1.msra.mxu0 0.0
      %1938 = vmatprep.subr.mxu0 0.0
      %1939 = vmatpush1.msra.mxu0 0.0
      %1940 = vmatprep.subr.mxu0 0.0
      %1941 = vmatpush1.msra.mxu0 0.0
      %1942 = vmatprep.subr.mxu0 0.0
      %1943 = vmatpush1.msra.mxu0 0.0
      %1944 = vmatprep.mubr.f32.mxu0 0.0
      %1945 = vmatmul.mubr.f32.gmra.mrb[0].mxu0 %v1574
      %v1946 = vpop.f32.mrb[0].mxu0
      %v1947 = vadd.f32 0.0, %v1946
      %v1948 = vpop.f32.mrb[0].mxu0
      %v1949 = vadd.f32 0.0, %v1948
      %1950 = vmatprep.mubr.f32.mxu0 0.0
      %1951 = vmatmul.mubr.f32.gmra.mrb[0].mxu0 %v1575
      %v1952 = vpop.f32.mrb[0].mxu0
      %v1953 = vadd.f32 0.0, %v1952
      %v1954 = vpop.f32.mrb[0].mxu0
      %v1955 = vadd.f32 0.0, %v1954
      %1956 = vmatprep.mubr.f32.mxu0 0.0
      %1957 = vmatmul.mubr.f32.gmra.mrb[0].mxu0 %v1576
      %v1958 = vpop.f32.mrb[0].mxu0
      %v1959 = vadd.f32 0.0, %v1958
      %v1960 = vpop.f32.mrb[0].mxu0
      %v1961 = vadd.f32 0.0, %v1960
      %1962 = vmatprep.mubr.f32.mxu0 0.0
      %1963 = vmatmul.mubr.f32.gmra.mrb[0].mxu0 %v1577
      %v1964 = vpop.f32.mrb[0].mxu0
      %v1965 = vadd.f32 0.0, %v1964
      %v1966 = vpop.f32.mrb[0].mxu0
      %v1967 = vadd.f32 0.0, %v1966
      %1968 = vmatprep.mubr.f32.mxu0 0.0
      %1969 = vmatmul.mubr.f32.gmra.mrb[0].mxu0 %v1578
      %v1970 = vpop.f32.mrb[0].mxu0
      %v1971 = vadd.f32 0.0, %v1970
      %v1972 = vpop.f32.mrb[0].mxu0
      %v1973 = vadd.f32 0.0, %v1972
      %1974 = vmatprep.mubr.f32.mxu0 0.0
      %1975 = vmatmul.mubr.f32.gmra.mrb[0].mxu0 %v1579
      %v1976 = vpop.f32.mrb[0].mxu0
      %v1977 = vadd.f32 0.0, %v1976
      %v1978 = vpop.f32.mrb[0].mxu0
      %v1979 = vadd.f32 0.0, %v1978
      %1980 = vdwg.mxu0
      %v1981 = vadd.f32 %v1813, %v1947
      %v1982 = vadd.f32 %v1815, %v1949
      %v1983 = vadd.f32 %v1819, %v1953
      %v1984 = vadd.f32 %v1821, %v1955
      %v1985 = vadd.f32 %v1825, %v1959
      %v1986 = vadd.f32 %v1827, %v1961
      %v1987 = vadd.f32 %v1831, %v1965
      %v1988 = vadd.f32 %v1833, %v1967
      %v1989 = vadd.f32 %v1837, %v1971
      %v1990 = vadd.f32 %v1839, %v1973
      %v1991 = vadd.f32 %v1843, %v1977
      %v1992 = vadd.f32 %v1845, %v1979
      %v1993 = vld [vmem:[%s10] sm:$0x3]
      %v1995 = vlaneseq
      %v1996 = vshrl.u32 %v1995, 7
      %v1997 = vsub.s32 0, %v1996
      %v1998 = vrot.slane %v1993, %v1997
      %v1999 = vlaneseq
      %v2000 = vshrl.u32 %v1999, 7
      %v2001 = vsub.s32 1, %v2000
      %v2002 = vrot.slane %v1993, %v2001
      %v2005 = vadd.f32 %v1981, %v1998
      %v2006 = vadd.f32 %v1982, %v2002
      %v2007 = vadd.f32 %v1983, %v1998
      %v2008 = vadd.f32 %v1984, %v2002
      %v2009 = vadd.f32 %v1985, %v1998
      %v2010 = vadd.f32 %v1986, %v2002
      %v2011 = vadd.f32 %v1987, %v1998
      %v2012 = vadd.f32 %v1988, %v2002
      %v2013 = vadd.f32 %v1989, %v1998
      %v2014 = vadd.f32 %v1990, %v2002
      %v2015 = vadd.f32 %v1991, %v1998
      %v2016 = vadd.f32 %v1992, %v2002
      %v2017 = vxor.u32 %v2006, 2147483648
      %v2018 = vxor.u32 %v2008, 2147483648
      %v2019 = vxor.u32 %v2010, 2147483648
      %v2020 = vxor.u32 %v2012, 2147483648
      %v2021 = vxor.u32 %v2014, 2147483648
      %v2022 = vxor.u32 %v2016, 2147483648
      %v2023 = vmul.f32 %v2017, 1.442695
      %v2024 = vpow.pop %v2023
      %v2025 = vmul.f32 %v2018, 1.442695
      %v2026 = vpow.pop %v2025
      %v2027 = vmul.f32 %v2019, 1.442695
      %v2028 = vpow.pop %v2027
      %v2029 = vmul.f32 %v2020, 1.442695
      %v2030 = vpow.pop %v2029
      %v2031 = vmul.f32 %v2021, 1.442695
      %v2032 = vpow.pop %v2031
      %v2033 = vmul.f32 %v2022, 1.442695
      %v2034 = vpow.pop %v2033
      %v2035 = vadd.f32 %v2024, 1.0
      %v2036 = vadd.f32 %v2026, 1.0
      %v2037 = vadd.f32 %v2028, 1.0
      %v2038 = vadd.f32 %v2030, 1.0
      %v2039 = vadd.f32 %v2032, 1.0
      %v2040 = vadd.f32 %v2034, 1.0
      %v2041 = vrcp.pop %v2035
      %v2042 = vmul.f32 1.0, %v2041
      %v2043 = vrcp.pop %v2036
      %v2044 = vmul.f32 1.0, %v2043
      %v2045 = vrcp.pop %v2037
      %v2046 = vmul.f32 1.0, %v2045
      %v2047 = vrcp.pop %v2038
      %v2048 = vmul.f32 1.0, %v2047
      %v2049 = vrcp.pop %v2039
      %v2050 = vmul.f32 1.0, %v2049
      %v2051 = vrcp.pop %v2040
      %v2052 = vmul.f32 1.0, %v2051
      %vm2053 = vcmp.ge.f32.partialorder %v2005, 0.0
      %vm2054 = vcmp.ge.f32.partialorder %v2007, 0.0
      %vm2055 = vcmp.ge.f32.partialorder %v2009, 0.0
      %vm2056 = vcmp.ge.f32.partialorder %v2011, 0.0
      %vm2057 = vcmp.ge.f32.partialorder %v2013, 0.0
      %vm2058 = vcmp.ge.f32.partialorder %v2015, 0.0
      %v2059 = vmul.f32 %v2005, 0.01
      %v2060 = vmul.f32 %v2007, 0.01
      %v2061 = vmul.f32 %v2009, 0.01
      %v2062 = vmul.f32 %v2011, 0.01
      %v2063 = vmul.f32 %v2013, 0.01
      %v2064 = vmul.f32 %v2015, 0.01
      %v2065 = vsel %vm2053, %v2005, %v2059
      %v2066 = vsel %vm2054, %v2007, %v2060
      %v2067 = vsel %vm2055, %v2009, %v2061
      %v2068 = vsel %vm2056, %v2011, %v2062
      %v2069 = vsel %vm2057, %v2013, %v2063
      %v2070 = vsel %vm2058, %v2015, %v2064
      %v2071 = vmul.f32 %v2042, %v2065
      %v2072 = vmul.f32 %v2044, %v2066
      %v2073 = vmul.f32 %v2046, %v2067
      %v2074 = vmul.f32 %v2048, %v2068
      %v2075 = vmul.f32 %v2050, %v2069
      %v2076 = vmul.f32 %v2052, %v2070
      %v2077 = vld [vmem:[%s11] sm:$0xff]
      %v2078 = vld [vmem:[%s11 + $0x8] sm:$0xff]
      %v2079 = vld [vmem:[%s11 + $0x10] sm:$0xff]
      %v2080 = vld [vmem:[%s11 + $0x18] sm:$0xff]
      %v2081 = vld [vmem:[%s11 + $0x20] sm:$0xff]
      %v2082 = vld [vmem:[%s11 + $0x28] sm:$0xff]
      %v2083 = vld [vmem:[%s11 + $0x30] sm:$0xff]
      %v2084 = vld [vmem:[%s11 + $0x38] sm:$0xff]
      %v2085 = vld [vmem:[%s11 + $0x40] sm:$0xff]
      %v2086 = vld [vmem:[%s11 + $0x48] sm:$0xff]
      %v2087 = vld [vmem:[%s11 + $0x50] sm:$0xff]
      %v2088 = vld [vmem:[%s11 + $0x58] sm:$0xff]
      %v2089 = vld [vmem:[%s11 + $0x60] sm:$0xff]
      %v2090 = vld [vmem:[%s11 + $0x68] sm:$0xff]
      %v2091 = vld [vmem:[%s11 + $0x70] sm:$0xff]
      %v2092 = vld [vmem:[%s11 + $0x78] sm:$0xff]
      %2093 = vmatprep.subr.mxu0 0.0
      %2094 = vmatpush1.msra.mxu0 %v2077
      %2095 = vmatprep.subr.mxu0 0.0
      %2096 = vmatpush1.msra.mxu0 %v2078
      %2097 = vmatprep.subr.mxu0 0.0
      %2098 = vmatpush1.msra.mxu0 %v2079
      %2099 = vmatprep.subr.mxu0 0.0
      %2100 = vmatpush1.msra.mxu0 %v2080
      %2101 = vmatprep.subr.mxu0 0.0
      %2102 = vmatpush1.msra.mxu0 %v2081
      %2103 = vmatprep.subr.mxu0 0.0
      %2104 = vmatpush1.msra.mxu0 %v2082
      %2105 = vmatprep.subr.mxu0 0.0
      %2106 = vmatpush1.msra.mxu0 %v2083
      %2107 = vmatprep.subr.mxu0 0.0
      %2108 = vmatpush1.msra.mxu0 %v2084
      %2109 = vmatprep.subr.mxu0 0.0
      %2110 = vmatpush1.msra.mxu0 %v2085
      %2111 = vmatprep.subr.mxu0 0.0
      %2112 = vmatpush1.msra.mxu0 %v2086
      %2113 = vmatprep.subr.mxu0 0.0
      %2114 = vmatpush1.msra.mxu0 %v2087
      %2115 = vmatprep.subr.mxu0 0.0
      %2116 = vmatpush1.msra.mxu0 %v2088
      %2117 = vmatprep.subr.mxu0 0.0
      %2118 = vmatpush1.msra.mxu0 %v2089
      %2119 = vmatprep.subr.mxu0 0.0
      %2120 = vmatpush1.msra.mxu0 %v2090
      %2121 = vmatprep.subr.mxu0 0.0
      %2122 = vmatpush1.msra.mxu0 %v2091
      %2123 = vmatprep.subr.mxu0 0.0
      %2124 = vmatpush1.msra.mxu0 %v2092
      %2125 = vmatprep.subr.mxu0 0.0
      %2126 = vmatpush1.msra.mxu0 0.0
      %2127 = vmatprep.subr.mxu0 0.0
      %2128 = vmatpush1.msra.mxu0 0.0
      %2129 = vmatprep.subr.mxu0 0.0
      %2130 = vmatpush1.msra.mxu0 0.0
      %2131 = vmatprep.subr.mxu0 0.0
      %2132 = vmatpush1.msra.mxu0 0.0
      %2133 = vmatprep.subr.mxu0 0.0
      %2134 = vmatpush1.msra.mxu0 0.0
      %2135 = vmatprep.subr.mxu0 0.0
      %2136 = vmatpush1.msra.mxu0 0.0
      %2137 = vmatprep.subr.mxu0 0.0
      %2138 = vmatpush1.msra.mxu0 0.0
      %2139 = vmatprep.subr.mxu0 0.0
      %2140 = vmatpush1.msra.mxu0 0.0
      %2141 = vmatprep.subr.mxu0 0.0
      %2142 = vmatpush1.msra.mxu0 0.0
      %2143 = vmatprep.subr.mxu0 0.0
      %2144 = vmatpush1.msra.mxu0 0.0
      %2145 = vmatprep.subr.mxu0 0.0
      %2146 = vmatpush1.msra.mxu0 0.0
      %2147 = vmatprep.subr.mxu0 0.0
      %2148 = vmatpush1.msra.mxu0 0.0
      %2149 = vmatprep.subr.mxu0 0.0
      %2150 = vmatpush1.msra.mxu0 0.0
      %2151 = vmatprep.subr.mxu0 0.0
      %2152 = vmatpush1.msra.mxu0 0.0
      %2153 = vmatprep.subr.mxu0 0.0
      %2154 = vmatpush1.msra.mxu0 0.0
      %2155 = vmatprep.subr.mxu0 0.0
      %2156 = vmatpush1.msra.mxu0 0.0
      %2157 = vmatprep.mubr.f32.mxu0 0.0
      %2158 = vmatmul.mubr.f32.gmra.mrb[0].mxu0 %v2071
      %v2159 = vpop.f32.mrb[0].mxu0
      %v2160 = vadd.f32 0.0, %v2159
      %v2161 = vpop.f32.mrb[0].mxu0
      %2162 = vmatprep.mubr.f32.mxu0 0.0
      %2163 = vmatmul.mubr.f32.gmra.mrb[0].mxu0 %v2072
      %v2164 = vpop.f32.mrb[0].mxu0
      %v2165 = vadd.f32 0.0, %v2164
      %v2166 = vpop.f32.mrb[0].mxu0
      %2167 = vmatprep.mubr.f32.mxu0 0.0
      %2168 = vmatmul.mubr.f32.gmra.mrb[0].mxu0 %v2073
      %v2169 = vpop.f32.mrb[0].mxu0
      %v2170 = vadd.f32 0.0, %v2169
      %v2171 = vpop.f32.mrb[0].mxu0
      %2172 = vdwg.mxu0
      %v2173 = vld [vmem:[%s12] sm:$0xff]
      %v2174 = vld [vmem:[%s12 + $0x8] sm:$0xff]
      %v2175 = vld [vmem:[%s12 + $0x10] sm:$0xff]
      %v2176 = vld [vmem:[%s12 + $0x18] sm:$0xff]
      %v2177 = vld [vmem:[%s12 + $0x20] sm:$0xff]
      %v2178 = vld [vmem:[%s12 + $0x28] sm:$0xff]
      %v2179 = vld [vmem:[%s12 + $0x30] sm:$0xff]
      %v2180 = vld [vmem:[%s12 + $0x38] sm:$0xff]
      %v2181 = vld [vmem:[%s12 + $0x40] sm:$0xff]
      %v2182 = vld [vmem:[%s12 + $0x48] sm:$0xff]
      %v2183 = vld [vmem:[%s12 + $0x50] sm:$0xff]
      %v2184 = vld [vmem:[%s12 + $0x58] sm:$0xff]
      %v2185 = vld [vmem:[%s12 + $0x60] sm:$0xff]
      %v2186 = vld [vmem:[%s12 + $0x68] sm:$0xff]
      %v2187 = vld [vmem:[%s12 + $0x70] sm:$0xff]
      %v2188 = vld [vmem:[%s12 + $0x78] sm:$0xff]
      %2189 = vmatprep.subr.mxu0 0.0
      %2190 = vmatpush1.msra.mxu0 %v2173
      %2191 = vmatprep.subr.mxu0 0.0
      %2192 = vmatpush1.msra.mxu0 %v2174
      %2193 = vmatprep.subr.mxu0 0.0
      %2194 = vmatpush1.msra.mxu0 %v2175
      %2195 = vmatprep.subr.mxu0 0.0
      %2196 = vmatpush1.msra.mxu0 %v2176
      %2197 = vmatprep.subr.mxu0 0.0
      %2198 = vmatpush1.msra.mxu0 %v2177
      %2199 = vmatprep.subr.mxu0 0.0
      %2200 = vmatpush1.msra.mxu0 %v2178
      %2201 = vmatprep.subr.mxu0 0.0
      %2202 = vmatpush1.msra.mxu0 %v2179
      %2203 = vmatprep.subr.mxu0 0.0
      %2204 = vmatpush1.msra.mxu0 %v2180
      %2205 = vmatprep.subr.mxu0 0.0
      %2206 = vmatpush1.msra.mxu0 %v2181
      %2207 = vmatprep.subr.mxu0 0.0
      %2208 = vmatpush1.msra.mxu0 %v2182
      %2209 = vmatprep.subr.mxu0 0.0
      %2210 = vmatpush1.msra.mxu0 %v2183
      %2211 = vmatprep.subr.mxu0 0.0
      %2212 = vmatpush1.msra.mxu0 %v2184
      %2213 = vmatprep.subr.mxu0 0.0
      %2214 = vmatpush1.msra.mxu0 %v2185
      %2215 = vmatprep.subr.mxu0 0.0
      %2216 = vmatpush1.msra.mxu0 %v2186
      %2217 = vmatprep.subr.mxu0 0.0
      %2218 = vmatpush1.msra.mxu0 %v2187
      %2219 = vmatprep.subr.mxu0 0.0
      %2220 = vmatpush1.msra.mxu0 %v2188
      %2221 = vmatprep.subr.mxu0 0.0
      %2222 = vmatpush1.msra.mxu0 0.0
      %2223 = vmatprep.subr.mxu0 0.0
      %2224 = vmatpush1.msra.mxu0 0.0
      %2225 = vmatprep.subr.mxu0 0.0
      %2226 = vmatpush1.msra.mxu0 0.0
      %2227 = vmatprep.subr.mxu0 0.0
      %2228 = vmatpush1.msra.mxu0 0.0
      %2229 = vmatprep.subr.mxu0 0.0
      %2230 = vmatpush1.msra.mxu0 0.0
      %2231 = vmatprep.subr.mxu0 0.0
      %2232 = vmatpush1.msra.mxu0 0.0
      %2233 = vmatprep.subr.mxu0 0.0
      %2234 = vmatpush1.msra.mxu0 0.0
      %2235 = vmatprep.subr.mxu0 0.0
      %2236 = vmatpush1.msra.mxu0 0.0
      %2237 = vmatprep.subr.mxu0 0.0
      %2238 = vmatpush1.msra.mxu0 0.0
      %2239 = vmatprep.subr.mxu0 0.0
      %2240 = vmatpush1.msra.mxu0 0.0
      %2241 = vmatprep.subr.mxu0 0.0
      %2242 = vmatpush1.msra.mxu0 0.0
      %2243 = vmatprep.subr.mxu0 0.0
      %2244 = vmatpush1.msra.mxu0 0.0
      %2245 = vmatprep.subr.mxu0 0.0
      %2246 = vmatpush1.msra.mxu0 0.0
      %2247 = vmatprep.subr.mxu0 0.0
      %2248 = vmatpush1.msra.mxu0 0.0
      %2249 = vmatprep.subr.mxu0 0.0
      %2250 = vmatpush1.msra.mxu0 0.0
      %2251 = vmatprep.subr.mxu0 0.0
      %2252 = vmatpush1.msra.mxu0 0.0
      %2253 = vmatprep.mubr.f32.mxu0 0.0
      %2254 = vmatmul.mubr.f32.gmra.mrb[0].mxu0 %v2071
      %v2255 = vpop.f32.mrb[0].mxu0
      %v2256 = vadd.f32 0.0, %v2255
      %v2257 = vpop.f32.mrb[0].mxu0
      %2258 = vmatprep.mubr.f32.mxu0 0.0
      %2259 = vmatmul.mubr.f32.gmra.mrb[0].mxu0 %v2072
      %v2260 = vpop.f32.mrb[0].mxu0
      %v2261 = vadd.f32 0.0, %v2260
      %v2262 = vpop.f32.mrb[0].mxu0
      %2263 = vmatprep.mubr.f32.mxu0 0.0
      %2264 = vmatmul.mubr.f32.gmra.mrb[0].mxu0 %v2073
      %v2265 = vpop.f32.mrb[0].mxu0
      %v2266 = vadd.f32 0.0, %v2265
      %v2267 = vpop.f32.mrb[0].mxu0
      %2268 = vdwg.mxu0
      %v2269 = vld [vmem:[%s13] sm:$0xff]
      %v2270 = vld [vmem:[%s13 + $0x8] sm:$0xff]
      %vm2271 = vcmask 130048
      %v2273 = vsel %vm2271, %v2160, 0
      %v2276 = vsel %vm2271, %v2165, 0
      %v2279 = vsel %vm2271, %v2170, 0
      %2281 = vmatprep.subr.mxu0 0.0
      %2282 = vmatpush1.msra.mxu0 %v2269
      %2283 = vmatprep.subr.mxu0 0.0
      %2284 = vmatpush1.msra.mxu0 %v2270
      %2285 = vmatprep.subr.mxu0 0.0
      %2286 = vmatpush1.msra.mxu0 0.0
      %2287 = vmatprep.subr.mxu0 0.0
      %2288 = vmatpush1.msra.mxu0 0.0
      %2289 = vmatprep.subr.mxu0 0.0
      %2290 = vmatpush1.msra.mxu0 0.0
      %2291 = vmatprep.subr.mxu0 0.0
      %2292 = vmatpush1.msra.mxu0 0.0
      %2293 = vmatprep.subr.mxu0 0.0
      %2294 = vmatpush1.msra.mxu0 0.0
      %2295 = vmatprep.subr.mxu0 0.0
      %2296 = vmatpush1.msra.mxu0 0.0
      %2297 = vmatprep.subr.mxu0 0.0
      %2298 = vmatpush1.msra.mxu0 0.0
      %2299 = vmatprep.subr.mxu0 0.0
      %2300 = vmatpush1.msra.mxu0 0.0
      %2301 = vmatprep.subr.mxu0 0.0
      %2302 = vmatpush1.msra.mxu0 0.0
      %2303 = vmatprep.subr.mxu0 0.0
      %2304 = vmatpush1.msra.mxu0 0.0
      %2305 = vmatprep.subr.mxu0 0.0
      %2306 = vmatpush1.msra.mxu0 0.0
      %2307 = vmatprep.subr.mxu0 0.0
      %2308 = vmatpush1.msra.mxu0 0.0
      %2309 = vmatprep.subr.mxu0 0.0
      %2310 = vmatpush1.msra.mxu0 0.0
      %2311 = vmatprep.subr.mxu0 0.0
      %2312 = vmatpush1.msra.mxu0 0.0
      %2313 = vmatprep.subr.mxu0 0.0
      %2314 = vmatpush1.msra.mxu0 0.0
      %2315 = vmatprep.subr.mxu0 0.0
      %2316 = vmatpush1.msra.mxu0 0.0
      %2317 = vmatprep.subr.mxu0 0.0
      %2318 = vmatpush1.msra.mxu0 0.0
      %2319 = vmatprep.subr.mxu0 0.0
      %2320 = vmatpush1.msra.mxu0 0.0
      %2321 = vmatprep.subr.mxu0 0.0
      %2322 = vmatpush1.msra.mxu0 0.0
      %2323 = vmatprep.subr.mxu0 0.0
      %2324 = vmatpush1.msra.mxu0 0.0
      %2325 = vmatprep.subr.mxu0 0.0
      %2326 = vmatpush1.msra.mxu0 0.0
      %2327 = vmatprep.subr.mxu0 0.0
      %2328 = vmatpush1.msra.mxu0 0.0
      %2329 = vmatprep.subr.mxu0 0.0
      %2330 = vmatpush1.msra.mxu0 0.0
      %2331 = vmatprep.subr.mxu0 0.0
      %2332 = vmatpush1.msra.mxu0 0.0
      %2333 = vmatprep.subr.mxu0 0.0
      %2334 = vmatpush1.msra.mxu0 0.0
      %2335 = vmatprep.subr.mxu0 0.0
      %2336 = vmatpush1.msra.mxu0 0.0
      %2337 = vmatprep.subr.mxu0 0.0
      %2338 = vmatpush1.msra.mxu0 0.0
      %2339 = vmatprep.subr.mxu0 0.0
      %2340 = vmatpush1.msra.mxu0 0.0
      %2341 = vmatprep.subr.mxu0 0.0
      %2342 = vmatpush1.msra.mxu0 0.0
      %2343 = vmatprep.subr.mxu0 0.0
      %2344 = vmatpush1.msra.mxu0 0.0
      %2345 = vmatprep.mubr.f32.mxu0 0.0
      %2346 = vmatmul.mubr.f32.gmra.mrb[0].mxu0 %v2273
      %v2347 = vpop.f32.mrb[0].mxu0
      %v2348 = vadd.f32 0.0, %v2347
      %v2349 = vpop.f32.mrb[0].mxu0
      %2350 = vmatprep.mubr.f32.mxu0 0.0
      %2351 = vmatmul.mubr.f32.gmra.mrb[0].mxu0 %v2276
      %v2352 = vpop.f32.mrb[0].mxu0
      %v2353 = vadd.f32 0.0, %v2352
      %v2354 = vpop.f32.mrb[0].mxu0
      %2355 = vmatprep.mubr.f32.mxu0 0.0
      %2356 = vmatmul.mubr.f32.gmra.mrb[0].mxu0 %v2279
      %v2357 = vpop.f32.mrb[0].mxu0
      %v2358 = vadd.f32 0.0, %v2357
      %v2359 = vpop.f32.mrb[0].mxu0
      %2360 = vdwg.mxu0
      %v2361 = vld [vmem:[%s14] sm:$0xff]
      %v2362 = vld [vmem:[%s14 + $0x8] sm:$0xff]
      %2363 = vmatprep.subr.mxu0 0.0
      %2364 = vmatpush1.msra.mxu0 %v2361
      %2365 = vmatprep.subr.mxu0 0.0
      %2366 = vmatpush1.msra.mxu0 %v2362
      %2367 = vmatprep.subr.mxu0 0.0
      %2368 = vmatpush1.msra.mxu0 0.0
      %2369 = vmatprep.subr.mxu0 0.0
      %2370 = vmatpush1.msra.mxu0 0.0
      %2371 = vmatprep.subr.mxu0 0.0
      %2372 = vmatpush1.msra.mxu0 0.0
      %2373 = vmatprep.subr.mxu0 0.0
      %2374 = vmatpush1.msra.mxu0 0.0
      %2375 = vmatprep.subr.mxu0 0.0
      %2376 = vmatpush1.msra.mxu0 0.0
      %2377 = vmatprep.subr.mxu0 0.0
      %2378 = vmatpush1.msra.mxu0 0.0
      %2379 = vmatprep.subr.mxu0 0.0
      %2380 = vmatpush1.msra.mxu0 0.0
      %2381 = vmatprep.subr.mxu0 0.0
      %2382 = vmatpush1.msra.mxu0 0.0
      %2383 = vmatprep.subr.mxu0 0.0
      %2384 = vmatpush1.msra.mxu0 0.0
      %2385 = vmatprep.subr.mxu0 0.0
      %2386 = vmatpush1.msra.mxu0 0.0
      %2387 = vmatprep.subr.mxu0 0.0
      %2388 = vmatpush1.msra.mxu0 0.0
      %2389 = vmatprep.subr.mxu0 0.0
      %2390 = vmatpush1.msra.mxu0 0.0
      %2391 = vmatprep.subr.mxu0 0.0
      %2392 = vmatpush1.msra.mxu0 0.0
      %2393 = vmatprep.subr.mxu0 0.0
      %2394 = vmatpush1.msra.mxu0 0.0
      %2395 = vmatprep.subr.mxu0 0.0
      %2396 = vmatpush1.msra.mxu0 0.0
      %2397 = vmatprep.subr.mxu0 0.0
      %2398 = vmatpush1.msra.mxu0 0.0
      %2399 = vmatprep.subr.mxu0 0.0
      %2400 = vmatpush1.msra.mxu0 0.0
      %2401 = vmatprep.subr.mxu0 0.0
      %2402 = vmatpush1.msra.mxu0 0.0
      %2403 = vmatprep.subr.mxu0 0.0
      %2404 = vmatpush1.msra.mxu0 0.0
      %2405 = vmatprep.subr.mxu0 0.0
      %2406 = vmatpush1.msra.mxu0 0.0
      %2407 = vmatprep.subr.mxu0 0.0
      %2408 = vmatpush1.msra.mxu0 0.0
      %2409 = vmatprep.subr.mxu0 0.0
      %2410 = vmatpush1.msra.mxu0 0.0
      %2411 = vmatprep.subr.mxu0 0.0
      %2412 = vmatpush1.msra.mxu0 0.0
      %2413 = vmatprep.subr.mxu0 0.0
      %2414 = vmatpush1.msra.mxu0 0.0
      %2415 = vmatprep.subr.mxu0 0.0
      %2416 = vmatpush1.msra.mxu0 0.0
      %2417 = vmatprep.subr.mxu0 0.0
      %2418 = vmatpush1.msra.mxu0 0.0
      %2419 = vmatprep.subr.mxu0 0.0
      %2420 = vmatpush1.msra.mxu0 0.0
      %2421 = vmatprep.subr.mxu0 0.0
      %2422 = vmatpush1.msra.mxu0 0.0
      %2423 = vmatprep.subr.mxu0 0.0
      %2424 = vmatpush1.msra.mxu0 0.0
      %2425 = vmatprep.subr.mxu0 0.0
      %2426 = vmatpush1.msra.mxu0 0.0
      %2427 = vmatprep.mubr.f32.mxu0 0.0
      %2428 = vmatmul.mubr.f32.gmra.mrb[0].mxu0 %v2273
      %v2429 = vpop.f32.mrb[0].mxu0
      %v2430 = vadd.f32 0.0, %v2429
      %v2431 = vpop.f32.mrb[0].mxu0
      %2432 = vmatprep.mubr.f32.mxu0 0.0
      %2433 = vmatmul.mubr.f32.gmra.mrb[0].mxu0 %v2276
      %v2434 = vpop.f32.mrb[0].mxu0
      %v2435 = vadd.f32 0.0, %v2434
      %v2436 = vpop.f32.mrb[0].mxu0
      %2437 = vmatprep.mubr.f32.mxu0 0.0
      %2438 = vmatmul.mubr.f32.gmra.mrb[0].mxu0 %v2279
      %v2439 = vpop.f32.mrb[0].mxu0
      %v2440 = vadd.f32 0.0, %v2439
      %v2441 = vpop.f32.mrb[0].mxu0
      %2442 = vdwg.mxu0
      %v2443 = vld [vmem:[%s17] sm:$0xff]
      %v2444 = vld [vmem:[%s17 + $0x8] sm:$0xff]
      %v2445 = vld [vmem:[%s17 + $0x10] sm:$0xff]
      %vm2446 = vcmask 392192
      %v2448 = vsel %vm2446, %v2443, 0
      %v2451 = vsel %vm2446, %v2444, 0
      %v2454 = vsel %vm2446, %v2445, 0
      %2456 = vmatprep.subr.mxu0 0.0
      %2457 = vmatpush1.msra.mxu0 %v2348
      %2458 = vmatprep.subr.mxu0 0.0
      %2459 = vmatpush1.msra.mxu0 %v2353
      %2460 = vmatprep.subr.mxu0 0.0
      %2461 = vmatpush1.msra.mxu0 %v2358
      %2462 = vmatprep.subr.mxu0 0.0
      %2463 = vmatpush1.msra.mxu0 %v2430
      %2464 = vmatprep.subr.mxu0 0.0
      %2465 = vmatpush1.msra.mxu0 %v2435
      %2466 = vmatprep.subr.mxu0 0.0
      %2467 = vmatpush1.msra.mxu0 %v2440
      %2468 = vmatprep.subr.mxu0 0.0
      %2469 = vmatpush1.msra.mxu0 0.0
      %2470 = vmatprep.subr.mxu0 0.0
      %2471 = vmatpush1.msra.mxu0 0.0
      %2472 = vmatprep.subr.mxu0 0.0
      %2473 = vmatpush1.msra.mxu0 0.0
      %2474 = vmatprep.subr.mxu0 0.0
      %2475 = vmatpush1.msra.mxu0 0.0
      %2476 = vmatprep.subr.mxu0 0.0
      %2477 = vmatpush1.msra.mxu0 0.0
      %2478 = vmatprep.subr.mxu0 0.0
      %2479 = vmatpush1.msra.mxu0 0.0
      %2480 = vmatprep.subr.mxu0 0.0
      %2481 = vmatpush1.msra.mxu0 0.0
      %2482 = vmatprep.subr.mxu0 0.0
      %2483 = vmatpush1.msra.mxu0 0.0
      %2484 = vmatprep.subr.mxu0 0.0
      %2485 = vmatpush1.msra.mxu0 0.0
      %2486 = vmatprep.subr.mxu0 0.0
      %2487 = vmatpush1.msra.mxu0 0.0
      %2488 = vmatprep.subr.mxu0 0.0
      %2489 = vmatpush1.msra.mxu0 0.0
      %2490 = vmatprep.subr.mxu0 0.0
      %2491 = vmatpush1.msra.mxu0 0.0
      %2492 = vmatprep.subr.mxu0 0.0
      %2493 = vmatpush1.msra.mxu0 0.0
      %2494 = vmatprep.subr.mxu0 0.0
      %2495 = vmatpush1.msra.mxu0 0.0
      %2496 = vmatprep.subr.mxu0 0.0
      %2497 = vmatpush1.msra.mxu0 0.0
      %2498 = vmatprep.subr.mxu0 0.0
      %2499 = vmatpush1.msra.mxu0 0.0
      %2500 = vmatprep.subr.mxu0 0.0
      %2501 = vmatpush1.msra.mxu0 0.0
      %2502 = vmatprep.subr.mxu0 0.0
      %2503 = vmatpush1.msra.mxu0 0.0
      %2504 = vmatprep.subr.mxu0 0.0
      %2505 = vmatpush1.msra.mxu0 0.0
      %2506 = vmatprep.subr.mxu0 0.0
      %2507 = vmatpush1.msra.mxu0 0.0
      %2508 = vmatprep.subr.mxu0 0.0
      %2509 = vmatpush1.msra.mxu0 0.0
      %2510 = vmatprep.subr.mxu0 0.0
      %2511 = vmatpush1.msra.mxu0 0.0
      %2512 = vmatprep.subr.mxu0 0.0
      %2513 = vmatpush1.msra.mxu0 0.0
      %2514 = vmatprep.subr.mxu0 0.0
      %2515 = vmatpush1.msra.mxu0 0.0
      %2516 = vmatprep.subr.mxu0 0.0
      %2517 = vmatpush1.msra.mxu0 0.0
      %2518 = vmatprep.subr.mxu0 0.0
      %2519 = vmatpush1.msra.mxu0 0.0
      %2520 = vmatprep.mubr.f32.mxu0 0.0
      %2521 = vmatmul.mubr.f32.gmra.mrb[0].mxu0 %v2448
      %v2522 = vpop.f32.mrb[0].mxu0
      %v2523 = vadd.f32 0.0, %v2522
      %v2524 = vpop.f32.mrb[0].mxu0
      %2525 = vmatprep.mubr.f32.mxu0 0.0
      %2526 = vmatmul.mubr.f32.gmra.mrb[0].mxu0 %v2451
      %v2527 = vpop.f32.mrb[0].mxu0
      %v2528 = vadd.f32 0.0, %v2527
      %v2529 = vpop.f32.mrb[0].mxu0
      %2530 = vmatprep.mubr.f32.mxu0 0.0
      %2531 = vmatmul.mubr.f32.gmra.mrb[0].mxu0 %v2454
      %v2532 = vpop.f32.mrb[0].mxu0
      %v2533 = vadd.f32 0.0, %v2532
      %v2534 = vpop.f32.mrb[0].mxu0
      %2535 = vdwg.mxu0
      %v2536 = vld [vmem:[%s15] sm:$0xff]
      %v2537 = vld [vmem:[%s15 + $0x8] sm:$0xff]
      %v2538 = vld [vmem:[%s15 + $0x10] sm:$0xff]
      %vm2539 = vcmask 195584
      %v2541 = vsel %vm2539, %v2536, 0
      %v2544 = vsel %vm2539, %v2537, 0
      %v2547 = vsel %vm2539, %v2538, 0
      %2549 = vmatprep.subr.mxu0 0.0
      %2550 = vmatpush1.msra.mxu0 %v2256
      %2551 = vmatprep.subr.mxu0 0.0
      %2552 = vmatpush1.msra.mxu0 %v2261
      %2553 = vmatprep.subr.mxu0 0.0
      %2554 = vmatpush1.msra.mxu0 %v2266
      %2555 = vmatprep.subr.mxu0 0.0
      %2556 = vmatpush1.msra.mxu0 0.0
      %2557 = vmatprep.subr.mxu0 0.0
      %2558 = vmatpush1.msra.mxu0 0.0
      %2559 = vmatprep.subr.mxu0 0.0
      %2560 = vmatpush1.msra.mxu0 0.0
      %2561 = vmatprep.subr.mxu0 0.0
      %2562 = vmatpush1.msra.mxu0 0.0
      %2563 = vmatprep.subr.mxu0 0.0
      %2564 = vmatpush1.msra.mxu0 0.0
      %2565 = vmatprep.subr.mxu0 0.0
      %2566 = vmatpush1.msra.mxu0 0.0
      %2567 = vmatprep.subr.mxu0 0.0
      %2568 = vmatpush1.msra.mxu0 0.0
      %2569 = vmatprep.subr.mxu0 0.0
      %2570 = vmatpush1.msra.mxu0 0.0
      %2571 = vmatprep.subr.mxu0 0.0
      %2572 = vmatpush1.msra.mxu0 0.0
      %2573 = vmatprep.subr.mxu0 0.0
      %2574 = vmatpush1.msra.mxu0 0.0
      %2575 = vmatprep.subr.mxu0 0.0
      %2576 = vmatpush1.msra.mxu0 0.0
      %2577 = vmatprep.subr.mxu0 0.0
      %2578 = vmatpush1.msra.mxu0 0.0
      %2579 = vmatprep.subr.mxu0 0.0
      %2580 = vmatpush1.msra.mxu0 0.0
      %2581 = vmatprep.subr.mxu0 0.0
      %2582 = vmatpush1.msra.mxu0 0.0
      %2583 = vmatprep.subr.mxu0 0.0
      %2584 = vmatpush1.msra.mxu0 0.0
      %2585 = vmatprep.subr.mxu0 0.0
      %2586 = vmatpush1.msra.mxu0 0.0
      %2587 = vmatprep.subr.mxu0 0.0
      %2588 = vmatpush1.msra.mxu0 0.0
      %2589 = vmatprep.subr.mxu0 0.0
      %2590 = vmatpush1.msra.mxu0 0.0
      %2591 = vmatprep.subr.mxu0 0.0
      %2592 = vmatpush1.msra.mxu0 0.0
      %2593 = vmatprep.subr.mxu0 0.0
      %2594 = vmatpush1.msra.mxu0 0.0
      %2595 = vmatprep.subr.mxu0 0.0
      %2596 = vmatpush1.msra.mxu0 0.0
      %2597 = vmatprep.subr.mxu0 0.0
      %2598 = vmatpush1.msra.mxu0 0.0
      %2599 = vmatprep.subr.mxu0 0.0
      %2600 = vmatpush1.msra.mxu0 0.0
      %2601 = vmatprep.subr.mxu0 0.0
      %2602 = vmatpush1.msra.mxu0 0.0
      %2603 = vmatprep.subr.mxu0 0.0
      %2604 = vmatpush1.msra.mxu0 0.0
      %2605 = vmatprep.subr.mxu0 0.0
      %2606 = vmatpush1.msra.mxu0 0.0
      %2607 = vmatprep.subr.mxu0 0.0
      %2608 = vmatpush1.msra.mxu0 0.0
      %2609 = vmatprep.subr.mxu0 0.0
      %2610 = vmatpush1.msra.mxu0 0.0
      %2611 = vmatprep.subr.mxu0 0.0
      %2612 = vmatpush1.msra.mxu0 0.0
      %2613 = vmatprep.mubr.f32.mxu0 0.0
      %2614 = vmatmul.mubr.f32.gmra.mrb[0].mxu0 %v2541
      %v2615 = vpop.f32.mrb[0].mxu0
      %v2616 = vadd.f32 0.0, %v2615
      %v2617 = vpop.f32.mrb[0].mxu0
      %2618 = vmatprep.mubr.f32.mxu0 0.0
      %2619 = vmatmul.mubr.f32.gmra.mrb[0].mxu0 %v2544
      %v2620 = vpop.f32.mrb[0].mxu0
      %v2621 = vadd.f32 0.0, %v2620
      %v2622 = vpop.f32.mrb[0].mxu0
      %2623 = vmatprep.mubr.f32.mxu0 0.0
      %2624 = vmatmul.mubr.f32.gmra.mrb[0].mxu0 %v2547
      %v2625 = vpop.f32.mrb[0].mxu0
      %v2626 = vadd.f32 0.0, %v2625
      %v2627 = vpop.f32.mrb[0].mxu0
      %2628 = vdwg.mxu0
      %v2629 = vld [vmem:[%s16] sm:$0xff]
      %v2630 = vld [vmem:[%s16 + $0x8] sm:$0xff]
      %v2631 = vld [vmem:[%s16 + $0x10] sm:$0xff]
      %v2633 = vsel %vm2539, %v2629, 0
      %v2636 = vsel %vm2539, %v2630, 0
      %v2639 = vsel %vm2539, %v2631, 0
      %2641 = vmatprep.subr.mxu0 0.0
      %2642 = vmatpush1.msra.mxu0 %v2256
      %2643 = vmatprep.subr.mxu0 0.0
      %2644 = vmatpush1.msra.mxu0 %v2261
      %2645 = vmatprep.subr.mxu0 0.0
      %2646 = vmatpush1.msra.mxu0 %v2266
      %2647 = vmatprep.subr.mxu0 0.0
      %2648 = vmatpush1.msra.mxu0 0.0
      %2649 = vmatprep.subr.mxu0 0.0
      %2650 = vmatpush1.msra.mxu0 0.0
      %2651 = vmatprep.subr.mxu0 0.0
      %2652 = vmatpush1.msra.mxu0 0.0
      %2653 = vmatprep.subr.mxu0 0.0
      %2654 = vmatpush1.msra.mxu0 0.0
      %2655 = vmatprep.subr.mxu0 0.0
      %2656 = vmatpush1.msra.mxu0 0.0
      %2657 = vmatprep.subr.mxu0 0.0
      %2658 = vmatpush1.msra.mxu0 0.0
      %2659 = vmatprep.subr.mxu0 0.0
      %2660 = vmatpush1.msra.mxu0 0.0
      %2661 = vmatprep.subr.mxu0 0.0
      %2662 = vmatpush1.msra.mxu0 0.0
      %2663 = vmatprep.subr.mxu0 0.0
      %2664 = vmatpush1.msra.mxu0 0.0
      %2665 = vmatprep.subr.mxu0 0.0
      %2666 = vmatpush1.msra.mxu0 0.0
      %2667 = vmatprep.subr.mxu0 0.0
      %2668 = vmatpush1.msra.mxu0 0.0
      %2669 = vmatprep.subr.mxu0 0.0
      %2670 = vmatpush1.msra.mxu0 0.0
      %2671 = vmatprep.subr.mxu0 0.0
      %2672 = vmatpush1.msra.mxu0 0.0
      %2673 = vmatprep.subr.mxu0 0.0
      %2674 = vmatpush1.msra.mxu0 0.0
      %2675 = vmatprep.subr.mxu0 0.0
      %2676 = vmatpush1.msra.mxu0 0.0
      %2677 = vmatprep.subr.mxu0 0.0
      %2678 = vmatpush1.msra.mxu0 0.0
      %2679 = vmatprep.subr.mxu0 0.0
      %2680 = vmatpush1.msra.mxu0 0.0
      %2681 = vmatprep.subr.mxu0 0.0
      %2682 = vmatpush1.msra.mxu0 0.0
      %2683 = vmatprep.subr.mxu0 0.0
      %2684 = vmatpush1.msra.mxu0 0.0
      %2685 = vmatprep.subr.mxu0 0.0
      %2686 = vmatpush1.msra.mxu0 0.0
      %2687 = vmatprep.subr.mxu0 0.0
      %2688 = vmatpush1.msra.mxu0 0.0
      %2689 = vmatprep.subr.mxu0 0.0
      %2690 = vmatpush1.msra.mxu0 0.0
      %2691 = vmatprep.subr.mxu0 0.0
      %2692 = vmatpush1.msra.mxu0 0.0
      %2693 = vmatprep.subr.mxu0 0.0
      %2694 = vmatpush1.msra.mxu0 0.0
      %2695 = vmatprep.subr.mxu0 0.0
      %2696 = vmatpush1.msra.mxu0 0.0
      %2697 = vmatprep.subr.mxu0 0.0
      %2698 = vmatpush1.msra.mxu0 0.0
      %2699 = vmatprep.subr.mxu0 0.0
      %2700 = vmatpush1.msra.mxu0 0.0
      %2701 = vmatprep.subr.mxu0 0.0
      %2702 = vmatpush1.msra.mxu0 0.0
      %2703 = vmatprep.subr.mxu0 0.0
      %2704 = vmatpush1.msra.mxu0 0.0
      %2705 = vmatprep.mubr.f32.mxu0 0.0
      %2706 = vmatmul.mubr.f32.gmra.mrb[0].mxu0 %v2633
      %v2707 = vpop.f32.mrb[0].mxu0
      %v2708 = vadd.f32 0.0, %v2707
      %v2709 = vpop.f32.mrb[0].mxu0
      %2710 = vmatprep.mubr.f32.mxu0 0.0
      %2711 = vmatmul.mubr.f32.gmra.mrb[0].mxu0 %v2636
      %v2712 = vpop.f32.mrb[0].mxu0
      %v2713 = vadd.f32 0.0, %v2712
      %v2714 = vpop.f32.mrb[0].mxu0
      %2715 = vmatprep.mubr.f32.mxu0 0.0
      %2716 = vmatmul.mubr.f32.gmra.mrb[0].mxu0 %v2639
      %v2717 = vpop.f32.mrb[0].mxu0
      %v2718 = vadd.f32 0.0, %v2717
      %v2719 = vpop.f32.mrb[0].mxu0
      %2720 = vdwg.mxu0
      %2724 = vrot.lane.b32.xlu0 %v2708, 8
      %v2725 = vpop.permute.xlu0 %2724
      %2726 = vrot.lane.b32.xlu0 %v2713, 8
      %v2727 = vpop.permute.xlu0 %2726
      %2728 = vrot.lane.b32.xlu0 %v2718, 8
      %v2729 = vpop.permute.xlu0 %2728
      %vm2733 = vcmask 64512
      %v2734 = vsel %vm2733, %v2616, %v2725
      %v2735 = vsel %vm2733, %v2621, %v2727
      %v2736 = vsel %vm2733, %v2626, %v2729
      %v2737 = vld [vmem:[%s18] sm:$0xff]
      %v2738 = vld [vmem:[%s18 + $0x8] sm:$0xff]
      %v2740 = vsel %vm2271, %v2734, 0
      %v2743 = vsel %vm2271, %v2735, 0
      %v2746 = vsel %vm2271, %v2736, 0
      %2748 = vmatprep.subr.mxu0 0.0
      %2749 = vmatpush1.msra.mxu0 %v2737
      %2750 = vmatprep.subr.mxu0 0.0
      %2751 = vmatpush1.msra.mxu0 %v2738
      %2752 = vmatprep.subr.mxu0 0.0
      %2753 = vmatpush1.msra.mxu0 0.0
      %2754 = vmatprep.subr.mxu0 0.0
      %2755 = vmatpush1.msra.mxu0 0.0
      %2756 = vmatprep.subr.mxu0 0.0
      %2757 = vmatpush1.msra.mxu0 0.0
      %2758 = vmatprep.subr.mxu0 0.0
      %2759 = vmatpush1.msra.mxu0 0.0
      %2760 = vmatprep.subr.mxu0 0.0
      %2761 = vmatpush1.msra.mxu0 0.0
      %2762 = vmatprep.subr.mxu0 0.0
      %2763 = vmatpush1.msra.mxu0 0.0
      %2764 = vmatprep.subr.mxu0 0.0
      %2765 = vmatpush1.msra.mxu0 0.0
      %2766 = vmatprep.subr.mxu0 0.0
      %2767 = vmatpush1.msra.mxu0 0.0
      %2768 = vmatprep.subr.mxu0 0.0
      %2769 = vmatpush1.msra.mxu0 0.0
      %2770 = vmatprep.subr.mxu0 0.0
      %2771 = vmatpush1.msra.mxu0 0.0
      %2772 = vmatprep.subr.mxu0 0.0
      %2773 = vmatpush1.msra.mxu0 0.0
      %2774 = vmatprep.subr.mxu0 0.0
      %2775 = vmatpush1.msra.mxu0 0.0
      %2776 = vmatprep.subr.mxu0 0.0
      %2777 = vmatpush1.msra.mxu0 0.0
      %2778 = vmatprep.subr.mxu0 0.0
      %2779 = vmatpush1.msra.mxu0 0.0
      %2780 = vmatprep.subr.mxu0 0.0
      %2781 = vmatpush1.msra.mxu0 0.0
      %2782 = vmatprep.subr.mxu0 0.0
      %2783 = vmatpush1.msra.mxu0 0.0
      %2784 = vmatprep.subr.mxu0 0.0
      %2785 = vmatpush1.msra.mxu0 0.0
      %2786 = vmatprep.subr.mxu0 0.0
      %2787 = vmatpush1.msra.mxu0 0.0
      %2788 = vmatprep.subr.mxu0 0.0
      %2789 = vmatpush1.msra.mxu0 0.0
      %2790 = vmatprep.subr.mxu0 0.0
      %2791 = vmatpush1.msra.mxu0 0.0
      %2792 = vmatprep.subr.mxu0 0.0
      %2793 = vmatpush1.msra.mxu0 0.0
      %2794 = vmatprep.subr.mxu0 0.0
      %2795 = vmatpush1.msra.mxu0 0.0
      %2796 = vmatprep.subr.mxu0 0.0
      %2797 = vmatpush1.msra.mxu0 0.0
      %2798 = vmatprep.subr.mxu0 0.0
      %2799 = vmatpush1.msra.mxu0 0.0
      %2800 = vmatprep.subr.mxu0 0.0
      %2801 = vmatpush1.msra.mxu0 0.0
      %2802 = vmatprep.subr.mxu0 0.0
      %2803 = vmatpush1.msra.mxu0 0.0
      %2804 = vmatprep.subr.mxu0 0.0
      %2805 = vmatpush1.msra.mxu0 0.0
      %2806 = vmatprep.subr.mxu0 0.0
      %2807 = vmatpush1.msra.mxu0 0.0
      %2808 = vmatprep.subr.mxu0 0.0
      %2809 = vmatpush1.msra.mxu0 0.0
      %2810 = vmatprep.subr.mxu0 0.0
      %2811 = vmatpush1.msra.mxu0 0.0
      %2812 = vmatprep.mubr.f32.mxu0 0.0
      %2813 = vmatmul.mubr.f32.gmra.mrb[0].mxu0 %v2740
      %v2814 = vpop.f32.mrb[0].mxu0
      %v2815 = vadd.f32 0.0, %v2814
      %v2816 = vpop.f32.mrb[0].mxu0
      %2817 = vmatprep.mubr.f32.mxu0 0.0
      %2818 = vmatmul.mubr.f32.gmra.mrb[0].mxu0 %v2743
      %v2819 = vpop.f32.mrb[0].mxu0
      %v2820 = vadd.f32 0.0, %v2819
      %v2821 = vpop.f32.mrb[0].mxu0
      %2822 = vmatprep.mubr.f32.mxu0 0.0
      %2823 = vmatmul.mubr.f32.gmra.mrb[0].mxu0 %v2746
      %v2824 = vpop.f32.mrb[0].mxu0
      %v2825 = vadd.f32 0.0, %v2824
      %v2826 = vpop.f32.mrb[0].mxu0
      %2827 = vdwg.mxu0
      %v2828 = vld [vmem:[%s19] sm:$0xff]
      %v2829 = vld [vmem:[%s19 + $0x8] sm:$0xff]
      %v2831 = vsel %vm2271, %v2523, 0
      %v2834 = vsel %vm2271, %v2528, 0
      %v2837 = vsel %vm2271, %v2533, 0
      %2839 = vmatprep.subr.mxu0 0.0
      %2840 = vmatpush1.msra.mxu0 %v2828
      %2841 = vmatprep.subr.mxu0 0.0
      %2842 = vmatpush1.msra.mxu0 %v2829
      %2843 = vmatprep.subr.mxu0 0.0
      %2844 = vmatpush1.msra.mxu0 0.0
      %2845 = vmatprep.subr.mxu0 0.0
      %2846 = vmatpush1.msra.mxu0 0.0
      %2847 = vmatprep.subr.mxu0 0.0
      %2848 = vmatpush1.msra.mxu0 0.0
      %2849 = vmatprep.subr.mxu0 0.0
      %2850 = vmatpush1.msra.mxu0 0.0
      %2851 = vmatprep.subr.mxu0 0.0
      %2852 = vmatpush1.msra.mxu0 0.0
      %2853 = vmatprep.subr.mxu0 0.0
      %2854 = vmatpush1.msra.mxu0 0.0
      %2855 = vmatprep.subr.mxu0 0.0
      %2856 = vmatpush1.msra.mxu0 0.0
      %2857 = vmatprep.subr.mxu0 0.0
      %2858 = vmatpush1.msra.mxu0 0.0
      %2859 = vmatprep.subr.mxu0 0.0
      %2860 = vmatpush1.msra.mxu0 0.0
      %2861 = vmatprep.subr.mxu0 0.0
      %2862 = vmatpush1.msra.mxu0 0.0
      %2863 = vmatprep.subr.mxu0 0.0
      %2864 = vmatpush1.msra.mxu0 0.0
      %2865 = vmatprep.subr.mxu0 0.0
      %2866 = vmatpush1.msra.mxu0 0.0
      %2867 = vmatprep.subr.mxu0 0.0
      %2868 = vmatpush1.msra.mxu0 0.0
      %2869 = vmatprep.subr.mxu0 0.0
      %2870 = vmatpush1.msra.mxu0 0.0
      %2871 = vmatprep.subr.mxu0 0.0
      %2872 = vmatpush1.msra.mxu0 0.0
      %2873 = vmatprep.subr.mxu0 0.0
      %2874 = vmatpush1.msra.mxu0 0.0
      %2875 = vmatprep.subr.mxu0 0.0
      %2876 = vmatpush1.msra.mxu0 0.0
      %2877 = vmatprep.subr.mxu0 0.0
      %2878 = vmatpush1.msra.mxu0 0.0
      %2879 = vmatprep.subr.mxu0 0.0
      %2880 = vmatpush1.msra.mxu0 0.0
      %2881 = vmatprep.subr.mxu0 0.0
      %2882 = vmatpush1.msra.mxu0 0.0
      %2883 = vmatprep.subr.mxu0 0.0
      %2884 = vmatpush1.msra.mxu0 0.0
      %2885 = vmatprep.subr.mxu0 0.0
      %2886 = vmatpush1.msra.mxu0 0.0
      %2887 = vmatprep.subr.mxu0 0.0
      %2888 = vmatpush1.msra.mxu0 0.0
      %2889 = vmatprep.subr.mxu0 0.0
      %2890 = vmatpush1.msra.mxu0 0.0
      %2891 = vmatprep.subr.mxu0 0.0
      %2892 = vmatpush1.msra.mxu0 0.0
      %2893 = vmatprep.subr.mxu0 0.0
      %2894 = vmatpush1.msra.mxu0 0.0
      %2895 = vmatprep.subr.mxu0 0.0
      %2896 = vmatpush1.msra.mxu0 0.0
      %2897 = vmatprep.subr.mxu0 0.0
      %2898 = vmatpush1.msra.mxu0 0.0
      %2899 = vmatprep.subr.mxu0 0.0
      %2900 = vmatpush1.msra.mxu0 0.0
      %2901 = vmatprep.subr.mxu0 0.0
      %2902 = vmatpush1.msra.mxu0 0.0
      %2903 = vmatprep.mubr.f32.mxu0 0.0
      %2904 = vmatmul.mubr.f32.gmra.mrb[0].mxu0 %v2831
      %v2905 = vpop.f32.mrb[0].mxu0
      %v2906 = vadd.f32 0.0, %v2905
      %v2907 = vpop.f32.mrb[0].mxu0
      %2908 = vmatprep.mubr.f32.mxu0 0.0
      %2909 = vmatmul.mubr.f32.gmra.mrb[0].mxu0 %v2834
      %v2910 = vpop.f32.mrb[0].mxu0
      %v2911 = vadd.f32 0.0, %v2910
      %v2912 = vpop.f32.mrb[0].mxu0
      %2913 = vmatprep.mubr.f32.mxu0 0.0
      %2914 = vmatmul.mubr.f32.gmra.mrb[0].mxu0 %v2837
      %v2915 = vpop.f32.mrb[0].mxu0
      %v2916 = vadd.f32 0.0, %v2915
      %v2917 = vpop.f32.mrb[0].mxu0
      %2918 = vdwg.mxu0
      %v2919 = vld [vmem:[%s21] sm:$0xff]
      %v2920 = vld [vmem:[%s21 + $0x8] sm:$0xff]
      %v2921 = vld [vmem:[%s21 + $0x10] sm:$0xff]
      %v2922 = vld [vmem:[%s20] sm:$0xff]
      %v2923 = vld [vmem:[%s20 + $0x8] sm:$0xff]
      %v2924 = vld [vmem:[%s20 + $0x10] sm:$0xff]
      %v2926 = vsel %vm2733, %v2906, 0
      %v2929 = vsel %vm2733, %v2911, 0
      %v2932 = vsel %vm2733, %v2916, 0
      %v2935 = vsel %vm2733, %v2815, 0
      %v2938 = vsel %vm2733, %v2820, 0
      %v2941 = vsel %vm2733, %v2825, 0
      %2943 = vmatprep.subr.mxu0 0.0
      %2944 = vmatpush1.xpose.msra.mxu0 %v2935
      %2945 = vmatprep.subr.mxu0 0.0
      %2946 = vmatpush1.xpose.msra.mxu0 %v2938
      %2947 = vmatprep.subr.mxu0 0.0
      %2948 = vmatpush1.xpose.msra.mxu0 %v2941
      %2949 = vmatprep.subr.mxu0 0.0
      %2950 = vmatpush1.xpose.msra.mxu0 0.0
      %2951 = vmatprep.subr.mxu0 0.0
      %2952 = vmatpush1.xpose.msra.mxu0 0.0
      %2953 = vmatprep.subr.mxu0 0.0
      %2954 = vmatpush1.xpose.msra.mxu0 0.0
      %2955 = vmatprep.subr.mxu0 0.0
      %2956 = vmatpush1.xpose.msra.mxu0 0.0
      %2957 = vmatprep.subr.mxu0 0.0
      %2958 = vmatpush1.xpose.msra.mxu0 0.0
      %2959 = vmatprep.subr.mxu0 0.0
      %2960 = vmatpush1.xpose.msra.mxu0 0.0
      %2961 = vmatprep.subr.mxu0 0.0
      %2962 = vmatpush1.xpose.msra.mxu0 0.0
      %2963 = vmatprep.subr.mxu0 0.0
      %2964 = vmatpush1.xpose.msra.mxu0 0.0
      %2965 = vmatprep.subr.mxu0 0.0
      %2966 = vmatpush1.xpose.msra.mxu0 0.0
      %2967 = vmatprep.subr.mxu0 0.0
      %2968 = vmatpush1.xpose.msra.mxu0 0.0
      %2969 = vmatprep.subr.mxu0 0.0
      %2970 = vmatpush1.xpose.msra.mxu0 0.0
      %2971 = vmatprep.subr.mxu0 0.0
      %2972 = vmatpush1.xpose.msra.mxu0 0.0
      %2973 = vmatprep.subr.mxu0 0.0
      %2974 = vmatpush1.xpose.msra.mxu0 0.0
      %2975 = vmatprep.subr.mxu0 0.0
      %2976 = vmatpush1.xpose.msra.mxu0 0.0
      %2977 = vmatprep.subr.mxu0 0.0
      %2978 = vmatpush1.xpose.msra.mxu0 0.0
      %2979 = vmatprep.subr.mxu0 0.0
      %2980 = vmatpush1.xpose.msra.mxu0 0.0
      %2981 = vmatprep.subr.mxu0 0.0
      %2982 = vmatpush1.xpose.msra.mxu0 0.0
      %2983 = vmatprep.subr.mxu0 0.0
      %2984 = vmatpush1.xpose.msra.mxu0 0.0
      %2985 = vmatprep.subr.mxu0 0.0
      %2986 = vmatpush1.xpose.msra.mxu0 0.0
      %2987 = vmatprep.subr.mxu0 0.0
      %2988 = vmatpush1.xpose.msra.mxu0 0.0
      %2989 = vmatprep.subr.mxu0 0.0
      %2990 = vmatpush1.xpose.msra.mxu0 0.0
      %2991 = vmatprep.subr.mxu0 0.0
      %2992 = vmatpush1.xpose.msra.mxu0 0.0
      %2993 = vmatprep.subr.mxu0 0.0
      %2994 = vmatpush1.xpose.msra.mxu0 0.0
      %2995 = vmatprep.subr.mxu0 0.0
      %2996 = vmatpush1.xpose.msra.mxu0 0.0
      %2997 = vmatprep.subr.mxu0 0.0
      %2998 = vmatpush1.xpose.msra.mxu0 0.0
      %2999 = vmatprep.subr.mxu0 0.0
      %3000 = vmatpush1.xpose.msra.mxu0 0.0
      %3001 = vmatprep.subr.mxu0 0.0
      %3002 = vmatpush1.xpose.msra.mxu0 0.0
      %3003 = vmatprep.subr.mxu0 0.0
      %3004 = vmatpush1.xpose.msra.mxu0 0.0
      %3005 = vmatprep.subr.mxu0 0.0
      %3006 = vmatpush1.xpose.msra.mxu0 0.0
      %3007 = vmatprep.mubr.f32.mxu0 0.0
      %3008 = vmatmul.mubr.f32.gmra.mrb[0].mxu0 %v2926
      %v3009 = vpop.f32.mrb[0].mxu0
      %v3010 = vadd.f32 %v2922, %v3009
      %v3011 = vpop.f32.mrb[0].mxu0
      %3012 = vmatprep.mubr.f32.mxu0 0.0
      %3013 = vmatmul.mubr.f32.gmra.mrb[0].mxu0 %v2929
      %v3014 = vpop.f32.mrb[0].mxu0
      %v3015 = vadd.f32 %v2923, %v3014
      %v3016 = vpop.f32.mrb[0].mxu0
      %3017 = vmatprep.mubr.f32.mxu0 0.0
      %3018 = vmatmul.mubr.f32.gmra.mrb[0].mxu0 %v2932
      %v3019 = vpop.f32.mrb[0].mxu0
      %v3020 = vadd.f32 %v2924, %v3019
      %v3021 = vpop.f32.mrb[0].mxu0
      %3022 = vdwg.mxu0
      %v3023 = vxor.u32 %v3010, 2147483648
      %v3024 = vxor.u32 %v3015, 2147483648
      %v3025 = vxor.u32 %v3020, 2147483648
      %v3026 = vmul.f32 %v3023, 1.442695
      %v3027 = vpow.pop %v3026
      %v3028 = vmul.f32 %v3024, 1.442695
      %v3029 = vpow.pop %v3028
      %v3030 = vmul.f32 %v3025, 1.442695
      %v3031 = vpow.pop %v3030
      %v3032 = vadd.f32 %v3027, 1.0
      %v3033 = vadd.f32 %v3029, 1.0
      %v3034 = vadd.f32 %v3031, 1.0
      %v3035 = vrcp.pop %v3032
      %v3036 = vmul.f32 1.0, %v3035
      %v3037 = vrcp.pop %v3033
      %v3038 = vmul.f32 1.0, %v3037
      %v3039 = vrcp.pop %v3034
      %v3040 = vmul.f32 1.0, %v3039
      %v3042 = vsel %vm2539, %v2919, 0
      %v3045 = vsel %vm2539, %v2920, 0
      %v3048 = vsel %vm2539, %v2921, 0
      %3050 = vmatprep.subr.mxu0 0.0
      %3051 = vmatpush1.msra.mxu0 %v3036
      %3052 = vmatprep.subr.mxu0 0.0
      %3053 = vmatpush1.msra.mxu0 %v3038
      %3054 = vmatprep.subr.mxu0 0.0
      %3055 = vmatpush1.msra.mxu0 %v3040
      %3056 = vmatprep.subr.mxu0 0.0
      %3057 = vmatpush1.msra.mxu0 0.0
      %3058 = vmatprep.subr.mxu0 0.0
      %3059 = vmatpush1.msra.mxu0 0.0
      %3060 = vmatprep.subr.mxu0 0.0
      %3061 = vmatpush1.msra.mxu0 0.0
      %3062 = vmatprep.subr.mxu0 0.0
      %3063 = vmatpush1.msra.mxu0 0.0
      %3064 = vmatprep.subr.mxu0 0.0
      %3065 = vmatpush1.msra.mxu0 0.0
      %3066 = vmatprep.subr.mxu0 0.0
      %3067 = vmatpush1.msra.mxu0 0.0
      %3068 = vmatprep.subr.mxu0 0.0
      %3069 = vmatpush1.msra.mxu0 0.0
      %3070 = vmatprep.subr.mxu0 0.0
      %3071 = vmatpush1.msra.mxu0 0.0
      %3072 = vmatprep.subr.mxu0 0.0
      %3073 = vmatpush1.msra.mxu0 0.0
      %3074 = vmatprep.subr.mxu0 0.0
      %3075 = vmatpush1.msra.mxu0 0.0
      %3076 = vmatprep.subr.mxu0 0.0
      %3077 = vmatpush1.msra.mxu0 0.0
      %3078 = vmatprep.subr.mxu0 0.0
      %3079 = vmatpush1.msra.mxu0 0.0
      %3080 = vmatprep.subr.mxu0 0.0
      %3081 = vmatpush1.msra.mxu0 0.0
      %3082 = vmatprep.subr.mxu0 0.0
      %3083 = vmatpush1.msra.mxu0 0.0
      %3084 = vmatprep.subr.mxu0 0.0
      %3085 = vmatpush1.msra.mxu0 0.0
      %3086 = vmatprep.subr.mxu0 0.0
      %3087 = vmatpush1.msra.mxu0 0.0
      %3088 = vmatprep.subr.mxu0 0.0
      %3089 = vmatpush1.msra.mxu0 0.0
      %3090 = vmatprep.subr.mxu0 0.0
      %3091 = vmatpush1.msra.mxu0 0.0
      %3092 = vmatprep.subr.mxu0 0.0
      %3093 = vmatpush1.msra.mxu0 0.0
      %3094 = vmatprep.subr.mxu0 0.0
      %3095 = vmatpush1.msra.mxu0 0.0
      %3096 = vmatprep.subr.mxu0 0.0
      %3097 = vmatpush1.msra.mxu0 0.0
      %3098 = vmatprep.subr.mxu0 0.0
      %3099 = vmatpush1.msra.mxu0 0.0
      %3100 = vmatprep.subr.mxu0 0.0
      %3101 = vmatpush1.msra.mxu0 0.0
      %3102 = vmatprep.subr.mxu0 0.0
      %3103 = vmatpush1.msra.mxu0 0.0
      %3104 = vmatprep.subr.mxu0 0.0
      %3105 = vmatpush1.msra.mxu0 0.0
      %3106 = vmatprep.subr.mxu0 0.0
      %3107 = vmatpush1.msra.mxu0 0.0
      %3108 = vmatprep.subr.mxu0 0.0
      %3109 = vmatpush1.msra.mxu0 0.0
      %3110 = vmatprep.subr.mxu0 0.0
      %3111 = vmatpush1.msra.mxu0 0.0
      %3112 = vmatprep.subr.mxu0 0.0
      %3113 = vmatpush1.msra.mxu0 0.0
      %3114 = vmatprep.mubr.f32.mxu0 0.0
      %3115 = vmatmul.mubr.f32.gmra.mrb[0].mxu0 %v3042
      %v3116 = vpop.f32.mrb[0].mxu0
      %v3117 = vadd.f32 0.0, %v3116
      %v3118 = vpop.f32.mrb[0].mxu0
      %3119 = vmatprep.mubr.f32.mxu0 0.0
      %3120 = vmatmul.mubr.f32.gmra.mrb[0].mxu0 %v3045
      %v3121 = vpop.f32.mrb[0].mxu0
      %v3122 = vadd.f32 0.0, %v3121
      %v3123 = vpop.f32.mrb[0].mxu0
      %3124 = vmatprep.mubr.f32.mxu0 0.0
      %3125 = vmatmul.mubr.f32.gmra.mrb[0].mxu0 %v3048
      %v3126 = vpop.f32.mrb[0].mxu0
      %v3127 = vadd.f32 0.0, %v3126
      %v3128 = vpop.f32.mrb[0].mxu0
      %3129 = vdwg.mxu0
      %v3130 = vld [vmem:[%s22] sm:$0x1]
      %v3132 = vlaneseq
      %v3133 = vshrl.u32 %v3132, 7
      %v3134 = vsub.s32 0, %v3133
      %v3135 = vrot.slane %v3130, %v3134
      %v3137 = vmul.f32 %v3117, %v3135
      %v3138 = vmul.f32 %v3122, %v3135
      %v3139 = vmul.f32 %v3127, %v3135
      %v3140 = vld [vmem:[%s23] sm:$0x1]
      %v3142 = vlaneseq
      %v3143 = vshrl.u32 %v3142, 7
      %v3144 = vsub.s32 0, %v3143
      %v3145 = vrot.slane %v3140, %v3144
      %v3147 = vadd.f32 %v3137, %v3145
      %v3148 = vadd.f32 %v3138, %v3145
      %v3149 = vadd.f32 %v3139, %v3145
      %v3150 = vld [vmem:[%s24] sm:$0xff]
      %v3151 = vld [vmem:[%s24 + $0x8] sm:$0xff]
      %v3152 = vld [vmem:[%s24 + $0x10] sm:$0xff]
      %v3153 = vadd.f32 %v3147, %v3150
      %v3154 = vadd.f32 %v3148, %v3151
      %v3155 = vadd.f32 %v3149, %v3152
      %v3156 = vsel %vm2539, %v3153, -inf
      %3157 = vmax.xlane.f32.xlu0 %v3156
      %v3158 = vpop.xlane.xlu0 %3157
      %v3159 = vsel %vm2539, %v3154, -inf
      %3160 = vmax.xlane.f32.xlu0 %v3159
      %v3161 = vpop.xlane.xlu0 %3160
      %v3162 = vsel %vm2539, %v3155, -inf
      %3163 = vmax.xlane.f32.xlu0 %v3162
      %v3164 = vpop.xlane.xlu0 %3163
      %v3165 = vsub.f32 %v3153, %v3158
      %v3166 = vsub.f32 %v3154, %v3161
      %v3167 = vsub.f32 %v3155, %v3164
      %v3168 = vmul.f32 %v3165, 1.442695
      %v3169 = vpow.pop %v3168
      %v3170 = vmul.f32 %v3166, 1.442695
      %v3171 = vpow.pop %v3170
      %v3172 = vmul.f32 %v3167, 1.442695
      %v3173 = vpow.pop %v3172
      %v3174 = vsel %vm2539, %v3169, 0.0
      %3175 = vadd.xlane.f32.xlu0 %v3174
      %v3176 = vpop.xlane.xlu0 %3175
      %v3177 = vsel %vm2539, %v3171, 0.0
      %3178 = vadd.xlane.f32.xlu0 %v3177
      %v3179 = vpop.xlane.xlu0 %3178
      %v3180 = vsel %vm2539, %v3173, 0.0
      %3181 = vadd.xlane.f32.xlu0 %v3180
      %v3182 = vpop.xlane.xlu0 %3181
      %v3183 = vrcp.pop %v3176
      %v3184 = vmul.f32 %v3169, %v3183
      %v3185 = vrcp.pop %v3179
      %v3186 = vmul.f32 %v3171, %v3185
      %v3187 = vrcp.pop %v3182
      %v3188 = vmul.f32 %v3173, %v3187
      %v3189 = vsel %vm2539, %v3184, 0.0
      %v3190 = vsel %vm2539, %v3186, 0.0
      %v3191 = vsel %vm2539, %v3188, 0.0
      %3192 = vst [vmem:[%s807] sm:$0xff] %v3189
      %3193 = vst [vmem:[%s807 + $0x8] sm:$0xff] %v3190
      %3194 = vst [vmem:[%s807 + $0x10] sm:$0xff] %v3191
      %v3196 = vsel %vm2539, %v3184, 0
      %v3199 = vsel %vm2539, %v3186, 0
      %v3202 = vsel %vm2539, %v3188, 0
      %3204 = vmatprep.subr.mxu0 0.0
      %3205 = vmatpush1.msra.mxu0 %v2071
      %3206 = vmatprep.subr.mxu0 0.0
      %3207 = vmatpush1.msra.mxu0 %v2072
      %3208 = vmatprep.subr.mxu0 0.0
      %3209 = vmatpush1.msra.mxu0 %v2073
      %3210 = vmatprep.subr.mxu0 0.0
      %3211 = vmatpush1.msra.mxu0 0.0
      %3212 = vmatprep.subr.mxu0 0.0
      %3213 = vmatpush1.msra.mxu0 0.0
      %3214 = vmatprep.subr.mxu0 0.0
      %3215 = vmatpush1.msra.mxu0 0.0
      %3216 = vmatprep.subr.mxu0 0.0
      %3217 = vmatpush1.msra.mxu0 0.0
      %3218 = vmatprep.subr.mxu0 0.0
      %3219 = vmatpush1.msra.mxu0 0.0
      %3220 = vmatprep.subr.mxu0 0.0
      %3221 = vmatpush1.msra.mxu0 0.0
      %3222 = vmatprep.subr.mxu0 0.0
      %3223 = vmatpush1.msra.mxu0 0.0
      %3224 = vmatprep.subr.mxu0 0.0
      %3225 = vmatpush1.msra.mxu0 0.0
      %3226 = vmatprep.subr.mxu0 0.0
      %3227 = vmatpush1.msra.mxu0 0.0
      %3228 = vmatprep.subr.mxu0 0.0
      %3229 = vmatpush1.msra.mxu0 0.0
      %3230 = vmatprep.subr.mxu0 0.0
      %3231 = vmatpush1.msra.mxu0 0.0
      %3232 = vmatprep.subr.mxu0 0.0
      %3233 = vmatpush1.msra.mxu0 0.0
      %3234 = vmatprep.subr.mxu0 0.0
      %3235 = vmatpush1.msra.mxu0 0.0
      %3236 = vmatprep.subr.mxu0 0.0
      %3237 = vmatpush1.msra.mxu0 0.0
      %3238 = vmatprep.subr.mxu0 0.0
      %3239 = vmatpush1.msra.mxu0 0.0
      %3240 = vmatprep.subr.mxu0 0.0
      %3241 = vmatpush1.msra.mxu0 0.0
      %3242 = vmatprep.subr.mxu0 0.0
      %3243 = vmatpush1.msra.mxu0 0.0
      %3244 = vmatprep.subr.mxu0 0.0
      %3245 = vmatpush1.msra.mxu0 0.0
      %3246 = vmatprep.subr.mxu0 0.0
      %3247 = vmatpush1.msra.mxu0 0.0
      %3248 = vmatprep.subr.mxu0 0.0
      %3249 = vmatpush1.msra.mxu0 0.0
      %3250 = vmatprep.subr.mxu0 0.0
      %3251 = vmatpush1.msra.mxu0 0.0
      %3252 = vmatprep.subr.mxu0 0.0
      %3253 = vmatpush1.msra.mxu0 0.0
      %3254 = vmatprep.subr.mxu0 0.0
      %3255 = vmatpush1.msra.mxu0 0.0
      %3256 = vmatprep.subr.mxu0 0.0
      %3257 = vmatpush1.msra.mxu0 0.0
      %3258 = vmatprep.subr.mxu0 0.0
      %3259 = vmatpush1.msra.mxu0 0.0
      %3260 = vmatprep.subr.mxu0 0.0
      %3261 = vmatpush1.msra.mxu0 0.0
      %3262 = vmatprep.subr.mxu0 0.0
      %3263 = vmatpush1.msra.mxu0 0.0
      %3264 = vmatprep.subr.mxu0 0.0
      %3265 = vmatpush1.msra.mxu0 0.0
      %3266 = vmatprep.subr.mxu0 0.0
      %3267 = vmatpush1.msra.mxu0 0.0
      %3268 = vmatprep.mubr.f32.mxu0 0.0
      %3269 = vmatmul.mubr.f32.gmra.mrb[0].mxu0 %v3196
      %v3270 = vpop.f32.mrb[0].mxu0
      %v3271 = vadd.f32 0.0, %v3270
      %v3272 = vpop.f32.mrb[0].mxu0
      %3273 = vmatprep.mubr.f32.mxu0 0.0
      %3274 = vmatmul.mubr.f32.gmra.mrb[0].mxu0 %v3199
      %v3275 = vpop.f32.mrb[0].mxu0
      %v3276 = vadd.f32 0.0, %v3275
      %v3277 = vpop.f32.mrb[0].mxu0
      %3278 = vmatprep.mubr.f32.mxu0 0.0
      %3279 = vmatmul.mubr.f32.gmra.mrb[0].mxu0 %v3202
      %v3280 = vpop.f32.mrb[0].mxu0
      %v3281 = vadd.f32 0.0, %v3280
      %v3282 = vpop.f32.mrb[0].mxu0
      %3283 = vdwg.mxu0
      %vm3284 = vcmp.ge.f32.partialorder %v3271, 0.0
      %vm3285 = vcmp.ge.f32.partialorder %v3276, 0.0
      %vm3286 = vcmp.ge.f32.partialorder %v3281, 0.0
      %v3287 = vmul.f32 %v3271, 0.01
      %v3288 = vmul.f32 %v3276, 0.01
      %v3289 = vmul.f32 %v3281, 0.01
      %v3290 = vsel %vm3284, %v3271, %v3287
      %v3291 = vsel %vm3285, %v3276, %v3288
      %v3292 = vsel %vm3286, %v3281, %v3289
      %v3293 = vadd.f32 %v3290, %v928
      %v3294 = vadd.f32 %v3291, %v933
      %v3295 = vadd.f32 %v3292, %v938
      %v3296 = vadd.f32 %v3293, %v3294
      %v3297 = vadd.f32 %v3296, %v3295
      %3298 = vadd.xlane.f32.xlu0 %v3297
      %v3299 = vpop.xlane.xlu0 %3298
      %v3300 = vrot.slane %v3299, 4
      %v3301 = vadd.f32 %v3299, %v3300
      %v3302 = vrot.slane %v3301, 2
      %v3303 = vadd.f32 %v3301, %v3302
      %v3304 = vrot.slane %v3303, 1
      %v3305 = vadd.f32 %v3303, %v3304
      %s3306 = vtos %v3305
      %v3307 = vrcp.pop 3072.0
      %s3308 = vtos %v3307
      %s3309 = smul.f32 %s3306, %s3308
      %v3310 = vstv %s3309
      %v3311 = vsub.f32 %v3293, %v3310
      %v3312 = vsub.f32 %v3294, %v3310
      %v3313 = vsub.f32 %v3295, %v3310
      %v3314 = vmul.f32 %v3311, %v3311
      %v3315 = vmul.f32 %v3312, %v3312
      %v3316 = vmul.f32 %v3313, %v3313
      %v3317 = vadd.f32 %v3314, %v3315
      %v3318 = vadd.f32 %v3317, %v3316
      %3319 = vadd.xlane.f32.xlu0 %v3318
      %v3320 = vpop.xlane.xlu0 %3319
      %v3321 = vrot.slane %v3320, 4
      %v3322 = vadd.f32 %v3320, %v3321
      %v3323 = vrot.slane %v3322, 2
      %v3324 = vadd.f32 %v3322, %v3323
      %v3325 = vrot.slane %v3324, 1
      %v3326 = vadd.f32 %v3324, %v3325
      %s3327 = vtos %v3326
      %v3328 = vrcp.pop 3072.0
      %s3329 = vtos %v3328
      %s3330 = smul.f32 %s3327, %s3329
      %s3331 = sadd.f32 %s3330, 1e-05
      %v3332 = vstv %s3331
      %v3333 = vrsqrt.pop %v3332
      %s3334 = vtos %v3333
      %v3335 = vstv %s3334
      %v3336 = vmul.f32 %v3311, %v3335
      %v3337 = vmul.f32 %v3312, %v3335
      %v3338 = vmul.f32 %v3313, %v3335
      %v3339 = vld [vmem:[%s7] sm:$0xff]
      %v3340 = vld [vmem:[%s7 + $0x8] sm:$0xff]
      %v3341 = vld [vmem:[%s7 + $0x10] sm:$0xff]
      %v3342 = vmul.f32 %v3336, %v3339
      %v3343 = vmul.f32 %v3337, %v3340
      %v3344 = vmul.f32 %v3338, %v3341
      %v3345 = vld [vmem:[%s8] sm:$0xff]
      %v3346 = vld [vmem:[%s8 + $0x8] sm:$0xff]
      %v3347 = vld [vmem:[%s8 + $0x10] sm:$0xff]
      %v3348 = vadd.f32 %v3342, %v3345
      %v3349 = vadd.f32 %v3343, %v3346
      %v3350 = vadd.f32 %v3344, %v3347
      %3351 = vst [vmem:[%s801] sm:$0xff] %v3348
      %3352 = vst [vmem:[%s801 + $0x8] sm:$0xff] %v3349
      %3353 = vst [vmem:[%s801 + $0x10] sm:$0xff] %v3350
      %v3354 = vld [vmem:[%s11] sm:$0xff]
      %v3355 = vld [vmem:[%s11 + $0x8] sm:$0xff]
      %v3356 = vld [vmem:[%s11 + $0x10] sm:$0xff]
      %v3357 = vld [vmem:[%s11 + $0x18] sm:$0xff]
      %v3358 = vld [vmem:[%s11 + $0x20] sm:$0xff]
      %v3359 = vld [vmem:[%s11 + $0x28] sm:$0xff]
      %v3360 = vld [vmem:[%s11 + $0x30] sm:$0xff]
      %v3361 = vld [vmem:[%s11 + $0x38] sm:$0xff]
      %v3362 = vld [vmem:[%s11 + $0x40] sm:$0xff]
      %v3363 = vld [vmem:[%s11 + $0x48] sm:$0xff]
      %v3364 = vld [vmem:[%s11 + $0x50] sm:$0xff]
      %v3365 = vld [vmem:[%s11 + $0x58] sm:$0xff]
      %v3366 = vld [vmem:[%s11 + $0x60] sm:$0xff]
      %v3367 = vld [vmem:[%s11 + $0x68] sm:$0xff]
      %v3368 = vld [vmem:[%s11 + $0x70] sm:$0xff]
      %v3369 = vld [vmem:[%s11 + $0x78] sm:$0xff]
      %3370 = vmatprep.subr.mxu0 0.0
      %3371 = vmatpush1.msra.mxu0 %v3354
      %3372 = vmatprep.subr.mxu0 0.0
      %3373 = vmatpush1.msra.mxu0 %v3355
      %3374 = vmatprep.subr.mxu0 0.0
      %3375 = vmatpush1.msra.mxu0 %v3356
      %3376 = vmatprep.subr.mxu0 0.0
      %3377 = vmatpush1.msra.mxu0 %v3357
      %3378 = vmatprep.subr.mxu0 0.0
      %3379 = vmatpush1.msra.mxu0 %v3358
      %3380 = vmatprep.subr.mxu0 0.0
      %3381 = vmatpush1.msra.mxu0 %v3359
      %3382 = vmatprep.subr.mxu0 0.0
      %3383 = vmatpush1.msra.mxu0 %v3360
      %3384 = vmatprep.subr.mxu0 0.0
      %3385 = vmatpush1.msra.mxu0 %v3361
      %3386 = vmatprep.subr.mxu0 0.0
      %3387 = vmatpush1.msra.mxu0 %v3362
      %3388 = vmatprep.subr.mxu0 0.0
      %3389 = vmatpush1.msra.mxu0 %v3363
      %3390 = vmatprep.subr.mxu0 0.0
      %3391 = vmatpush1.msra.mxu0 %v3364
      %3392 = vmatprep.subr.mxu0 0.0
      %3393 = vmatpush1.msra.mxu0 %v3365
      %3394 = vmatprep.subr.mxu0 0.0
      %3395 = vmatpush1.msra.mxu0 %v3366
      %3396 = vmatprep.subr.mxu0 0.0
      %3397 = vmatpush1.msra.mxu0 %v3367
      %3398 = vmatprep.subr.mxu0 0.0
      %3399 = vmatpush1.msra.mxu0 %v3368
      %3400 = vmatprep.subr.mxu0 0.0
      %3401 = vmatpush1.msra.mxu0 %v3369
      %3402 = vmatprep.subr.mxu0 0.0
      %3403 = vmatpush1.msra.mxu0 0.0
      %3404 = vmatprep.subr.mxu0 0.0
      %3405 = vmatpush1.msra.mxu0 0.0
      %3406 = vmatprep.subr.mxu0 0.0
      %3407 = vmatpush1.msra.mxu0 0.0
      %3408 = vmatprep.subr.mxu0 0.0
      %3409 = vmatpush1.msra.mxu0 0.0
      %3410 = vmatprep.subr.mxu0 0.0
      %3411 = vmatpush1.msra.mxu0 0.0
      %3412 = vmatprep.subr.mxu0 0.0
      %3413 = vmatpush1.msra.mxu0 0.0
      %3414 = vmatprep.subr.mxu0 0.0
      %3415 = vmatpush1.msra.mxu0 0.0
      %3416 = vmatprep.subr.mxu0 0.0
      %3417 = vmatpush1.msra.mxu0 0.0
      %3418 = vmatprep.subr.mxu0 0.0
      %3419 = vmatpush1.msra.mxu0 0.0
      %3420 = vmatprep.subr.mxu0 0.0
      %3421 = vmatpush1.msra.mxu0 0.0
      %3422 = vmatprep.subr.mxu0 0.0
      %3423 = vmatpush1.msra.mxu0 0.0
      %3424 = vmatprep.subr.mxu0 0.0
      %3425 = vmatpush1.msra.mxu0 0.0
      %3426 = vmatprep.subr.mxu0 0.0
      %3427 = vmatpush1.msra.mxu0 0.0
      %3428 = vmatprep.subr.mxu0 0.0
      %3429 = vmatpush1.msra.mxu0 0.0
      %3430 = vmatprep.subr.mxu0 0.0
      %3431 = vmatpush1.msra.mxu0 0.0
      %3432 = vmatprep.subr.mxu0 0.0
      %3433 = vmatpush1.msra.mxu0 0.0
      %3434 = vmatprep.mubr.f32.mxu0 0.0
      %3435 = vmatmul.mubr.f32.gmra.mrb[0].mxu0 %v2074
      %v3436 = vpop.f32.mrb[0].mxu0
      %v3437 = vadd.f32 0.0, %v3436
      %v3438 = vpop.f32.mrb[0].mxu0
      %3439 = vmatprep.mubr.f32.mxu0 0.0
      %3440 = vmatmul.mubr.f32.gmra.mrb[0].mxu0 %v2075
      %v3441 = vpop.f32.mrb[0].mxu0
      %v3442 = vadd.f32 0.0, %v3441
      %v3443 = vpop.f32.mrb[0].mxu0
      %3444 = vmatprep.mubr.f32.mxu0 0.0
      %3445 = vmatmul.mubr.f32.gmra.mrb[0].mxu0 %v2076
      %v3446 = vpop.f32.mrb[0].mxu0
      %v3447 = vadd.f32 0.0, %v3446
      %v3448 = vpop.f32.mrb[0].mxu0
      %3449 = vdwg.mxu0
      %v3450 = vld [vmem:[%s12] sm:$0xff]
      %v3451 = vld [vmem:[%s12 + $0x8] sm:$0xff]
      %v3452 = vld [vmem:[%s12 + $0x10] sm:$0xff]
      %v3453 = vld [vmem:[%s12 + $0x18] sm:$0xff]
      %v3454 = vld [vmem:[%s12 + $0x20] sm:$0xff]
      %v3455 = vld [vmem:[%s12 + $0x28] sm:$0xff]
      %v3456 = vld [vmem:[%s12 + $0x30] sm:$0xff]
      %v3457 = vld [vmem:[%s12 + $0x38] sm:$0xff]
      %v3458 = vld [vmem:[%s12 + $0x40] sm:$0xff]
      %v3459 = vld [vmem:[%s12 + $0x48] sm:$0xff]
      %v3460 = vld [vmem:[%s12 + $0x50] sm:$0xff]
      %v3461 = vld [vmem:[%s12 + $0x58] sm:$0xff]
      %v3462 = vld [vmem:[%s12 + $0x60] sm:$0xff]
      %v3463 = vld [vmem:[%s12 + $0x68] sm:$0xff]
      %v3464 = vld [vmem:[%s12 + $0x70] sm:$0xff]
      %v3465 = vld [vmem:[%s12 + $0x78] sm:$0xff]
      %3466 = vmatprep.subr.mxu0 0.0
      %3467 = vmatpush1.msra.mxu0 %v3450
      %3468 = vmatprep.subr.mxu0 0.0
      %3469 = vmatpush1.msra.mxu0 %v3451
      %3470 = vmatprep.subr.mxu0 0.0
      %3471 = vmatpush1.msra.mxu0 %v3452
      %3472 = vmatprep.subr.mxu0 0.0
      %3473 = vmatpush1.msra.mxu0 %v3453
      %3474 = vmatprep.subr.mxu0 0.0
      %3475 = vmatpush1.msra.mxu0 %v3454
      %3476 = vmatprep.subr.mxu0 0.0
      %3477 = vmatpush1.msra.mxu0 %v3455
      %3478 = vmatprep.subr.mxu0 0.0
      %3479 = vmatpush1.msra.mxu0 %v3456
      %3480 = vmatprep.subr.mxu0 0.0
      %3481 = vmatpush1.msra.mxu0 %v3457
      %3482 = vmatprep.subr.mxu0 0.0
      %3483 = vmatpush1.msra.mxu0 %v3458
      %3484 = vmatprep.subr.mxu0 0.0
      %3485 = vmatpush1.msra.mxu0 %v3459
      %3486 = vmatprep.subr.mxu0 0.0
      %3487 = vmatpush1.msra.mxu0 %v3460
      %3488 = vmatprep.subr.mxu0 0.0
      %3489 = vmatpush1.msra.mxu0 %v3461
      %3490 = vmatprep.subr.mxu0 0.0
      %3491 = vmatpush1.msra.mxu0 %v3462
      %3492 = vmatprep.subr.mxu0 0.0
      %3493 = vmatpush1.msra.mxu0 %v3463
      %3494 = vmatprep.subr.mxu0 0.0
      %3495 = vmatpush1.msra.mxu0 %v3464
      %3496 = vmatprep.subr.mxu0 0.0
      %3497 = vmatpush1.msra.mxu0 %v3465
      %3498 = vmatprep.subr.mxu0 0.0
      %3499 = vmatpush1.msra.mxu0 0.0
      %3500 = vmatprep.subr.mxu0 0.0
      %3501 = vmatpush1.msra.mxu0 0.0
      %3502 = vmatprep.subr.mxu0 0.0
      %3503 = vmatpush1.msra.mxu0 0.0
      %3504 = vmatprep.subr.mxu0 0.0
      %3505 = vmatpush1.msra.mxu0 0.0
      %3506 = vmatprep.subr.mxu0 0.0
      %3507 = vmatpush1.msra.mxu0 0.0
      %3508 = vmatprep.subr.mxu0 0.0
      %3509 = vmatpush1.msra.mxu0 0.0
      %3510 = vmatprep.subr.mxu0 0.0
      %3511 = vmatpush1.msra.mxu0 0.0
      %3512 = vmatprep.subr.mxu0 0.0
      %3513 = vmatpush1.msra.mxu0 0.0
      %3514 = vmatprep.subr.mxu0 0.0
      %3515 = vmatpush1.msra.mxu0 0.0
      %3516 = vmatprep.subr.mxu0 0.0
      %3517 = vmatpush1.msra.mxu0 0.0
      %3518 = vmatprep.subr.mxu0 0.0
      %3519 = vmatpush1.msra.mxu0 0.0
      %3520 = vmatprep.subr.mxu0 0.0
      %3521 = vmatpush1.msra.mxu0 0.0
      %3522 = vmatprep.subr.mxu0 0.0
      %3523 = vmatpush1.msra.mxu0 0.0
      %3524 = vmatprep.subr.mxu0 0.0
      %3525 = vmatpush1.msra.mxu0 0.0
      %3526 = vmatprep.subr.mxu0 0.0
      %3527 = vmatpush1.msra.mxu0 0.0
      %3528 = vmatprep.subr.mxu0 0.0
      %3529 = vmatpush1.msra.mxu0 0.0
      %3530 = vmatprep.mubr.f32.mxu0 0.0
      %3531 = vmatmul.mubr.f32.gmra.mrb[0].mxu0 %v2074
      %v3532 = vpop.f32.mrb[0].mxu0
      %v3533 = vadd.f32 0.0, %v3532
      %v3534 = vpop.f32.mrb[0].mxu0
      %3535 = vmatprep.mubr.f32.mxu0 0.0
      %3536 = vmatmul.mubr.f32.gmra.mrb[0].mxu0 %v2075
      %v3537 = vpop.f32.mrb[0].mxu0
      %v3538 = vadd.f32 0.0, %v3537
      %v3539 = vpop.f32.mrb[0].mxu0
      %3540 = vmatprep.mubr.f32.mxu0 0.0
      %3541 = vmatmul.mubr.f32.gmra.mrb[0].mxu0 %v2076
      %v3542 = vpop.f32.mrb[0].mxu0
      %v3543 = vadd.f32 0.0, %v3542
      %v3544 = vpop.f32.mrb[0].mxu0
      %3545 = vdwg.mxu0
      %v3546 = vld [vmem:[%s13] sm:$0xff]
      %v3547 = vld [vmem:[%s13 + $0x8] sm:$0xff]
      %v3549 = vsel %vm2271, %v3437, 0
      %v3552 = vsel %vm2271, %v3442, 0
      %v3555 = vsel %vm2271, %v3447, 0
      %3557 = vmatprep.subr.mxu0 0.0
      %3558 = vmatpush1.msra.mxu0 %v3546
      %3559 = vmatprep.subr.mxu0 0.0
      %3560 = vmatpush1.msra.mxu0 %v3547
      %3561 = vmatprep.subr.mxu0 0.0
      %3562 = vmatpush1.msra.mxu0 0.0
      %3563 = vmatprep.subr.mxu0 0.0
      %3564 = vmatpush1.msra.mxu0 0.0
      %3565 = vmatprep.subr.mxu0 0.0
      %3566 = vmatpush1.msra.mxu0 0.0
      %3567 = vmatprep.subr.mxu0 0.0
      %3568 = vmatpush1.msra.mxu0 0.0
      %3569 = vmatprep.subr.mxu0 0.0
      %3570 = vmatpush1.msra.mxu0 0.0
      %3571 = vmatprep.subr.mxu0 0.0
      %3572 = vmatpush1.msra.mxu0 0.0
      %3573 = vmatprep.subr.mxu0 0.0
      %3574 = vmatpush1.msra.mxu0 0.0
      %3575 = vmatprep.subr.mxu0 0.0
      %3576 = vmatpush1.msra.mxu0 0.0
      %3577 = vmatprep.subr.mxu0 0.0
      %3578 = vmatpush1.msra.mxu0 0.0
      %3579 = vmatprep.subr.mxu0 0.0
      %3580 = vmatpush1.msra.mxu0 0.0
      %3581 = vmatprep.subr.mxu0 0.0
      %3582 = vmatpush1.msra.mxu0 0.0
      %3583 = vmatprep.subr.mxu0 0.0
      %3584 = vmatpush1.msra.mxu0 0.0
      %3585 = vmatprep.subr.mxu0 0.0
      %3586 = vmatpush1.msra.mxu0 0.0
      %3587 = vmatprep.subr.mxu0 0.0
      %3588 = vmatpush1.msra.mxu0 0.0
      %3589 = vmatprep.subr.mxu0 0.0
      %3590 = vmatpush1.msra.mxu0 0.0
      %3591 = vmatprep.subr.mxu0 0.0
      %3592 = vmatpush1.msra.mxu0 0.0
      %3593 = vmatprep.subr.mxu0 0.0
      %3594 = vmatpush1.msra.mxu0 0.0
      %3595 = vmatprep.subr.mxu0 0.0
      %3596 = vmatpush1.msra.mxu0 0.0
      %3597 = vmatprep.subr.mxu0 0.0
      %3598 = vmatpush1.msra.mxu0 0.0
      %3599 = vmatprep.subr.mxu0 0.0
      %3600 = vmatpush1.msra.mxu0 0.0
      %3601 = vmatprep.subr.mxu0 0.0
      %3602 = vmatpush1.msra.mxu0 0.0
      %3603 = vmatprep.subr.mxu0 0.0
      %3604 = vmatpush1.msra.mxu0 0.0
      %3605 = vmatprep.subr.mxu0 0.0
      %3606 = vmatpush1.msra.mxu0 0.0
      %3607 = vmatprep.subr.mxu0 0.0
      %3608 = vmatpush1.msra.mxu0 0.0
      %3609 = vmatprep.subr.mxu0 0.0
      %3610 = vmatpush1.msra.mxu0 0.0
      %3611 = vmatprep.subr.mxu0 0.0
      %3612 = vmatpush1.msra.mxu0 0.0
      %3613 = vmatprep.subr.mxu0 0.0
      %3614 = vmatpush1.msra.mxu0 0.0
      %3615 = vmatprep.subr.mxu0 0.0
      %3616 = vmatpush1.msra.mxu0 0.0
      %3617 = vmatprep.subr.mxu0 0.0
      %3618 = vmatpush1.msra.mxu0 0.0
      %3619 = vmatprep.subr.mxu0 0.0
      %3620 = vmatpush1.msra.mxu0 0.0
      %3621 = vmatprep.mubr.f32.mxu0 0.0
      %3622 = vmatmul.mubr.f32.gmra.mrb[0].mxu0 %v3549
      %v3623 = vpop.f32.mrb[0].mxu0
      %v3624 = vadd.f32 0.0, %v3623
      %v3625 = vpop.f32.mrb[0].mxu0
      %3626 = vmatprep.mubr.f32.mxu0 0.0
      %3627 = vmatmul.mubr.f32.gmra.mrb[0].mxu0 %v3552
      %v3628 = vpop.f32.mrb[0].mxu0
      %v3629 = vadd.f32 0.0, %v3628
      %v3630 = vpop.f32.mrb[0].mxu0
      %3631 = vmatprep.mubr.f32.mxu0 0.0
      %3632 = vmatmul.mubr.f32.gmra.mrb[0].mxu0 %v3555
      %v3633 = vpop.f32.mrb[0].mxu0
      %v3634 = vadd.f32 0.0, %v3633
      %v3635 = vpop.f32.mrb[0].mxu0
      %3636 = vdwg.mxu0
      %v3637 = vld [vmem:[%s14] sm:$0xff]
      %v3638 = vld [vmem:[%s14 + $0x8] sm:$0xff]
      %3639 = vmatprep.subr.mxu0 0.0
      %3640 = vmatpush1.msra.mxu0 %v3637
      %3641 = vmatprep.subr.mxu0 0.0
      %3642 = vmatpush1.msra.mxu0 %v3638
      %3643 = vmatprep.subr.mxu0 0.0
      %3644 = vmatpush1.msra.mxu0 0.0
      %3645 = vmatprep.subr.mxu0 0.0
      %3646 = vmatpush1.msra.mxu0 0.0
      %3647 = vmatprep.subr.mxu0 0.0
      %3648 = vmatpush1.msra.mxu0 0.0
      %3649 = vmatprep.subr.mxu0 0.0
      %3650 = vmatpush1.msra.mxu0 0.0
      %3651 = vmatprep.subr.mxu0 0.0
      %3652 = vmatpush1.msra.mxu0 0.0
      %3653 = vmatprep.subr.mxu0 0.0
      %3654 = vmatpush1.msra.mxu0 0.0
      %3655 = vmatprep.subr.mxu0 0.0
      %3656 = vmatpush1.msra.mxu0 0.0
      %3657 = vmatprep.subr.mxu0 0.0
      %3658 = vmatpush1.msra.mxu0 0.0
      %3659 = vmatprep.subr.mxu0 0.0
      %3660 = vmatpush1.msra.mxu0 0.0
      %3661 = vmatprep.subr.mxu0 0.0
      %3662 = vmatpush1.msra.mxu0 0.0
      %3663 = vmatprep.subr.mxu0 0.0
      %3664 = vmatpush1.msra.mxu0 0.0
      %3665 = vmatprep.subr.mxu0 0.0
      %3666 = vmatpush1.msra.mxu0 0.0
      %3667 = vmatprep.subr.mxu0 0.0
      %3668 = vmatpush1.msra.mxu0 0.0
      %3669 = vmatprep.subr.mxu0 0.0
      %3670 = vmatpush1.msra.mxu0 0.0
      %3671 = vmatprep.subr.mxu0 0.0
      %3672 = vmatpush1.msra.mxu0 0.0
      %3673 = vmatprep.subr.mxu0 0.0
      %3674 = vmatpush1.msra.mxu0 0.0
      %3675 = vmatprep.subr.mxu0 0.0
      %3676 = vmatpush1.msra.mxu0 0.0
      %3677 = vmatprep.subr.mxu0 0.0
      %3678 = vmatpush1.msra.mxu0 0.0
      %3679 = vmatprep.subr.mxu0 0.0
      %3680 = vmatpush1.msra.mxu0 0.0
      %3681 = vmatprep.subr.mxu0 0.0
      %3682 = vmatpush1.msra.mxu0 0.0
      %3683 = vmatprep.subr.mxu0 0.0
      %3684 = vmatpush1.msra.mxu0 0.0
      %3685 = vmatprep.subr.mxu0 0.0
      %3686 = vmatpush1.msra.mxu0 0.0
      %3687 = vmatprep.subr.mxu0 0.0
      %3688 = vmatpush1.msra.mxu0 0.0
      %3689 = vmatprep.subr.mxu0 0.0
      %3690 = vmatpush1.msra.mxu0 0.0
      %3691 = vmatprep.subr.mxu0 0.0
      %3692 = vmatpush1.msra.mxu0 0.0
      %3693 = vmatprep.subr.mxu0 0.0
      %3694 = vmatpush1.msra.mxu0 0.0
      %3695 = vmatprep.subr.mxu0 0.0
      %3696 = vmatpush1.msra.mxu0 0.0
      %3697 = vmatprep.subr.mxu0 0.0
      %3698 = vmatpush1.msra.mxu0 0.0
      %3699 = vmatprep.subr.mxu0 0.0
      %3700 = vmatpush1.msra.mxu0 0.0
      %3701 = vmatprep.subr.mxu0 0.0
      %3702 = vmatpush1.msra.mxu0 0.0
      %3703 = vmatprep.mubr.f32.mxu0 0.0
      %3704 = vmatmul.mubr.f32.gmra.mrb[0].mxu0 %v3549
      %v3705 = vpop.f32.mrb[0].mxu0
      %v3706 = vadd.f32 0.0, %v3705
      %v3707 = vpop.f32.mrb[0].mxu0
      %3708 = vmatprep.mubr.f32.mxu0 0.0
      %3709 = vmatmul.mubr.f32.gmra.mrb[0].mxu0 %v3552
      %v3710 = vpop.f32.mrb[0].mxu0
      %v3711 = vadd.f32 0.0, %v3710
      %v3712 = vpop.f32.mrb[0].mxu0
      %3713 = vmatprep.mubr.f32.mxu0 0.0
      %3714 = vmatmul.mubr.f32.gmra.mrb[0].mxu0 %v3555
      %v3715 = vpop.f32.mrb[0].mxu0
      %v3716 = vadd.f32 0.0, %v3715
      %v3717 = vpop.f32.mrb[0].mxu0
      %3718 = vdwg.mxu0
      %v3719 = vld [vmem:[%s17] sm:$0xff]
      %v3720 = vld [vmem:[%s17 + $0x8] sm:$0xff]
      %v3721 = vld [vmem:[%s17 + $0x10] sm:$0xff]
      %v3723 = vsel %vm2446, %v3719, 0
      %v3726 = vsel %vm2446, %v3720, 0
      %v3729 = vsel %vm2446, %v3721, 0
      %3731 = vmatprep.subr.mxu0 0.0
      %3732 = vmatpush1.msra.mxu0 %v3624
      %3733 = vmatprep.subr.mxu0 0.0
      %3734 = vmatpush1.msra.mxu0 %v3629
      %3735 = vmatprep.subr.mxu0 0.0
      %3736 = vmatpush1.msra.mxu0 %v3634
      %3737 = vmatprep.subr.mxu0 0.0
      %3738 = vmatpush1.msra.mxu0 %v3706
      %3739 = vmatprep.subr.mxu0 0.0
      %3740 = vmatpush1.msra.mxu0 %v3711
      %3741 = vmatprep.subr.mxu0 0.0
      %3742 = vmatpush1.msra.mxu0 %v3716
      %3743 = vmatprep.subr.mxu0 0.0
      %3744 = vmatpush1.msra.mxu0 0.0
      %3745 = vmatprep.subr.mxu0 0.0
      %3746 = vmatpush1.msra.mxu0 0.0
      %3747 = vmatprep.subr.mxu0 0.0
      %3748 = vmatpush1.msra.mxu0 0.0
      %3749 = vmatprep.subr.mxu0 0.0
      %3750 = vmatpush1.msra.mxu0 0.0
      %3751 = vmatprep.subr.mxu0 0.0
      %3752 = vmatpush1.msra.mxu0 0.0
      %3753 = vmatprep.subr.mxu0 0.0
      %3754 = vmatpush1.msra.mxu0 0.0
      %3755 = vmatprep.subr.mxu0 0.0
      %3756 = vmatpush1.msra.mxu0 0.0
      %3757 = vmatprep.subr.mxu0 0.0
      %3758 = vmatpush1.msra.mxu0 0.0
      %3759 = vmatprep.subr.mxu0 0.0
      %3760 = vmatpush1.msra.mxu0 0.0
      %3761 = vmatprep.subr.mxu0 0.0
      %3762 = vmatpush1.msra.mxu0 0.0
      %3763 = vmatprep.subr.mxu0 0.0
      %3764 = vmatpush1.msra.mxu0 0.0
      %3765 = vmatprep.subr.mxu0 0.0
      %3766 = vmatpush1.msra.mxu0 0.0
      %3767 = vmatprep.subr.mxu0 0.0
      %3768 = vmatpush1.msra.mxu0 0.0
      %3769 = vmatprep.subr.mxu0 0.0
      %3770 = vmatpush1.msra.mxu0 0.0
      %3771 = vmatprep.subr.mxu0 0.0
      %3772 = vmatpush1.msra.mxu0 0.0
      %3773 = vmatprep.subr.mxu0 0.0
      %3774 = vmatpush1.msra.mxu0 0.0
      %3775 = vmatprep.subr.mxu0 0.0
      %3776 = vmatpush1.msra.mxu0 0.0
      %3777 = vmatprep.subr.mxu0 0.0
      %3778 = vmatpush1.msra.mxu0 0.0
      %3779 = vmatprep.subr.mxu0 0.0
      %3780 = vmatpush1.msra.mxu0 0.0
      %3781 = vmatprep.subr.mxu0 0.0
      %3782 = vmatpush1.msra.mxu0 0.0
      %3783 = vmatprep.subr.mxu0 0.0
      %3784 = vmatpush1.msra.mxu0 0.0
      %3785 = vmatprep.subr.mxu0 0.0
      %3786 = vmatpush1.msra.mxu0 0.0
      %3787 = vmatprep.subr.mxu0 0.0
      %3788 = vmatpush1.msra.mxu0 0.0
      %3789 = vmatprep.subr.mxu0 0.0
      %3790 = vmatpush1.msra.mxu0 0.0
      %3791 = vmatprep.subr.mxu0 0.0
      %3792 = vmatpush1.msra.mxu0 0.0
      %3793 = vmatprep.subr.mxu0 0.0
      %3794 = vmatpush1.msra.mxu0 0.0
      %3795 = vmatprep.mubr.f32.mxu0 0.0
      %3796 = vmatmul.mubr.f32.gmra.mrb[0].mxu0 %v3723
      %v3797 = vpop.f32.mrb[0].mxu0
      %v3798 = vadd.f32 0.0, %v3797
      %v3799 = vpop.f32.mrb[0].mxu0
      %3800 = vmatprep.mubr.f32.mxu0 0.0
      %3801 = vmatmul.mubr.f32.gmra.mrb[0].mxu0 %v3726
      %v3802 = vpop.f32.mrb[0].mxu0
      %v3803 = vadd.f32 0.0, %v3802
      %v3804 = vpop.f32.mrb[0].mxu0
      %3805 = vmatprep.mubr.f32.mxu0 0.0
      %3806 = vmatmul.mubr.f32.gmra.mrb[0].mxu0 %v3729
      %v3807 = vpop.f32.mrb[0].mxu0
      %v3808 = vadd.f32 0.0, %v3807
      %v3809 = vpop.f32.mrb[0].mxu0
      %3810 = vdwg.mxu0
      %v3811 = vld [vmem:[%s15] sm:$0xff]
      %v3812 = vld [vmem:[%s15 + $0x8] sm:$0xff]
      %v3813 = vld [vmem:[%s15 + $0x10] sm:$0xff]
      %v3815 = vsel %vm2539, %v3811, 0
      %v3818 = vsel %vm2539, %v3812, 0
      %v3821 = vsel %vm2539, %v3813, 0
      %3823 = vmatprep.subr.mxu0 0.0
      %3824 = vmatpush1.msra.mxu0 %v3533
      %3825 = vmatprep.subr.mxu0 0.0
      %3826 = vmatpush1.msra.mxu0 %v3538
      %3827 = vmatprep.subr.mxu0 0.0
      %3828 = vmatpush1.msra.mxu0 %v3543
      %3829 = vmatprep.subr.mxu0 0.0
      %3830 = vmatpush1.msra.mxu0 0.0
      %3831 = vmatprep.subr.mxu0 0.0
      %3832 = vmatpush1.msra.mxu0 0.0
      %3833 = vmatprep.subr.mxu0 0.0
      %3834 = vmatpush1.msra.mxu0 0.0
      %3835 = vmatprep.subr.mxu0 0.0
      %3836 = vmatpush1.msra.mxu0 0.0
      %3837 = vmatprep.subr.mxu0 0.0
      %3838 = vmatpush1.msra.mxu0 0.0
      %3839 = vmatprep.subr.mxu0 0.0
      %3840 = vmatpush1.msra.mxu0 0.0
      %3841 = vmatprep.subr.mxu0 0.0
      %3842 = vmatpush1.msra.mxu0 0.0
      %3843 = vmatprep.subr.mxu0 0.0
      %3844 = vmatpush1.msra.mxu0 0.0
      %3845 = vmatprep.subr.mxu0 0.0
      %3846 = vmatpush1.msra.mxu0 0.0
      %3847 = vmatprep.subr.mxu0 0.0
      %3848 = vmatpush1.msra.mxu0 0.0
      %3849 = vmatprep.subr.mxu0 0.0
      %3850 = vmatpush1.msra.mxu0 0.0
      %3851 = vmatprep.subr.mxu0 0.0
      %3852 = vmatpush1.msra.mxu0 0.0
      %3853 = vmatprep.subr.mxu0 0.0
      %3854 = vmatpush1.msra.mxu0 0.0
      %3855 = vmatprep.subr.mxu0 0.0
      %3856 = vmatpush1.msra.mxu0 0.0
      %3857 = vmatprep.subr.mxu0 0.0
      %3858 = vmatpush1.msra.mxu0 0.0
      %3859 = vmatprep.subr.mxu0 0.0
      %3860 = vmatpush1.msra.mxu0 0.0
      %3861 = vmatprep.subr.mxu0 0.0
      %3862 = vmatpush1.msra.mxu0 0.0
      %3863 = vmatprep.subr.mxu0 0.0
      %3864 = vmatpush1.msra.mxu0 0.0
      %3865 = vmatprep.subr.mxu0 0.0
      %3866 = vmatpush1.msra.mxu0 0.0
      %3867 = vmatprep.subr.mxu0 0.0
      %3868 = vmatpush1.msra.mxu0 0.0
      %3869 = vmatprep.subr.mxu0 0.0
      %3870 = vmatpush1.msra.mxu0 0.0
      %3871 = vmatprep.subr.mxu0 0.0
      %3872 = vmatpush1.msra.mxu0 0.0
      %3873 = vmatprep.subr.mxu0 0.0
      %3874 = vmatpush1.msra.mxu0 0.0
      %3875 = vmatprep.subr.mxu0 0.0
      %3876 = vmatpush1.msra.mxu0 0.0
      %3877 = vmatprep.subr.mxu0 0.0
      %3878 = vmatpush1.msra.mxu0 0.0
      %3879 = vmatprep.subr.mxu0 0.0
      %3880 = vmatpush1.msra.mxu0 0.0
      %3881 = vmatprep.subr.mxu0 0.0
      %3882 = vmatpush1.msra.mxu0 0.0
      %3883 = vmatprep.subr.mxu0 0.0
      %3884 = vmatpush1.msra.mxu0 0.0
      %3885 = vmatprep.subr.mxu0 0.0
      %3886 = vmatpush1.msra.mxu0 0.0
      %3887 = vmatprep.mubr.f32.mxu0 0.0
      %3888 = vmatmul.mubr.f32.gmra.mrb[0].mxu0 %v3815
      %v3889 = vpop.f32.mrb[0].mxu0
      %v3890 = vadd.f32 0.0, %v3889
      %v3891 = vpop.f32.mrb[0].mxu0
      %3892 = vmatprep.mubr.f32.mxu0 0.0
      %3893 = vmatmul.mubr.f32.gmra.mrb[0].mxu0 %v3818
      %v3894 = vpop.f32.mrb[0].mxu0
      %v3895 = vadd.f32 0.0, %v3894
      %v3896 = vpop.f32.mrb[0].mxu0
      %3897 = vmatprep.mubr.f32.mxu0 0.0
      %3898 = vmatmul.mubr.f32.gmra.mrb[0].mxu0 %v3821
      %v3899 = vpop.f32.mrb[0].mxu0
      %v3900 = vadd.f32 0.0, %v3899
      %v3901 = vpop.f32.mrb[0].mxu0
      %3902 = vdwg.mxu0
      %v3903 = vld [vmem:[%s16] sm:$0xff]
      %v3904 = vld [vmem:[%s16 + $0x8] sm:$0xff]
      %v3905 = vld [vmem:[%s16 + $0x10] sm:$0xff]
      %v3907 = vsel %vm2539, %v3903, 0
      %v3910 = vsel %vm2539, %v3904, 0
      %v3913 = vsel %vm2539, %v3905, 0
      %3915 = vmatprep.subr.mxu0 0.0
      %3916 = vmatpush1.msra.mxu0 %v3533
      %3917 = vmatprep.subr.mxu0 0.0
      %3918 = vmatpush1.msra.mxu0 %v3538
      %3919 = vmatprep.subr.mxu0 0.0
      %3920 = vmatpush1.msra.mxu0 %v3543
      %3921 = vmatprep.subr.mxu0 0.0
      %3922 = vmatpush1.msra.mxu0 0.0
      %3923 = vmatprep.subr.mxu0 0.0
      %3924 = vmatpush1.msra.mxu0 0.0
      %3925 = vmatprep.subr.mxu0 0.0
      %3926 = vmatpush1.msra.mxu0 0.0
      %3927 = vmatprep.subr.mxu0 0.0
      %3928 = vmatpush1.msra.mxu0 0.0
      %3929 = vmatprep.subr.mxu0 0.0
      %3930 = vmatpush1.msra.mxu0 0.0
      %3931 = vmatprep.subr.mxu0 0.0
      %3932 = vmatpush1.msra.mxu0 0.0
      %3933 = vmatprep.subr.mxu0 0.0
      %3934 = vmatpush1.msra.mxu0 0.0
      %3935 = vmatprep.subr.mxu0 0.0
      %3936 = vmatpush1.msra.mxu0 0.0
      %3937 = vmatprep.subr.mxu0 0.0
      %3938 = vmatpush1.msra.mxu0 0.0
      %3939 = vmatprep.subr.mxu0 0.0
      %3940 = vmatpush1.msra.mxu0 0.0
      %3941 = vmatprep.subr.mxu0 0.0
      %3942 = vmatpush1.msra.mxu0 0.0
      %3943 = vmatprep.subr.mxu0 0.0
      %3944 = vmatpush1.msra.mxu0 0.0
      %3945 = vmatprep.subr.mxu0 0.0
      %3946 = vmatpush1.msra.mxu0 0.0
      %3947 = vmatprep.subr.mxu0 0.0
      %3948 = vmatpush1.msra.mxu0 0.0
      %3949 = vmatprep.subr.mxu0 0.0
      %3950 = vmatpush1.msra.mxu0 0.0
      %3951 = vmatprep.subr.mxu0 0.0
      %3952 = vmatpush1.msra.mxu0 0.0
      %3953 = vmatprep.subr.mxu0 0.0
      %3954 = vmatpush1.msra.mxu0 0.0
      %3955 = vmatprep.subr.mxu0 0.0
      %3956 = vmatpush1.msra.mxu0 0.0
      %3957 = vmatprep.subr.mxu0 0.0
      %3958 = vmatpush1.msra.mxu0 0.0
      %3959 = vmatprep.subr.mxu0 0.0
      %3960 = vmatpush1.msra.mxu0 0.0
      %3961 = vmatprep.subr.mxu0 0.0
      %3962 = vmatpush1.msra.mxu0 0.0
      %3963 = vmatprep.subr.mxu0 0.0
      %3964 = vmatpush1.msra.mxu0 0.0
      %3965 = vmatprep.subr.mxu0 0.0
      %3966 = vmatpush1.msra.mxu0 0.0
      %3967 = vmatprep.subr.mxu0 0.0
      %3968 = vmatpush1.msra.mxu0 0.0
      %3969 = vmatprep.subr.mxu0 0.0
      %3970 = vmatpush1.msra.mxu0 0.0
      %3971 = vmatprep.subr.mxu0 0.0
      %3972 = vmatpush1.msra.mxu0 0.0
      %3973 = vmatprep.subr.mxu0 0.0
      %3974 = vmatpush1.msra.mxu0 0.0
      %3975 = vmatprep.subr.mxu0 0.0
      %3976 = vmatpush1.msra.mxu0 0.0
      %3977 = vmatprep.subr.mxu0 0.0
      %3978 = vmatpush1.msra.mxu0 0.0
      %3979 = vmatprep.mubr.f32.mxu0 0.0
      %3980 = vmatmul.mubr.f32.gmra.mrb[0].mxu0 %v3907
      %v3981 = vpop.f32.mrb[0].mxu0
      %v3982 = vadd.f32 0.0, %v3981
      %v3983 = vpop.f32.mrb[0].mxu0
      %3984 = vmatprep.mubr.f32.mxu0 0.0
      %3985 = vmatmul.mubr.f32.gmra.mrb[0].mxu0 %v3910
      %v3986 = vpop.f32.mrb[0].mxu0
      %v3987 = vadd.f32 0.0, %v3986
      %v3988 = vpop.f32.mrb[0].mxu0
      %3989 = vmatprep.mubr.f32.mxu0 0.0
      %3990 = vmatmul.mubr.f32.gmra.mrb[0].mxu0 %v3913
      %v3991 = vpop.f32.mrb[0].mxu0
      %v3992 = vadd.f32 0.0, %v3991
      %v3993 = vpop.f32.mrb[0].mxu0
      %3994 = vdwg.mxu0
      %3998 = vrot.lane.b32.xlu0 %v3982, 8
      %v3999 = vpop.permute.xlu0 %3998
      %4000 = vrot.lane.b32.xlu0 %v3987, 8
      %v4001 = vpop.permute.xlu0 %4000
      %4002 = vrot.lane.b32.xlu0 %v3992, 8
      %v4003 = vpop.permute.xlu0 %4002
      %v4007 = vsel %vm2733, %v3890, %v3999
      %v4008 = vsel %vm2733, %v3895, %v4001
      %v4009 = vsel %vm2733, %v3900, %v4003
      %v4010 = vld [vmem:[%s18] sm:$0xff]
      %v4011 = vld [vmem:[%s18 + $0x8] sm:$0xff]
      %v4013 = vsel %vm2271, %v4007, 0
      %v4016 = vsel %vm2271, %v4008, 0
      %v4019 = vsel %vm2271, %v4009, 0
      %4021 = vmatprep.subr.mxu0 0.0
      %4022 = vmatpush1.msra.mxu0 %v4010
      %4023 = vmatprep.subr.mxu0 0.0
      %4024 = vmatpush1.msra.mxu0 %v4011
      %4025 = vmatprep.subr.mxu0 0.0
      %4026 = vmatpush1.msra.mxu0 0.0
      %4027 = vmatprep.subr.mxu0 0.0
      %4028 = vmatpush1.msra.mxu0 0.0
      %4029 = vmatprep.subr.mxu0 0.0
      %4030 = vmatpush1.msra.mxu0 0.0
      %4031 = vmatprep.subr.mxu0 0.0
      %4032 = vmatpush1.msra.mxu0 0.0
      %4033 = vmatprep.subr.mxu0 0.0
      %4034 = vmatpush1.msra.mxu0 0.0
      %4035 = vmatprep.subr.mxu0 0.0
      %4036 = vmatpush1.msra.mxu0 0.0
      %4037 = vmatprep.subr.mxu0 0.0
      %4038 = vmatpush1.msra.mxu0 0.0
      %4039 = vmatprep.subr.mxu0 0.0
      %4040 = vmatpush1.msra.mxu0 0.0
      %4041 = vmatprep.subr.mxu0 0.0
      %4042 = vmatpush1.msra.mxu0 0.0
      %4043 = vmatprep.subr.mxu0 0.0
      %4044 = vmatpush1.msra.mxu0 0.0
      %4045 = vmatprep.subr.mxu0 0.0
      %4046 = vmatpush1.msra.mxu0 0.0
      %4047 = vmatprep.subr.mxu0 0.0
      %4048 = vmatpush1.msra.mxu0 0.0
      %4049 = vmatprep.subr.mxu0 0.0
      %4050 = vmatpush1.msra.mxu0 0.0
      %4051 = vmatprep.subr.mxu0 0.0
      %4052 = vmatpush1.msra.mxu0 0.0
      %4053 = vmatprep.subr.mxu0 0.0
      %4054 = vmatpush1.msra.mxu0 0.0
      %4055 = vmatprep.subr.mxu0 0.0
      %4056 = vmatpush1.msra.mxu0 0.0
      %4057 = vmatprep.subr.mxu0 0.0
      %4058 = vmatpush1.msra.mxu0 0.0
      %4059 = vmatprep.subr.mxu0 0.0
      %4060 = vmatpush1.msra.mxu0 0.0
      %4061 = vmatprep.subr.mxu0 0.0
      %4062 = vmatpush1.msra.mxu0 0.0
      %4063 = vmatprep.subr.mxu0 0.0
      %4064 = vmatpush1.msra.mxu0 0.0
      %4065 = vmatprep.subr.mxu0 0.0
      %4066 = vmatpush1.msra.mxu0 0.0
      %4067 = vmatprep.subr.mxu0 0.0
      %4068 = vmatpush1.msra.mxu0 0.0
      %4069 = vmatprep.subr.mxu0 0.0
      %4070 = vmatpush1.msra.mxu0 0.0
      %4071 = vmatprep.subr.mxu0 0.0
      %4072 = vmatpush1.msra.mxu0 0.0
      %4073 = vmatprep.subr.mxu0 0.0
      %4074 = vmatpush1.msra.mxu0 0.0
      %4075 = vmatprep.subr.mxu0 0.0
      %4076 = vmatpush1.msra.mxu0 0.0
      %4077 = vmatprep.subr.mxu0 0.0
      %4078 = vmatpush1.msra.mxu0 0.0
      %4079 = vmatprep.subr.mxu0 0.0
      %4080 = vmatpush1.msra.mxu0 0.0
      %4081 = vmatprep.subr.mxu0 0.0
      %4082 = vmatpush1.msra.mxu0 0.0
      %4083 = vmatprep.subr.mxu0 0.0
      %4084 = vmatpush1.msra.mxu0 0.0
      %4085 = vmatprep.mubr.f32.mxu0 0.0
      %4086 = vmatmul.mubr.f32.gmra.mrb[0].mxu0 %v4013
      %v4087 = vpop.f32.mrb[0].mxu0
      %v4088 = vadd.f32 0.0, %v4087
      %v4089 = vpop.f32.mrb[0].mxu0
      %4090 = vmatprep.mubr.f32.mxu0 0.0
      %4091 = vmatmul.mubr.f32.gmra.mrb[0].mxu0 %v4016
      %v4092 = vpop.f32.mrb[0].mxu0
      %v4093 = vadd.f32 0.0, %v4092
      %v4094 = vpop.f32.mrb[0].mxu0
      %4095 = vmatprep.mubr.f32.mxu0 0.0
      %4096 = vmatmul.mubr.f32.gmra.mrb[0].mxu0 %v4019
      %v4097 = vpop.f32.mrb[0].mxu0
      %v4098 = vadd.f32 0.0, %v4097
      %v4099 = vpop.f32.mrb[0].mxu0
      %4100 = vdwg.mxu0
      %v4101 = vld [vmem:[%s19] sm:$0xff]
      %v4102 = vld [vmem:[%s19 + $0x8] sm:$0xff]
      %v4104 = vsel %vm2271, %v3798, 0
      %v4107 = vsel %vm2271, %v3803, 0
      %v4110 = vsel %vm2271, %v3808, 0
      %4112 = vmatprep.subr.mxu0 0.0
      %4113 = vmatpush1.msra.mxu0 %v4101
      %4114 = vmatprep.subr.mxu0 0.0
      %4115 = vmatpush1.msra.mxu0 %v4102
      %4116 = vmatprep.subr.mxu0 0.0
      %4117 = vmatpush1.msra.mxu0 0.0
      %4118 = vmatprep.subr.mxu0 0.0
      %4119 = vmatpush1.msra.mxu0 0.0
      %4120 = vmatprep.subr.mxu0 0.0
      %4121 = vmatpush1.msra.mxu0 0.0
      %4122 = vmatprep.subr.mxu0 0.0
      %4123 = vmatpush1.msra.mxu0 0.0
      %4124 = vmatprep.subr.mxu0 0.0
      %4125 = vmatpush1.msra.mxu0 0.0
      %4126 = vmatprep.subr.mxu0 0.0
      %4127 = vmatpush1.msra.mxu0 0.0
      %4128 = vmatprep.subr.mxu0 0.0
      %4129 = vmatpush1.msra.mxu0 0.0
      %4130 = vmatprep.subr.mxu0 0.0
      %4131 = vmatpush1.msra.mxu0 0.0
      %4132 = vmatprep.subr.mxu0 0.0
      %4133 = vmatpush1.msra.mxu0 0.0
      %4134 = vmatprep.subr.mxu0 0.0
      %4135 = vmatpush1.msra.mxu0 0.0
      %4136 = vmatprep.subr.mxu0 0.0
      %4137 = vmatpush1.msra.mxu0 0.0
      %4138 = vmatprep.subr.mxu0 0.0
      %4139 = vmatpush1.msra.mxu0 0.0
      %4140 = vmatprep.subr.mxu0 0.0
      %4141 = vmatpush1.msra.mxu0 0.0
      %4142 = vmatprep.subr.mxu0 0.0
      %4143 = vmatpush1.msra.mxu0 0.0
      %4144 = vmatprep.subr.mxu0 0.0
      %4145 = vmatpush1.msra.mxu0 0.0
      %4146 = vmatprep.subr.mxu0 0.0
      %4147 = vmatpush1.msra.mxu0 0.0
      %4148 = vmatprep.subr.mxu0 0.0
      %4149 = vmatpush1.msra.mxu0 0.0
      %4150 = vmatprep.subr.mxu0 0.0
      %4151 = vmatpush1.msra.mxu0 0.0
      %4152 = vmatprep.subr.mxu0 0.0
      %4153 = vmatpush1.msra.mxu0 0.0
      %4154 = vmatprep.subr.mxu0 0.0
      %4155 = vmatpush1.msra.mxu0 0.0
      %4156 = vmatprep.subr.mxu0 0.0
      %4157 = vmatpush1.msra.mxu0 0.0
      %4158 = vmatprep.subr.mxu0 0.0
      %4159 = vmatpush1.msra.mxu0 0.0
      %4160 = vmatprep.subr.mxu0 0.0
      %4161 = vmatpush1.msra.mxu0 0.0
      %4162 = vmatprep.subr.mxu0 0.0
      %4163 = vmatpush1.msra.mxu0 0.0
      %4164 = vmatprep.subr.mxu0 0.0
      %4165 = vmatpush1.msra.mxu0 0.0
      %4166 = vmatprep.subr.mxu0 0.0
      %4167 = vmatpush1.msra.mxu0 0.0
      %4168 = vmatprep.subr.mxu0 0.0
      %4169 = vmatpush1.msra.mxu0 0.0
      %4170 = vmatprep.subr.mxu0 0.0
      %4171 = vmatpush1.msra.mxu0 0.0
      %4172 = vmatprep.subr.mxu0 0.0
      %4173 = vmatpush1.msra.mxu0 0.0
      %4174 = vmatprep.subr.mxu0 0.0
      %4175 = vmatpush1.msra.mxu0 0.0
      %4176 = vmatprep.mubr.f32.mxu0 0.0
      %4177 = vmatmul.mubr.f32.gmra.mrb[0].mxu0 %v4104
      %v4178 = vpop.f32.mrb[0].mxu0
      %v4179 = vadd.f32 0.0, %v4178
      %v4180 = vpop.f32.mrb[0].mxu0
      %4181 = vmatprep.mubr.f32.mxu0 0.0
      %4182 = vmatmul.mubr.f32.gmra.mrb[0].mxu0 %v4107
      %v4183 = vpop.f32.mrb[0].mxu0
      %v4184 = vadd.f32 0.0, %v4183
      %v4185 = vpop.f32.mrb[0].mxu0
      %4186 = vmatprep.mubr.f32.mxu0 0.0
      %4187 = vmatmul.mubr.f32.gmra.mrb[0].mxu0 %v4110
      %v4188 = vpop.f32.mrb[0].mxu0
      %v4189 = vadd.f32 0.0, %v4188
      %v4190 = vpop.f32.mrb[0].mxu0
      %4191 = vdwg.mxu0
      %v4192 = vld [vmem:[%s21] sm:$0xff]
      %v4193 = vld [vmem:[%s21 + $0x8] sm:$0xff]
      %v4194 = vld [vmem:[%s21 + $0x10] sm:$0xff]
      %v4195 = vld [vmem:[%s20] sm:$0xff]
      %v4196 = vld [vmem:[%s20 + $0x8] sm:$0xff]
      %v4197 = vld [vmem:[%s20 + $0x10] sm:$0xff]
      %v4199 = vsel %vm2733, %v4179, 0
      %v4202 = vsel %vm2733, %v4184, 0
      %v4205 = vsel %vm2733, %v4189, 0
      %v4208 = vsel %vm2733, %v4088, 0
      %v4211 = vsel %vm2733, %v4093, 0
      %v4214 = vsel %vm2733, %v4098, 0
      %4216 = vmatprep.subr.mxu0 0.0
      %4217 = vmatpush1.xpose.msra.mxu0 %v4208
      %4218 = vmatprep.subr.mxu0 0.0
      %4219 = vmatpush1.xpose.msra.mxu0 %v4211
      %4220 = vmatprep.subr.mxu0 0.0
      %4221 = vmatpush1.xpose.msra.mxu0 %v4214
      %4222 = vmatprep.subr.mxu0 0.0
      %4223 = vmatpush1.xpose.msra.mxu0 0.0
      %4224 = vmatprep.subr.mxu0 0.0
      %4225 = vmatpush1.xpose.msra.mxu0 0.0
      %4226 = vmatprep.subr.mxu0 0.0
      %4227 = vmatpush1.xpose.msra.mxu0 0.0
      %4228 = vmatprep.subr.mxu0 0.0
      %4229 = vmatpush1.xpose.msra.mxu0 0.0
      %4230 = vmatprep.subr.mxu0 0.0
      %4231 = vmatpush1.xpose.msra.mxu0 0.0
      %4232 = vmatprep.subr.mxu0 0.0
      %4233 = vmatpush1.xpose.msra.mxu0 0.0
      %4234 = vmatprep.subr.mxu0 0.0
      %4235 = vmatpush1.xpose.msra.mxu0 0.0
      %4236 = vmatprep.subr.mxu0 0.0
      %4237 = vmatpush1.xpose.msra.mxu0 0.0
      %4238 = vmatprep.subr.mxu0 0.0
      %4239 = vmatpush1.xpose.msra.mxu0 0.0
      %4240 = vmatprep.subr.mxu0 0.0
      %4241 = vmatpush1.xpose.msra.mxu0 0.0
      %4242 = vmatprep.subr.mxu0 0.0
      %4243 = vmatpush1.xpose.msra.mxu0 0.0
      %4244 = vmatprep.subr.mxu0 0.0
      %4245 = vmatpush1.xpose.msra.mxu0 0.0
      %4246 = vmatprep.subr.mxu0 0.0
      %4247 = vmatpush1.xpose.msra.mxu0 0.0
      %4248 = vmatprep.subr.mxu0 0.0
      %4249 = vmatpush1.xpose.msra.mxu0 0.0
      %4250 = vmatprep.subr.mxu0 0.0
      %4251 = vmatpush1.xpose.msra.mxu0 0.0
      %4252 = vmatprep.subr.mxu0 0.0
      %4253 = vmatpush1.xpose.msra.mxu0 0.0
      %4254 = vmatprep.subr.mxu0 0.0
      %4255 = vmatpush1.xpose.msra.mxu0 0.0
      %4256 = vmatprep.subr.mxu0 0.0
      %4257 = vmatpush1.xpose.msra.mxu0 0.0
      %4258 = vmatprep.subr.mxu0 0.0
      %4259 = vmatpush1.xpose.msra.mxu0 0.0
      %4260 = vmatprep.subr.mxu0 0.0
      %4261 = vmatpush1.xpose.msra.mxu0 0.0
      %4262 = vmatprep.subr.mxu0 0.0
      %4263 = vmatpush1.xpose.msra.mxu0 0.0
      %4264 = vmatprep.subr.mxu0 0.0
      %4265 = vmatpush1.xpose.msra.mxu0 0.0
      %4266 = vmatprep.subr.mxu0 0.0
      %4267 = vmatpush1.xpose.msra.mxu0 0.0
      %4268 = vmatprep.subr.mxu0 0.0
      %4269 = vmatpush1.xpose.msra.mxu0 0.0
      %4270 = vmatprep.subr.mxu0 0.0
      %4271 = vmatpush1.xpose.msra.mxu0 0.0
      %4272 = vmatprep.subr.mxu0 0.0
      %4273 = vmatpush1.xpose.msra.mxu0 0.0
      %4274 = vmatprep.subr.mxu0 0.0
      %4275 = vmatpush1.xpose.msra.mxu0 0.0
      %4276 = vmatprep.subr.mxu0 0.0
      %4277 = vmatpush1.xpose.msra.mxu0 0.0
      %4278 = vmatprep.subr.mxu0 0.0
      %4279 = vmatpush1.xpose.msra.mxu0 0.0
      %4280 = vmatprep.mubr.f32.mxu0 0.0
      %4281 = vmatmul.mubr.f32.gmra.mrb[0].mxu0 %v4199
      %v4282 = vpop.f32.mrb[0].mxu0
      %v4283 = vadd.f32 %v4195, %v4282
      %v4284 = vpop.f32.mrb[0].mxu0
      %4285 = vmatprep.mubr.f32.mxu0 0.0
      %4286 = vmatmul.mubr.f32.gmra.mrb[0].mxu0 %v4202
      %v4287 = vpop.f32.mrb[0].mxu0
      %v4288 = vadd.f32 %v4196, %v4287
      %v4289 = vpop.f32.mrb[0].mxu0
      %4290 = vmatprep.mubr.f32.mxu0 0.0
      %4291 = vmatmul.mubr.f32.gmra.mrb[0].mxu0 %v4205
      %v4292 = vpop.f32.mrb[0].mxu0
      %v4293 = vadd.f32 %v4197, %v4292
      %v4294 = vpop.f32.mrb[0].mxu0
      %4295 = vdwg.mxu0
      %v4296 = vxor.u32 %v4283, 2147483648
      %v4297 = vxor.u32 %v4288, 2147483648
      %v4298 = vxor.u32 %v4293, 2147483648
      %v4299 = vmul.f32 %v4296, 1.442695
      %v4300 = vpow.pop %v4299
      %v4301 = vmul.f32 %v4297, 1.442695
      %v4302 = vpow.pop %v4301
      %v4303 = vmul.f32 %v4298, 1.442695
      %v4304 = vpow.pop %v4303
      %v4305 = vadd.f32 %v4300, 1.0
      %v4306 = vadd.f32 %v4302, 1.0
      %v4307 = vadd.f32 %v4304, 1.0
      %v4308 = vrcp.pop %v4305
      %v4309 = vmul.f32 1.0, %v4308
      %v4310 = vrcp.pop %v4306
      %v4311 = vmul.f32 1.0, %v4310
      %v4312 = vrcp.pop %v4307
      %v4313 = vmul.f32 1.0, %v4312
      %v4315 = vsel %vm2539, %v4192, 0
      %v4318 = vsel %vm2539, %v4193, 0
      %v4321 = vsel %vm2539, %v4194, 0
      %4323 = vmatprep.subr.mxu0 0.0
      %4324 = vmatpush1.msra.mxu0 %v4309
      %4325 = vmatprep.subr.mxu0 0.0
      %4326 = vmatpush1.msra.mxu0 %v4311
      %4327 = vmatprep.subr.mxu0 0.0
      %4328 = vmatpush1.msra.mxu0 %v4313
      %4329 = vmatprep.subr.mxu0 0.0
      %4330 = vmatpush1.msra.mxu0 0.0
      %4331 = vmatprep.subr.mxu0 0.0
      %4332 = vmatpush1.msra.mxu0 0.0
      %4333 = vmatprep.subr.mxu0 0.0
      %4334 = vmatpush1.msra.mxu0 0.0
      %4335 = vmatprep.subr.mxu0 0.0
      %4336 = vmatpush1.msra.mxu0 0.0
      %4337 = vmatprep.subr.mxu0 0.0
      %4338 = vmatpush1.msra.mxu0 0.0
      %4339 = vmatprep.subr.mxu0 0.0
      %4340 = vmatpush1.msra.mxu0 0.0
      %4341 = vmatprep.subr.mxu0 0.0
      %4342 = vmatpush1.msra.mxu0 0.0
      %4343 = vmatprep.subr.mxu0 0.0
      %4344 = vmatpush1.msra.mxu0 0.0
      %4345 = vmatprep.subr.mxu0 0.0
      %4346 = vmatpush1.msra.mxu0 0.0
      %4347 = vmatprep.subr.mxu0 0.0
      %4348 = vmatpush1.msra.mxu0 0.0
      %4349 = vmatprep.subr.mxu0 0.0
      %4350 = vmatpush1.msra.mxu0 0.0
      %4351 = vmatprep.subr.mxu0 0.0
      %4352 = vmatpush1.msra.mxu0 0.0
      %4353 = vmatprep.subr.mxu0 0.0
      %4354 = vmatpush1.msra.mxu0 0.0
      %4355 = vmatprep.subr.mxu0 0.0
      %4356 = vmatpush1.msra.mxu0 0.0
      %4357 = vmatprep.subr.mxu0 0.0
      %4358 = vmatpush1.msra.mxu0 0.0
      %4359 = vmatprep.subr.mxu0 0.0
      %4360 = vmatpush1.msra.mxu0 0.0
      %4361 = vmatprep.subr.mxu0 0.0
      %4362 = vmatpush1.msra.mxu0 0.0
      %4363 = vmatprep.subr.mxu0 0.0
      %4364 = vmatpush1.msra.mxu0 0.0
      %4365 = vmatprep.subr.mxu0 0.0
      %4366 = vmatpush1.msra.mxu0 0.0
      %4367 = vmatprep.subr.mxu0 0.0
      %4368 = vmatpush1.msra.mxu0 0.0
      %4369 = vmatprep.subr.mxu0 0.0
      %4370 = vmatpush1.msra.mxu0 0.0
      %4371 = vmatprep.subr.mxu0 0.0
      %4372 = vmatpush1.msra.mxu0 0.0
      %4373 = vmatprep.subr.mxu0 0.0
      %4374 = vmatpush1.msra.mxu0 0.0
      %4375 = vmatprep.subr.mxu0 0.0
      %4376 = vmatpush1.msra.mxu0 0.0
      %4377 = vmatprep.subr.mxu0 0.0
      %4378 = vmatpush1.msra.mxu0 0.0
      %4379 = vmatprep.subr.mxu0 0.0
      %4380 = vmatpush1.msra.mxu0 0.0
      %4381 = vmatprep.subr.mxu0 0.0
      %4382 = vmatpush1.msra.mxu0 0.0
      %4383 = vmatprep.subr.mxu0 0.0
      %4384 = vmatpush1.msra.mxu0 0.0
      %4385 = vmatprep.subr.mxu0 0.0
      %4386 = vmatpush1.msra.mxu0 0.0
      %4387 = vmatprep.mubr.f32.mxu0 0.0
      %4388 = vmatmul.mubr.f32.gmra.mrb[0].mxu0 %v4315
      %v4389 = vpop.f32.mrb[0].mxu0
      %v4390 = vadd.f32 0.0, %v4389
      %v4391 = vpop.f32.mrb[0].mxu0
      %4392 = vmatprep.mubr.f32.mxu0 0.0
      %4393 = vmatmul.mubr.f32.gmra.mrb[0].mxu0 %v4318
      %v4394 = vpop.f32.mrb[0].mxu0
      %v4395 = vadd.f32 0.0, %v4394
      %v4396 = vpop.f32.mrb[0].mxu0
      %4397 = vmatprep.mubr.f32.mxu0 0.0
      %4398 = vmatmul.mubr.f32.gmra.mrb[0].mxu0 %v4321
      %v4399 = vpop.f32.mrb[0].mxu0
      %v4400 = vadd.f32 0.0, %v4399
      %v4401 = vpop.f32.mrb[0].mxu0
      %4402 = vdwg.mxu0
      %v4403 = vld [vmem:[%s22] sm:$0x1]
      %v4405 = vlaneseq
      %v4406 = vshrl.u32 %v4405, 7
      %v4407 = vsub.s32 0, %v4406
      %v4408 = vrot.slane %v4403, %v4407
      %v4410 = vmul.f32 %v4390, %v4408
      %v4411 = vmul.f32 %v4395, %v4408
      %v4412 = vmul.f32 %v4400, %v4408
      %v4413 = vld [vmem:[%s23] sm:$0x1]
      %v4415 = vlaneseq
      %v4416 = vshrl.u32 %v4415, 7
      %v4417 = vsub.s32 0, %v4416
      %v4418 = vrot.slane %v4413, %v4417
      %v4420 = vadd.f32 %v4410, %v4418
      %v4421 = vadd.f32 %v4411, %v4418
      %v4422 = vadd.f32 %v4412, %v4418
      %v4423 = vld [vmem:[%s24] sm:$0xff]
      %v4424 = vld [vmem:[%s24 + $0x8] sm:$0xff]
      %v4425 = vld [vmem:[%s24 + $0x10] sm:$0xff]
      %v4426 = vadd.f32 %v4420, %v4423
      %v4427 = vadd.f32 %v4421, %v4424
      %v4428 = vadd.f32 %v4422, %v4425
      %v4429 = vsel %vm2539, %v4426, -inf
      %4430 = vmax.xlane.f32.xlu0 %v4429
      %v4431 = vpop.xlane.xlu0 %4430
      %v4432 = vsel %vm2539, %v4427, -inf
      %4433 = vmax.xlane.f32.xlu0 %v4432
      %v4434 = vpop.xlane.xlu0 %4433
      %v4435 = vsel %vm2539, %v4428, -inf
      %4436 = vmax.xlane.f32.xlu0 %v4435
      %v4437 = vpop.xlane.xlu0 %4436
      %v4438 = vsub.f32 %v4426, %v4431
      %v4439 = vsub.f32 %v4427, %v4434
      %v4440 = vsub.f32 %v4428, %v4437
      %v4441 = vmul.f32 %v4438, 1.442695
      %v4442 = vpow.pop %v4441
      %v4443 = vmul.f32 %v4439, 1.442695
      %v4444 = vpow.pop %v4443
      %v4445 = vmul.f32 %v4440, 1.442695
      %v4446 = vpow.pop %v4445
      %v4447 = vsel %vm2539, %v4442, 0.0
      %4448 = vadd.xlane.f32.xlu0 %v4447
      %v4449 = vpop.xlane.xlu0 %4448
      %v4450 = vsel %vm2539, %v4444, 0.0
      %4451 = vadd.xlane.f32.xlu0 %v4450
      %v4452 = vpop.xlane.xlu0 %4451
      %v4453 = vsel %vm2539, %v4446, 0.0
      %4454 = vadd.xlane.f32.xlu0 %v4453
      %v4455 = vpop.xlane.xlu0 %4454
      %v4456 = vrcp.pop %v4449
      %v4457 = vmul.f32 %v4442, %v4456
      %v4458 = vrcp.pop %v4452
      %v4459 = vmul.f32 %v4444, %v4458
      %v4460 = vrcp.pop %v4455
      %v4461 = vmul.f32 %v4446, %v4460
      %v4462 = vsel %vm2539, %v4457, 0.0
      %v4463 = vsel %vm2539, %v4459, 0.0
      %v4464 = vsel %vm2539, %v4461, 0.0
      %4465 = vst [vmem:[%s807 + $0x18] sm:$0xff] %v4462
      %4466 = vst [vmem:[%s807 + $0x20] sm:$0xff] %v4463
      %4467 = vst [vmem:[%s807 + $0x28] sm:$0xff] %v4464
      %v4469 = vsel %vm2539, %v4457, 0
      %v4472 = vsel %vm2539, %v4459, 0
      %v4475 = vsel %vm2539, %v4461, 0
      %4477 = vmatprep.subr.mxu0 0.0
      %4478 = vmatpush1.msra.mxu0 %v2074
      %4479 = vmatprep.subr.mxu0 0.0
      %4480 = vmatpush1.msra.mxu0 %v2075
      %4481 = vmatprep.subr.mxu0 0.0
      %4482 = vmatpush1.msra.mxu0 %v2076
      %4483 = vmatprep.subr.mxu0 0.0
      %4484 = vmatpush1.msra.mxu0 0.0
      %4485 = vmatprep.subr.mxu0 0.0
      %4486 = vmatpush1.msra.mxu0 0.0
      %4487 = vmatprep.subr.mxu0 0.0
      %4488 = vmatpush1.msra.mxu0 0.0
      %4489 = vmatprep.subr.mxu0 0.0
      %4490 = vmatpush1.msra.mxu0 0.0
      %4491 = vmatprep.subr.mxu0 0.0
      %4492 = vmatpush1.msra.mxu0 0.0
      %4493 = vmatprep.subr.mxu0 0.0
      %4494 = vmatpush1.msra.mxu0 0.0
      %4495 = vmatprep.subr.mxu0 0.0
      %4496 = vmatpush1.msra.mxu0 0.0
      %4497 = vmatprep.subr.mxu0 0.0
      %4498 = vmatpush1.msra.mxu0 0.0
      %4499 = vmatprep.subr.mxu0 0.0
      %4500 = vmatpush1.msra.mxu0 0.0
      %4501 = vmatprep.subr.mxu0 0.0
      %4502 = vmatpush1.msra.mxu0 0.0
      %4503 = vmatprep.subr.mxu0 0.0
      %4504 = vmatpush1.msra.mxu0 0.0
      %4505 = vmatprep.subr.mxu0 0.0
      %4506 = vmatpush1.msra.mxu0 0.0
      %4507 = vmatprep.subr.mxu0 0.0
      %4508 = vmatpush1.msra.mxu0 0.0
      %4509 = vmatprep.subr.mxu0 0.0
      %4510 = vmatpush1.msra.mxu0 0.0
      %4511 = vmatprep.subr.mxu0 0.0
      %4512 = vmatpush1.msra.mxu0 0.0
      %4513 = vmatprep.subr.mxu0 0.0
      %4514 = vmatpush1.msra.mxu0 0.0
      %4515 = vmatprep.subr.mxu0 0.0
      %4516 = vmatpush1.msra.mxu0 0.0
      %4517 = vmatprep.subr.mxu0 0.0
      %4518 = vmatpush1.msra.mxu0 0.0
      %4519 = vmatprep.subr.mxu0 0.0
      %4520 = vmatpush1.msra.mxu0 0.0
      %4521 = vmatprep.subr.mxu0 0.0
      %4522 = vmatpush1.msra.mxu0 0.0
      %4523 = vmatprep.subr.mxu0 0.0
      %4524 = vmatpush1.msra.mxu0 0.0
      %4525 = vmatprep.subr.mxu0 0.0
      %4526 = vmatpush1.msra.mxu0 0.0
      %4527 = vmatprep.subr.mxu0 0.0
      %4528 = vmatpush1.msra.mxu0 0.0
      %4529 = vmatprep.subr.mxu0 0.0
      %4530 = vmatpush1.msra.mxu0 0.0
      %4531 = vmatprep.subr.mxu0 0.0
      %4532 = vmatpush1.msra.mxu0 0.0
      %4533 = vmatprep.subr.mxu0 0.0
      %4534 = vmatpush1.msra.mxu0 0.0
      %4535 = vmatprep.subr.mxu0 0.0
      %4536 = vmatpush1.msra.mxu0 0.0
      %4537 = vmatprep.subr.mxu0 0.0
      %4538 = vmatpush1.msra.mxu0 0.0
      %4539 = vmatprep.subr.mxu0 0.0
      %4540 = vmatpush1.msra.mxu0 0.0
      %4541 = vmatprep.mubr.f32.mxu0 0.0
      %4542 = vmatmul.mubr.f32.gmra.mrb[0].mxu0 %v4469
      %v4543 = vpop.f32.mrb[0].mxu0
      %v4544 = vadd.f32 0.0, %v4543
      %v4545 = vpop.f32.mrb[0].mxu0
      %4546 = vmatprep.mubr.f32.mxu0 0.0
      %4547 = vmatmul.mubr.f32.gmra.mrb[0].mxu0 %v4472
      %v4548 = vpop.f32.mrb[0].mxu0
      %v4549 = vadd.f32 0.0, %v4548
      %v4550 = vpop.f32.mrb[0].mxu0
      %4551 = vmatprep.mubr.f32.mxu0 0.0
      %4552 = vmatmul.mubr.f32.gmra.mrb[0].mxu0 %v4475
      %v4553 = vpop.f32.mrb[0].mxu0
      %v4554 = vadd.f32 0.0, %v4553
      %v4555 = vpop.f32.mrb[0].mxu0
      %4556 = vdwg.mxu0
      %vm4557 = vcmp.ge.f32.partialorder %v4544, 0.0
      %vm4558 = vcmp.ge.f32.partialorder %v4549, 0.0
      %vm4559 = vcmp.ge.f32.partialorder %v4554, 0.0
      %v4560 = vmul.f32 %v4544, 0.01
      %v4561 = vmul.f32 %v4549, 0.01
      %v4562 = vmul.f32 %v4554, 0.01
      %v4563 = vsel %vm4557, %v4544, %v4560
      %v4564 = vsel %vm4558, %v4549, %v4561
      %v4565 = vsel %vm4559, %v4554, %v4562
      %v4566 = vadd.f32 %v4563, %v943
      %v4567 = vadd.f32 %v4564, %v948
      %v4568 = vadd.f32 %v4565, %v953
      %v4569 = vadd.f32 %v4566, %v4567
      %v4570 = vadd.f32 %v4569, %v4568
      %4571 = vadd.xlane.f32.xlu0 %v4570
      %v4572 = vpop.xlane.xlu0 %4571
      %v4573 = vrot.slane %v4572, 4
      %v4574 = vadd.f32 %v4572, %v4573
      %v4575 = vrot.slane %v4574, 2
      %v4576 = vadd.f32 %v4574, %v4575
      %v4577 = vrot.slane %v4576, 1
      %v4578 = vadd.f32 %v4576, %v4577
      %s4579 = vtos %v4578
      %v4580 = vrcp.pop 3072.0
      %s4581 = vtos %v4580
      %s4582 = smul.f32 %s4579, %s4581
      %v4583 = vstv %s4582
      %v4584 = vsub.f32 %v4566, %v4583
      %v4585 = vsub.f32 %v4567, %v4583
      %v4586 = vsub.f32 %v4568, %v4583
      %v4587 = vmul.f32 %v4584, %v4584
      %v4588 = vmul.f32 %v4585, %v4585
      %v4589 = vmul.f32 %v4586, %v4586
      %v4590 = vadd.f32 %v4587, %v4588
      %v4591 = vadd.f32 %v4590, %v4589
      %4592 = vadd.xlane.f32.xlu0 %v4591
      %v4593 = vpop.xlane.xlu0 %4592
      %v4594 = vrot.slane %v4593, 4
      %v4595 = vadd.f32 %v4593, %v4594
      %v4596 = vrot.slane %v4595, 2
      %v4597 = vadd.f32 %v4595, %v4596
      %v4598 = vrot.slane %v4597, 1
      %v4599 = vadd.f32 %v4597, %v4598
      %s4600 = vtos %v4599
      %v4601 = vrcp.pop 3072.0
      %s4602 = vtos %v4601
      %s4603 = smul.f32 %s4600, %s4602
      %s4604 = sadd.f32 %s4603, 1e-05
      %v4605 = vstv %s4604
      %v4606 = vrsqrt.pop %v4605
      %s4607 = vtos %v4606
      %v4608 = vstv %s4607
      %v4609 = vmul.f32 %v4584, %v4608
      %v4610 = vmul.f32 %v4585, %v4608
      %v4611 = vmul.f32 %v4586, %v4608
      %v4612 = vld [vmem:[%s7] sm:$0xff]
      %v4613 = vld [vmem:[%s7 + $0x8] sm:$0xff]
      %v4614 = vld [vmem:[%s7 + $0x10] sm:$0xff]
      %v4615 = vmul.f32 %v4609, %v4612
      %v4616 = vmul.f32 %v4610, %v4613
      %v4617 = vmul.f32 %v4611, %v4614
      %v4618 = vld [vmem:[%s8] sm:$0xff]
      %v4619 = vld [vmem:[%s8 + $0x8] sm:$0xff]
      %v4620 = vld [vmem:[%s8 + $0x10] sm:$0xff]
      %v4621 = vadd.f32 %v4615, %v4618
      %v4622 = vadd.f32 %v4616, %v4619
      %v4623 = vadd.f32 %v4617, %v4620
      %4624 = vst [vmem:[%s801 + $0x18] sm:$0xff] %v4621
      %4625 = vst [vmem:[%s801 + $0x20] sm:$0xff] %v4622
      %4626 = vst [vmem:[%s801 + $0x28] sm:$0xff] %v4623
      %s4627 = smul.u32 6, %s38
      %p4628 = scmp.lt.s32.totalorder %s4627, 23
      %s4629 = scalar_select %p4628, %s4627, 23
      %s4630 = smul.addr %s4629, 8
      %s4631 = scalar_lea.vmem %s25, %s4630
      %s4632 = smul.u32 6, %s38
      %p4633 = scmp.lt.s32.totalorder %s4632, 23
      %s4634 = scalar_select %p4633, %s4632, 23
      %s4635 = smul.addr %s4634, 8
      %s4636 = scalar_lea.vmem %s26, %s4635
      // Predicated region
      $region121: #{st_block_1_forward.1} parent=119 // pred_check
        %p4637 = pneg %p586
      $region122: #{st_block_1_forward.1} parent=119 // pred_check_branch
        %4639 = sbr.rel (%p4637) target = $region124
      $region123: #{st_block_1_forward.1} parent=119 // pred_region
        %s4640 = smul.u32 6, %s38
      $region124: #{st_block_1_forward.1} parent=119 // pred_fallthru
        _
      // Predicated region
      $region125: #{st_block_1_forward.1} parent=119 // pred_check
        %p4641 = pneg %p612
      $region126: #{st_block_1_forward.1} parent=119 // pred_check_branch
        %4643 = sbr.rel (%p4641) target = $region128
      $region127: #{st_block_1_forward.1} parent=119 // pred_region
        %s4644 = smul.u32 6, %s38
      $region128: #{st_block_1_forward.1} parent=119 // pred_fallthru
        _
    $region120: #{st_block_1_forward.1} parent=5 // pred_fallthru
      _
    %p4645 = scmp.le.s32.totalorder 2, %s33
    // Predicated region
    $region129: #{st_block_1_forward.1} parent=5 // pred_check
      %p4646 = pneg %p4645
    $region130: #{st_block_1_forward.1} parent=5 // pred_check_branch
      %4648 = sbr.rel (%p4646) target = $region132
    $region131: #{st_block_1_forward.1} parent=5 // pred_region
      %s4649 = ssub.s32 %s33, 2
      // Predicated region
      $region133: #{st_block_1_forward.1} parent=131 // pred_check
        %p4650 = pneg %p592
      $region134: #{st_block_1_forward.1} parent=131 // pred_check_branch
        %4652 = sbr.rel (%p4650) target = $region136
      $region135: #{st_block_1_forward.1} parent=131 // pred_region
        %s4653 = smul.u32 6, %s39
        %p4654 = scmp.lt.s32.totalorder %s4653, 23
        %s4655 = scalar_select %p4654, %s4653, 23
        %s4656 = smul.addr %s4655, 8
        %s4657 = scalar_lea.vmem %s25, %s4656
      $region136: #{st_block_1_forward.1} parent=131 // pred_fallthru
        _
      // Predicated region
      $region137: #{st_block_1_forward.1} parent=131 // pred_check
        %p4658 = pneg %p618
      $region138: #{st_block_1_forward.1} parent=131 // pred_check_branch
        %4660 = sbr.rel (%p4658) target = $region140
      $region139: #{st_block_1_forward.1} parent=131 // pred_region
        %s4661 = smul.u32 6, %s39
        %p4662 = scmp.lt.s32.totalorder %s4661, 23
        %s4663 = scalar_select %p4662, %s4661, 23
        %s4664 = smul.addr %s4663, 8
        %s4665 = scalar_lea.vmem %s26, %s4664
      $region140: #{st_block_1_forward.1} parent=131 // pred_fallthru
        _
    $region132: #{st_block_1_forward.1} parent=5 // pred_fallthru
      _
  $region6: #{st_block_1_forward.1} parent=0 // loop_footer
    %s37 = sadd.s32 1, %s33
  $region7: #{st_block_1_forward.1} parent=0 // loop_footer_branch
    %32 = sbr.rel target = $region3
  $region8: #{st_block_1_forward.1} parent=0 // loop_exit
    _

</llo_original>
